<compile_context>
chip_gen: v7x
topology: tpu7x:2x2x1
jax: 0.10.0
libtpu: 0.0.40
codegen_flags: <defaults>
</compile_context>

<pallas_src>
import functools
import math

import jax
import jax.numpy as jnp
from jax.experimental import pallas as pl
from jax.experimental.pallas import tpu as pltpu  # noqa: F401  (TPU backend)

# ----------------------------- hyper params -----------------------------
EMB = 32            # opt.emb_size
SAMPLE_ORDER = 2    # opt.sample_order
ALPHA = 0.2         # opt.alpha  (LeakyReLU negative slope)
K_CONST = 0.1       # opt.k
N_NODE = 40         # n_node  -> vocab with pad row = 41

BATCH = 2
MAX_LEN = 8
F_NEIGH = 4
B_NEIGH = 4         # fused-branch kernel assumes S*F_NEIGH == S*B_NEIGH


# ======================= packed-slab layout (static) =======================

def _slab_layout(B, L, N, E):
    """Row offsets of every constant inside the packed (rows, E) slab.
    Each section is 8-row aligned so every in-kernel slice is sublane-aligned."""
    BL = B * L
    order = [("posc", 2 * BL * N),   # pos half of W1/W2, expanded per row
             ("qb", 2 * BL),         # q1[E] / q3[E] rows, per branch
             ("qv", 2 * BL),         # q2 / q4 rows, per branch
             ("w3", 2 * E),          # W3_w.T  (gate, K = 2E)
             ("b3", 1),
             ("w4", E),              # W4_w[:, :E].T
             ("p4", BL),             # pos half of W4 + bias, per (b, l)
             ("q5", 1),
             ("lnw", 1), ("lnb", 1),
             ("fc1", E),             # item-MLP fc1 weight
             ("mlp", E)]             # col0 = fc1_b, col1 = fc2_w, [0,2] = fc2_b
    off, r = {}, 0
    for name, rows in order:
        off[name] = r
        r += ((rows + 7) // 8) * 8
    return off, r


# =============================== kernel ===============================

def _mleup_fused_kernel(tar_ref, node_ref, w_ref, alias_ref, mask_ref,
                        slabE_ref, slabW_ref, embt_ref, out_ref,
                        *, alpha, k, B, L, N, E):
    BL = B * L
    HALF = BL * N               # rows of the forward branch in the stacked tensors
    M2 = 2 * HALF
    off, _ = _slab_layout(B, L, N, E)

    def lrelu(x):
        return jnp.where(x > 0, x, alpha * x)

    def sigmoid(x):
        # stable sigmoid via tanh (no transient inf from exp overflow)
        return 0.5 * (jnp.tanh(0.5 * x) + 1.0)

    def softmax_last(logits):
        logits = logits - jnp.max(logits, axis=-1, keepdims=True)
        e = jnp.exp(logits)
        return e * pl.reciprocal(jnp.sum(e, axis=-1, keepdims=True), approx=True)

    tar = tar_ref[...]                                            # (BL, E)
    w = w_ref[...]                                                # (2BL, N)  [wf ; wb]
    valid = (w != 0.0).astype(jnp.float32)

    # ---------- both GAT branches fused along the row (sublane) axis ----------
    # neighbour projection: ONE MXU push with lane-concatenated [W1b | W2b]
    projcat = jnp.dot(node_ref[...], slabW_ref[0:E, :],
                      preferred_element_type=jnp.float32)         # (2*BL*N, 2E)
    proj = jnp.concatenate([projcat[:HALF, :E], projcat[HALF:, E:]], axis=0)
    proj = proj + slabE_ref[off['posc']:off['posc'] + M2, :]      # pos half of W1/W2
    neig = jnp.tanh(proj).reshape(2 * BL, N, E) * valid[..., None]  # (2BL, N, E)
    # NOTE: a fully-masked row yields a uniform softmax below; result is still 0
    # because neig was zeroed by `valid` (matches the PyTorch reference).

    # attention logits: ONE MXU push with lane-concatenated [q1a | q3a]
    tar2 = jnp.concatenate([tar, tar], axis=0)                    # (2BL, E)
    x = (tar2[:, None, :] * neig).reshape(M2, E)
    acat = jnp.dot(x, slabW_ref[E:2 * E, :],
                   preferred_element_type=jnp.float32)            # (M2, 2E)
    a = jnp.concatenate([acat[:HALF, :E], acat[HALF:, E:]],
                        axis=0).reshape(2 * BL, N, E)
    qb = slabE_ref[off['qb']:off['qb'] + 2 * BL, :].reshape(2 * BL, 1, E)
    qv = slabE_ref[off['qv']:off['qv'] + 2 * BL, :].reshape(2 * BL, 1, E)
    a = a + w[:, :, None] * qb
    # (.,E)@(E,1) replaced by VPU multiply + lane reduction:
    logits = jnp.sum(lrelu(a) * qv, axis=-1)                      # (2BL, N)
    logits = logits + (1.0 - valid) * -10000.0
    p = softmax_last(logits)
    gat = jnp.sum(p[..., None] * neig, axis=1)                    # (2BL, E)
    neig_sum = gat[:BL, :] + gat[BL:, :]                          # (BL, E)

    # ---------- gate fuse: single (BL, 2E) @ (2E, E) matmul ----------
    gate_in = jnp.concatenate([neig_sum, tar], axis=-1)           # (BL, 2E)
    gate = sigmoid(jnp.dot(gate_in, slabE_ref[off['w3']:off['w3'] + 2 * E, :],
                           preferred_element_type=jnp.float32)
                   + slabE_ref[off['b3']:off['b3'] + 1, :])
    final = gate * neig_sum + (1.0 - gate) * tar                  # (BL, E); dropout = id

    # ---------- alias gather (one-hot matmul) + W4 + session attention ----------
    alias_final = jnp.dot(alias_ref[...], final,
                          preferred_element_type=jnp.float32)     # (BL, E)
    mask2 = mask_ref[...]                                         # (B, L)
    fpos3 = (jnp.tanh(jnp.dot(alias_final,
                              slabE_ref[off['w4']:off['w4'] + E, :],
                              preferred_element_type=jnp.float32)
                      + slabE_ref[off['p4']:off['p4'] + BL, :])
             .reshape(B, L, E) * mask2[:, :, None])               # (B, L, E)

    q5 = slabE_ref[off['q5']:off['q5'] + 1, :].reshape(1, 1, E)
    logits5 = jnp.sum(lrelu(fpos3) * q5, axis=-1)                 # (B, L)
    logits5 = logits5 + (1.0 - mask2) * -10000.0
    p5 = softmax_last(logits5)
    sess = jnp.sum(p5[..., None] * fpos3, axis=1)                 # (B, E)

    # ---------- LayerNorm (dropout = identity in eval mode) ----------
    mu = jnp.mean(sess, axis=-1, keepdims=True)
    var = jnp.mean(jnp.square(sess - mu), axis=-1, keepdims=True)
    sess = ((sess - mu) * jax.lax.rsqrt(var + 1e-5)
            * slabE_ref[off['lnw']:off['lnw'] + 1, :]
            + slabE_ref[off['lnb']:off['lnb'] + 1, :])

    # ---------- scores + item MLP (transposed space, lane-dense over VPAD) ----------
    embt = embt_ref[...]                                          # (E, VPAD)
    scores_p = jnp.dot(sess, embt, preferred_element_type=jnp.float32)   # (B, VPAD)

    h = jnp.dot(slabE_ref[off['fc1']:off['fc1'] + E, :], embt,
                preferred_element_type=jnp.float32)               # (E, VPAD)
    h = jnp.maximum(h + slabE_ref[off['mlp']:off['mlp'] + E, 0:1], 0.0)
    y = (jnp.sum(h * slabE_ref[off['mlp']:off['mlp'] + E, 1:2],
                 axis=0, keepdims=True)
         + slabE_ref[off['mlp']:off['mlp'] + 1, 2:3])             # (1, VPAD)
    sig = sigmoid(y)

    # single lane-dense output slab: rows [0,B) = scores_p, [B,2B) = scores_d
    out_ref[...] = jnp.concatenate([scores_p, scores_p * sig - k * sig], axis=0)


# ============================ parameter init ============================

def init_params(key, n_node, E):
    stdv = 1.0 / math.sqrt(E)
    ks = jax.random.split(key, 22)
    u = lambda k, s: jax.random.uniform(k, s, jnp.float32, -stdv, stdv)
    return dict(
        embedding=u(ks[0], (n_node, E)),
        f_pos=u(ks[1], (200, E)),
        b_pos=u(ks[2], (200, E)),
        W1_w=u(ks[3], (E, 2 * E)), W1_b=u(ks[4], (E,)),
        q1=u(ks[5], (E + 1, E)), q2=u(ks[6], (E, 1)),
        W2_w=u(ks[7], (E, 2 * E)), W2_b=u(ks[8], (E,)),
        q3=u(ks[9], (E + 1, E)), q4=u(ks[10], (E, 1)),
        W3_w=u(ks[11], (E, 2 * E)), W3_b=u(ks[12], (E,)),
        W4_w=u(ks[13], (E, 2 * E)), W4_b=u(ks[14], (E,)),
        q5=u(ks[15], (E, 1)),
        LN_w=u(ks[16], (E,)), LN_b=u(ks[17], (E,)),
        fc1_w=u(ks[18], (E, E)), fc1_b=u(ks[19], (E,)),
        fc2_w=u(ks[20], (1, E)), fc2_b=u(ks[21], (1,)),
    )


# ================== one-time parameter preprocessing ==================

def prepare_params(params, B, L):
    """Hoisted out of the per-call path: runs ONCE, packs all constants."""
    E, S = EMB, SAMPLE_ORDER
    BL = B * L
    N = S * F_NEIGH
    assert S * B_NEIGH == N, "fused-branch kernel needs equal neighbor counts"

    emb_table = jnp.concatenate(
        [jnp.zeros((1, E), jnp.float32), params['embedding']], axis=0)   # (V, E)
    V = emb_table.shape[0]
    vpad = ((V + 127) // 128) * 128
    emb_t = jnp.pad(emb_table, ((0, vpad - V), (0, 0))).T                # (E, VPAD)

    def branch_const(pos_tab, W_w, W_b, fn):
        # pos half of the W1/W2 concat matmul: only S distinct rows -> (S*fn, E)
        posc = jnp.repeat(pos_tab[:S] @ W_w[:, :E].T + W_b[None, :], fn, axis=0)
        return posc, W_w[:, E:].T                                        # (N,E), (E,E)

    poscf, w1bT = branch_const(params['f_pos'], params['W1_w'], params['W1_b'], F_NEIGH)
    poscb, w2bT = branch_const(params['b_pos'], params['W2_w'], params['W2_b'], B_NEIGH)

    q1, q2, q3, q4 = params['q1'], params['q2'], params['q3'], params['q4']

    posc_full = jnp.concatenate(
        [jnp.tile(poscf, (BL, 1)), jnp.tile(poscb, (BL, 1))], axis=0)    # (2*BL*N, E)
    qb_full = jnp.concatenate(
        [jnp.tile(q1[E:E + 1], (BL, 1)), jnp.tile(q3[E:E + 1], (BL, 1))], axis=0)
    qv_full = jnp.concatenate(
        [jnp.tile(q2.reshape(1, E), (BL, 1)), jnp.tile(q4.reshape(1, E), (BL, 1))], axis=0)

    w3T = params['W3_w'].T                                               # (2E, E)
    b3 = params['W3_b'].reshape(1, E)
    w4aT = params['W4_w'][:, :E].T
    posc4 = jnp.tile(params['f_pos'][:L] @ params['W4_w'][:, E:].T
                     + params['W4_b'][None, :], (B, 1))                  # (BL, E)
    mlpc = jnp.zeros((E, E), jnp.float32)
    mlpc = mlpc.at[:, 0].set(params['fc1_b'])
    mlpc = mlpc.at[:, 1].set(params['fc2_w'].reshape(E))
    mlpc = mlpc.at[0, 2].set(params['fc2_b'][0])

    off, total = _slab_layout(B, L, N, E)
    slabE = jnp.zeros((total, E), jnp.float32)
    pieces = dict(posc=posc_full, qb=qb_full, qv=qv_full, w3=w3T, b3=b3,
                  w4=w4aT, p4=posc4, q5=params['q5'].reshape(1, E),
                  lnw=params['LN_w'].reshape(1, E),
                  lnb=params['LN_b'].reshape(1, E),
                  fc1=params['fc1_w'], mlp=mlpc)
    for name, arr in pieces.items():
        slabE = slabE.at[off[name]:off[name] + arr.shape[0], :].set(arr)

    # dual-matmul weights: rows [0,E) = [W1b | W2b], rows [E,2E) = [q1a | q3a]
    slabW = jnp.concatenate(
        [jnp.concatenate([w1bT, w2bT], axis=1),
         jnp.concatenate([q1[:E], q3[:E]], axis=1)], axis=0)             # (2E, 2E)

    return dict(emb_table=emb_table, emb_t=emb_t, slabE=slabE, slabW=slabW)


# =============================== forward ===============================

def mleup_forward(prep, alias_re_inputs, items, mask,
                  f_adj_nodes, f_adj_weight, b_adj_nodes, b_adj_weight):
    B, L = mask.shape
    E = EMB
    N = SAMPLE_ORDER * F_NEIGH
    BL = B * L
    emb_table = prep['emb_table']
    V = emb_table.shape[0]
    vpad = prep['emb_t'].shape[1]

    # data-dependent embedding gathers stay in JAX (cheap, per call).
    tar = emb_table[items].reshape(BL, E)
    node2 = jnp.concatenate(
        [emb_table[f_adj_nodes].reshape(BL * N, E),
         emb_table[b_adj_nodes].reshape(BL * N, E)], axis=0)             # (2*BL*N, E)
    w2 = jnp.concatenate(
        [f_adj_weight.reshape(BL, N), b_adj_weight.reshape(BL, N)], axis=0)  # (2BL, N)

    # alias gather expressed as a (BL, BL) one-hot matrix (matmul in-kernel).
    # TODO(synk): switch to scalar-prefetched index gather if BL grows large.
    flat_idx = (alias_re_inputs
                + jnp.arange(B, dtype=alias_re_inputs.dtype)[:, None] * L).reshape(BL)
    alias_oh = jax.nn.one_hot(flat_idx, BL, dtype=jnp.float32)

    mask_f = mask.astype(jnp.float32)

    kernel = functools.partial(_mleup_fused_kernel,
                               alpha=ALPHA, k=K_CONST, B=B, L=L, N=N, E=E)
    out = pl.pallas_call(
        kernel,
        out_shape=jax.ShapeDtypeStruct((2 * B, vpad), jnp.float32),
    )(tar, node2, w2, alias_oh, mask_f,
      prep['slabE'], prep['slabW'], prep['emb_t'])

    # strip the lane padding (pad item at index 0 is kept, matching PyTorch)
    return out[:B, :V], out[B:, :V]


# ================================= main =================================

if __name__ == "__main__":
    key = jax.random.PRNGKey(0)
    kp, ki, ka, kf1, kf2, kb1, kb2, km = jax.random.split(key, 8)

    params = init_params(kp, N_NODE, EMB)
    prep = prepare_params(params, BATCH, MAX_LEN)      # one-time preprocessing

    items = jax.random.randint(ki, (BATCH, MAX_LEN), 0, N_NODE + 1, jnp.int32)
    alias_re_inputs = jax.random.randint(ka, (BATCH, MAX_LEN), 0, MAX_LEN, jnp.int32)

    # mask: first `length` positions valid
    lengths = jnp.array([MAX_LEN, 5], jnp.int32)
    mask = (jnp.arange(MAX_LEN)[None, :] < lengths[:, None]).astype(jnp.float32)

    f_adj_nodes = jax.random.randint(kf1, (BATCH, MAX_LEN, SAMPLE_ORDER, F_NEIGH),
                                     0, N_NODE + 1, jnp.int32)
    b_adj_nodes = jax.random.randint(kb1, (BATCH, MAX_LEN, SAMPLE_ORDER, B_NEIGH),
                                     0, N_NODE + 1, jnp.int32)
    f_w = jax.random.uniform(kf2, (BATCH, MAX_LEN, SAMPLE_ORDER, F_NEIGH), jnp.float32)
    b_w = jax.random.uniform(kb2, (BATCH, MAX_LEN, SAMPLE_ORDER, B_NEIGH), jnp.float32)
    keep_f, keep_b = jax.random.split(km)
    f_adj_weight = f_w * jax.random.bernoulli(keep_f, 0.7, f_w.shape).astype(jnp.float32)
    b_adj_weight = b_w * jax.random.bernoulli(keep_b, 0.7, b_w.shape).astype(jnp.float32)

    fwd = jax.jit(mleup_forward)
    scores_p, scores_d = fwd(prep, alias_re_inputs, items, mask,
                             f_adj_nodes, f_adj_weight, b_adj_nodes, b_adj_weight)
    jax.block_until_ready((scores_p, scores_d))

    assert scores_p.shape == (BATCH, N_NODE + 1)
    assert scores_d.shape == (BATCH, N_NODE + 1)
    print("KERNEL_OK")
</pallas_src>

<mosaic_0001>
module attributes {stable_mosaic.version = 11 : i64} {
  func.func @_mleup_fused_kernel(%arg0: memref<16x32xf32, #tpu.memory_space<vmem>>, %arg1: memref<256x32xf32, #tpu.memory_space<vmem>>, %arg2: memref<32x8xf32, #tpu.memory_space<vmem>>, %arg3: memref<16x16xf32, #tpu.memory_space<vmem>>, %arg4: memref<2x8xf32, #tpu.memory_space<vmem>>, %arg5: memref<528x32xf32, #tpu.memory_space<vmem>>, %arg6: memref<64x64xf32, #tpu.memory_space<vmem>>, %arg7: memref<32x128xf32, #tpu.memory_space<vmem>>, %arg8: memref<4x128xf32, #tpu.memory_space<vmem>>) attributes {dimension_semantics = [], scalar_prefetch = 0 : i64, scratch_operands = 0 : i64, tpu.core_type = #tpu.core_type<tc>} {
    %c0 = arith.constant 0 : index
    %c0_0 = arith.constant 0 : index
    %0 = vector.load %arg0[%c0, %c0_0] : memref<16x32xf32, #tpu.memory_space<vmem>>, vector<16x32xf32>
    %c0_1 = arith.constant 0 : index
    %c0_2 = arith.constant 0 : index
    %1 = vector.load %arg2[%c0_1, %c0_2] : memref<32x8xf32, #tpu.memory_space<vmem>>, vector<32x8xf32>
    %cst = arith.constant 0.000000e+00 : f32
    %2 = vector.broadcast %cst : f32 to vector<32x8xf32>
    %3 = arith.cmpf one, %1, %2 : vector<32x8xf32>
    %4 = arith.extui %3 : vector<32x8xi1> to vector<32x8xi32>
    %5 = arith.sitofp %4 : vector<32x8xi32> to vector<32x8xf32>
    %c0_3 = arith.constant 0 : index
    %c0_4 = arith.constant 0 : index
    %6 = vector.load %arg1[%c0_3, %c0_4] : memref<256x32xf32, #tpu.memory_space<vmem>>, vector<256x32xf32>
    %c0_5 = arith.constant 0 : index
    %c0_6 = arith.constant 0 : index
    %7 = vector.load %arg6[%c0_5, %c0_6] : memref<64x64xf32, #tpu.memory_space<vmem>>, vector<32x64xf32>
    %cst_7 = arith.constant dense<0.000000e+00> : vector<256x64xf32>
    %8 = tpu.matmul %6, %7, %cst_7 {dimension_numbers = #tpu.dot_dimension_numbers<[1], [0], [0], [1], [0, 0, 1, 1], [], []>} : vector<256x32xf32>, vector<32x64xf32>, vector<256x64xf32> -> vector<256x64xf32>
    %9 = vector.extract_strided_slice %8 {offsets = [0, 0], sizes = [128, 32], strides = [1, 1]} : vector<256x64xf32> to vector<128x32xf32>
    %10 = vector.extract_strided_slice %8 {offsets = [128, 32], sizes = [128, 32], strides = [1, 1]} : vector<256x64xf32> to vector<128x32xf32>
    %11 = tpu.concatenate %9, %10 in 0 : vector<128x32xf32>, vector<128x32xf32> -> vector<256x32xf32>
    %c0_8 = arith.constant 0 : index
    %c0_9 = arith.constant 0 : index
    %12 = vector.load %arg5[%c0_8, %c0_9] : memref<528x32xf32, #tpu.memory_space<vmem>>, vector<256x32xf32>
    %13 = arith.addf %11, %12 : vector<256x32xf32>
    %14 = math.tanh %13 : vector<256x32xf32>
    %15 = vector.shape_cast %14 : vector<256x32xf32> to vector<32x8x32xf32>
    %16 = vector.shape_cast %5 : vector<32x8xf32> to vector<32x8x1xf32>
    %17 = vector.broadcast %16 : vector<32x8x1xf32> to vector<32x8x32xf32>
    %18 = arith.mulf %15, %17 : vector<32x8x32xf32>
    %19 = tpu.concatenate %0, %0 in 0 : vector<16x32xf32>, vector<16x32xf32> -> vector<32x32xf32>
    %20 = vector.shape_cast %19 : vector<32x32xf32> to vector<32x1x32xf32>
    %21 = vector.broadcast %20 : vector<32x1x32xf32> to vector<32x8x32xf32>
    %22 = arith.mulf %21, %18 : vector<32x8x32xf32>
    %23 = vector.shape_cast %22 : vector<32x8x32xf32> to vector<256x32xf32>
    %c32 = arith.constant 32 : index
    %c0_10 = arith.constant 0 : index
    %24 = vector.load %arg6[%c32, %c0_10] : memref<64x64xf32, #tpu.memory_space<vmem>>, vector<32x64xf32>
    %cst_11 = arith.constant dense<0.000000e+00> : vector<256x64xf32>
    %25 = tpu.matmul %23, %24, %cst_11 {dimension_numbers = #tpu.dot_dimension_numbers<[1], [0], [0], [1], [0, 0, 1, 1], [], []>} : vector<256x32xf32>, vector<32x64xf32>, vector<256x64xf32> -> vector<256x64xf32>
    %26 = vector.extract_strided_slice %25 {offsets = [0, 0], sizes = [128, 32], strides = [1, 1]} : vector<256x64xf32> to vector<128x32xf32>
    %27 = vector.extract_strided_slice %25 {offsets = [128, 32], sizes = [128, 32], strides = [1, 1]} : vector<256x64xf32> to vector<128x32xf32>
    %28 = tpu.concatenate %26, %27 in 0 : vector<128x32xf32>, vector<128x32xf32> -> vector<256x32xf32>
    %29 = vector.shape_cast %28 : vector<256x32xf32> to vector<32x8x32xf32>
    %c256 = arith.constant 256 : index
    %c0_12 = arith.constant 0 : index
    %30 = vector.load %arg5[%c256, %c0_12] : memref<528x32xf32, #tpu.memory_space<vmem>>, vector<32x32xf32>
    %31 = vector.shape_cast %30 : vector<32x32xf32> to vector<32x1x32xf32>
    %c288 = arith.constant 288 : index
    %c0_13 = arith.constant 0 : index
    %32 = vector.load %arg5[%c288, %c0_13] : memref<528x32xf32, #tpu.memory_space<vmem>>, vector<32x32xf32>
    %33 = vector.shape_cast %32 : vector<32x32xf32> to vector<32x1x32xf32>
    %34 = vector.shape_cast %1 : vector<32x8xf32> to vector<32x8x1xf32>
    %35 = vector.broadcast %34 : vector<32x8x1xf32> to vector<32x8x32xf32>
    %36 = vector.broadcast %31 : vector<32x1x32xf32> to vector<32x8x32xf32>
    %37 = arith.mulf %35, %36 : vector<32x8x32xf32>
    %38 = arith.addf %29, %37 : vector<32x8x32xf32>
    %cst_14 = arith.constant 0.000000e+00 : f32
    %39 = vector.broadcast %cst_14 : f32 to vector<32x8x32xf32>
    %40 = arith.cmpf ogt, %38, %39 : vector<32x8x32xf32>
    %cst_15 = arith.constant 2.000000e-01 : f32
    %41 = vector.broadcast %cst_15 : f32 to vector<32x8x32xf32>
    %42 = arith.mulf %41, %38 : vector<32x8x32xf32>
    %43 = arith.select %40, %38, %42 : vector<32x8x32xi1>, vector<32x8x32xf32>
    %44 = vector.broadcast %33 : vector<32x1x32xf32> to vector<32x8x32xf32>
    %45 = arith.mulf %43, %44 : vector<32x8x32xf32>
    %cst_16 = arith.constant dense<0.000000e+00> : vector<32x8xf32>
    %46 = vector.multi_reduction <add>, %45, %cst_16 [2] : vector<32x8x32xf32> to vector<32x8xf32>
    %cst_17 = arith.constant 1.000000e+00 : f32
    %47 = vector.broadcast %cst_17 : f32 to vector<32x8xf32>
    %48 = arith.subf %47, %5 : vector<32x8xf32>
    %cst_18 = arith.constant -1.000000e+04 : f32
    %49 = vector.broadcast %cst_18 : f32 to vector<32x8xf32>
    %50 = arith.mulf %48, %49 : vector<32x8xf32>
    %51 = arith.addf %46, %50 : vector<32x8xf32>
    %cst_19 = arith.constant dense<0xFF800000> : vector<32xf32>
    %52 = vector.multi_reduction <maximumf>, %51, %cst_19 [1] : vector<32x8xf32> to vector<32xf32>
    %53 = vector.shape_cast %52 : vector<32xf32> to vector<32x1xf32>
    %54 = vector.broadcast %53 : vector<32x1xf32> to vector<32x8xf32>
    %55 = arith.subf %51, %54 : vector<32x8xf32>
    %56 = math.exp %55 : vector<32x8xf32>
    %cst_20 = arith.constant dense<0.000000e+00> : vector<32xf32>
    %57 = vector.multi_reduction <add>, %56, %cst_20 [1] : vector<32x8xf32> to vector<32xf32>
    %58 = vector.shape_cast %57 : vector<32xf32> to vector<32x1xf32>
    %59 = tpu.reciprocal %58 {approx = true} : vector<32x1xf32> -> vector<32x1xf32>
    %60 = vector.broadcast %59 : vector<32x1xf32> to vector<32x8xf32>
    %61 = arith.mulf %56, %60 : vector<32x8xf32>
    %62 = vector.shape_cast %61 : vector<32x8xf32> to vector<32x8x1xf32>
    %63 = vector.broadcast %62 : vector<32x8x1xf32> to vector<32x8x32xf32>
    %64 = arith.mulf %63, %18 : vector<32x8x32xf32>
    %cst_21 = arith.constant dense<0.000000e+00> : vector<32x32xf32>
    %65 = vector.multi_reduction <add>, %64, %cst_21 [1] : vector<32x8x32xf32> to vector<32x32xf32>
    %66 = vector.extract_strided_slice %65 {offsets = [0, 0], sizes = [16, 32], strides = [1, 1]} : vector<32x32xf32> to vector<16x32xf32>
    %67 = vector.extract_strided_slice %65 {offsets = [16, 0], sizes = [16, 32], strides = [1, 1]} : vector<32x32xf32> to vector<16x32xf32>
    %68 = arith.addf %66, %67 : vector<16x32xf32>
    %69 = tpu.concatenate %68, %0 in 1 : vector<16x32xf32>, vector<16x32xf32> -> vector<16x64xf32>
    %c320 = arith.constant 320 : index
    %c0_22 = arith.constant 0 : index
    %70 = vector.load %arg5[%c320, %c0_22] : memref<528x32xf32, #tpu.memory_space<vmem>>, vector<64x32xf32>
    %cst_23 = arith.constant dense<0.000000e+00> : vector<16x32xf32>
    %71 = tpu.matmul %69, %70, %cst_23 {dimension_numbers = #tpu.dot_dimension_numbers<[1], [0], [0], [1], [0, 0, 1, 1], [], []>} : vector<16x64xf32>, vector<64x32xf32>, vector<16x32xf32> -> vector<16x32xf32>
    %c384 = arith.constant 384 : index
    %c0_24 = arith.constant 0 : index
    %72 = vector.load %arg5[%c384, %c0_24] : memref<528x32xf32, #tpu.memory_space<vmem>>, vector<1x32xf32>
    %73 = vector.broadcast %72 : vector<1x32xf32> to vector<16x32xf32>
    %74 = arith.addf %71, %73 : vector<16x32xf32>
    %cst_25 = arith.constant 5.000000e-01 : f32
    %75 = vector.broadcast %cst_25 : f32 to vector<16x32xf32>
    %76 = arith.mulf %75, %74 : vector<16x32xf32>
    %77 = math.tanh %76 : vector<16x32xf32>
    %cst_26 = arith.constant 1.000000e+00 : f32
    %78 = vector.broadcast %cst_26 : f32 to vector<16x32xf32>
    %79 = arith.addf %77, %78 : vector<16x32xf32>
    %cst_27 = arith.constant 5.000000e-01 : f32
    %80 = vector.broadcast %cst_27 : f32 to vector<16x32xf32>
    %81 = arith.mulf %80, %79 : vector<16x32xf32>
    %82 = arith.mulf %81, %68 : vector<16x32xf32>
    %cst_28 = arith.constant 1.000000e+00 : f32
    %83 = vector.broadcast %cst_28 : f32 to vector<16x32xf32>
    %84 = arith.subf %83, %81 : vector<16x32xf32>
    %85 = arith.mulf %84, %0 : vector<16x32xf32>
    %86 = arith.addf %82, %85 : vector<16x32xf32>
    %c0_29 = arith.constant 0 : index
    %c0_30 = arith.constant 0 : index
    %87 = vector.load %arg3[%c0_29, %c0_30] : memref<16x16xf32, #tpu.memory_space<vmem>>, vector<16x16xf32>
    %cst_31 = arith.constant dense<0.000000e+00> : vector<16x32xf32>
    %88 = tpu.matmul %87, %86, %cst_31 {dimension_numbers = #tpu.dot_dimension_numbers<[1], [0], [0], [1], [0, 0, 1, 1], [], []>} : vector<16x16xf32>, vector<16x32xf32>, vector<16x32xf32> -> vector<16x32xf32>
    %c0_32 = arith.constant 0 : index
    %c0_33 = arith.constant 0 : index
    %89 = vector.load %arg4[%c0_32, %c0_33] : memref<2x8xf32, #tpu.memory_space<vmem>>, vector<2x8xf32>
    %c392 = arith.constant 392 : index
    %c0_34 = arith.constant 0 : index
    %90 = vector.load %arg5[%c392, %c0_34] : memref<528x32xf32, #tpu.memory_space<vmem>>, vector<32x32xf32>
    %cst_35 = arith.constant dense<0.000000e+00> : vector<16x32xf32>
    %91 = tpu.matmul %88, %90, %cst_35 {dimension_numbers = #tpu.dot_dimension_numbers<[1], [0], [0], [1], [0, 0, 1, 1], [], []>} : vector<16x32xf32>, vector<32x32xf32>, vector<16x32xf32> -> vector<16x32xf32>
    %c424 = arith.constant 424 : index
    %c0_36 = arith.constant 0 : index
    %92 = vector.load %arg5[%c424, %c0_36] : memref<528x32xf32, #tpu.memory_space<vmem>>, vector<16x32xf32>
    %93 = arith.addf %91, %92 : vector<16x32xf32>
    %94 = math.tanh %93 : vector<16x32xf32>
    %95 = vector.shape_cast %94 : vector<16x32xf32> to vector<2x8x32xf32>
    %96 = vector.shape_cast %89 : vector<2x8xf32> to vector<2x8x1xf32>
    %97 = vector.broadcast %96 : vector<2x8x1xf32> to vector<2x8x32xf32>
    %98 = arith.mulf %95, %97 : vector<2x8x32xf32>
    %c440 = arith.constant 440 : index
    %c0_37 = arith.constant 0 : index
    %99 = vector.load %arg5[%c440, %c0_37] : memref<528x32xf32, #tpu.memory_space<vmem>>, vector<1x32xf32>
    %100 = vector.shape_cast %99 : vector<1x32xf32> to vector<1x1x32xf32>
    %cst_38 = arith.constant 0.000000e+00 : f32
    %101 = vector.broadcast %cst_38 : f32 to vector<2x8x32xf32>
    %102 = arith.cmpf ogt, %98, %101 : vector<2x8x32xf32>
    %cst_39 = arith.constant 2.000000e-01 : f32
    %103 = vector.broadcast %cst_39 : f32 to vector<2x8x32xf32>
    %104 = arith.mulf %103, %98 : vector<2x8x32xf32>
    %105 = arith.select %102, %98, %104 : vector<2x8x32xi1>, vector<2x8x32xf32>
    %106 = vector.broadcast %100 : vector<1x1x32xf32> to vector<2x8x32xf32>
    %107 = arith.mulf %105, %106 : vector<2x8x32xf32>
    %cst_40 = arith.constant dense<0.000000e+00> : vector<2x8xf32>
    %108 = vector.multi_reduction <add>, %107, %cst_40 [2] : vector<2x8x32xf32> to vector<2x8xf32>
    %cst_41 = arith.constant 1.000000e+00 : f32
    %109 = vector.broadcast %cst_41 : f32 to vector<2x8xf32>
    %110 = arith.subf %109, %89 : vector<2x8xf32>
    %cst_42 = arith.constant -1.000000e+04 : f32
    %111 = vector.broadcast %cst_42 : f32 to vector<2x8xf32>
    %112 = arith.mulf %110, %111 : vector<2x8xf32>
    %113 = arith.addf %108, %112 : vector<2x8xf32>
    %cst_43 = arith.constant dense<0xFF800000> : vector<2xf32>
    %114 = vector.multi_reduction <maximumf>, %113, %cst_43 [1] : vector<2x8xf32> to vector<2xf32>
    %115 = vector.shape_cast %114 : vector<2xf32> to vector<2x1xf32>
    %116 = vector.broadcast %115 : vector<2x1xf32> to vector<2x8xf32>
    %117 = arith.subf %113, %116 : vector<2x8xf32>
    %118 = math.exp %117 : vector<2x8xf32>
    %cst_44 = arith.constant dense<0.000000e+00> : vector<2xf32>
    %119 = vector.multi_reduction <add>, %118, %cst_44 [1] : vector<2x8xf32> to vector<2xf32>
    %120 = vector.shape_cast %119 : vector<2xf32> to vector<2x1xf32>
    %121 = tpu.reciprocal %120 {approx = true} : vector<2x1xf32> -> vector<2x1xf32>
    %122 = vector.broadcast %121 : vector<2x1xf32> to vector<2x8xf32>
    %123 = arith.mulf %118, %122 : vector<2x8xf32>
    %124 = vector.shape_cast %123 : vector<2x8xf32> to vector<2x8x1xf32>
    %125 = vector.broadcast %124 : vector<2x8x1xf32> to vector<2x8x32xf32>
    %126 = arith.mulf %125, %98 : vector<2x8x32xf32>
    %cst_45 = arith.constant dense<0.000000e+00> : vector<2x32xf32>
    %127 = vector.multi_reduction <add>, %126, %cst_45 [1] : vector<2x8x32xf32> to vector<2x32xf32>
    %cst_46 = arith.constant dense<0.000000e+00> : vector<2xf32>
    %128 = vector.multi_reduction <add>, %127, %cst_46 [1] : vector<2x32xf32> to vector<2xf32>
    %129 = vector.shape_cast %128 : vector<2xf32> to vector<2x1xf32>
    %cst_47 = arith.constant 3.200000e+01 : f32
    %130 = vector.broadcast %cst_47 : f32 to vector<2x1xf32>
    %131 = arith.divf %129, %130 : vector<2x1xf32>
    %132 = vector.broadcast %131 : vector<2x1xf32> to vector<2x32xf32>
    %133 = arith.subf %127, %132 : vector<2x32xf32>
    %134 = arith.mulf %133, %133 : vector<2x32xf32>
    %cst_48 = arith.constant dense<0.000000e+00> : vector<2xf32>
    %135 = vector.multi_reduction <add>, %134, %cst_48 [1] : vector<2x32xf32> to vector<2xf32>
    %136 = vector.shape_cast %135 : vector<2xf32> to vector<2x1xf32>
    %cst_49 = arith.constant 3.200000e+01 : f32
    %137 = vector.broadcast %cst_49 : f32 to vector<2x1xf32>
    %138 = arith.divf %136, %137 : vector<2x1xf32>
    %139 = vector.broadcast %131 : vector<2x1xf32> to vector<2x32xf32>
    %140 = arith.subf %127, %139 : vector<2x32xf32>
    %cst_50 = arith.constant 9.99999974E-6 : f32
    %141 = vector.broadcast %cst_50 : f32 to vector<2x1xf32>
    %142 = arith.addf %138, %141 : vector<2x1xf32>
    %143 = math.rsqrt %142 : vector<2x1xf32>
    %144 = vector.broadcast %143 : vector<2x1xf32> to vector<2x32xf32>
    %145 = arith.mulf %140, %144 : vector<2x32xf32>
    %c448 = arith.constant 448 : index
    %c0_51 = arith.constant 0 : index
    %146 = vector.load %arg5[%c448, %c0_51] : memref<528x32xf32, #tpu.memory_space<vmem>>, vector<1x32xf32>
    %147 = vector.broadcast %146 : vector<1x32xf32> to vector<2x32xf32>
    %148 = arith.mulf %145, %147 : vector<2x32xf32>
    %c456 = arith.constant 456 : index
    %c0_52 = arith.constant 0 : index
    %149 = vector.load %arg5[%c456, %c0_52] : memref<528x32xf32, #tpu.memory_space<vmem>>, vector<1x32xf32>
    %150 = vector.broadcast %149 : vector<1x32xf32> to vector<2x32xf32>
    %151 = arith.addf %148, %150 : vector<2x32xf32>
    %c0_53 = arith.constant 0 : index
    %c0_54 = arith.constant 0 : index
    %152 = vector.load %arg7[%c0_53, %c0_54] : memref<32x128xf32, #tpu.memory_space<vmem>>, vector<32x128xf32>
    %cst_55 = arith.constant dense<0.000000e+00> : vector<2x128xf32>
    %153 = tpu.matmul %151, %152, %cst_55 {dimension_numbers = #tpu.dot_dimension_numbers<[1], [0], [0], [1], [0, 0, 1, 1], [], []>} : vector<2x32xf32>, vector<32x128xf32>, vector<2x128xf32> -> vector<2x128xf32>
    %c464 = arith.constant 464 : index
    %c0_56 = arith.constant 0 : index
    %154 = vector.load %arg5[%c464, %c0_56] : memref<528x32xf32, #tpu.memory_space<vmem>>, vector<32x32xf32>
    %cst_57 = arith.constant dense<0.000000e+00> : vector<32x128xf32>
    %155 = tpu.matmul %154, %152, %cst_57 {dimension_numbers = #tpu.dot_dimension_numbers<[1], [0], [0], [1], [0, 0, 1, 1], [], []>} : vector<32x32xf32>, vector<32x128xf32>, vector<32x128xf32> -> vector<32x128xf32>
    %c496 = arith.constant 496 : index
    %c0_58 = arith.constant 0 : index
    %156 = vector.load %arg5[%c496, %c0_58] : memref<528x32xf32, #tpu.memory_space<vmem>>, vector<32x1xf32>
    %157 = vector.broadcast %156 : vector<32x1xf32> to vector<32x128xf32>
    %158 = arith.addf %155, %157 : vector<32x128xf32>
    %cst_59 = arith.constant 0.000000e+00 : f32
    %159 = vector.broadcast %cst_59 : f32 to vector<32x128xf32>
    %160 = arith.maximumf %158, %159 : vector<32x128xf32>
    %c496_60 = arith.constant 496 : index
    %c1 = arith.constant 1 : index
    %161 = vector.load %arg5[%c496_60, %c1] : memref<528x32xf32, #tpu.memory_space<vmem>>, vector<32x1xf32>
    %162 = vector.broadcast %161 : vector<32x1xf32> to vector<32x128xf32>
    %163 = arith.mulf %160, %162 : vector<32x128xf32>
    %cst_61 = arith.constant dense<0.000000e+00> : vector<128xf32>
    %164 = vector.multi_reduction <add>, %163, %cst_61 [0] : vector<32x128xf32> to vector<128xf32>
    %165 = vector.shape_cast %164 : vector<128xf32> to vector<1x128xf32>
    %c496_62 = arith.constant 496 : index
    %c2 = arith.constant 2 : index
    %166 = vector.load %arg5[%c496_62, %c2] : memref<528x32xf32, #tpu.memory_space<vmem>>, vector<1x1xf32>
    %167 = vector.broadcast %166 : vector<1x1xf32> to vector<1x128xf32>
    %168 = arith.addf %165, %167 : vector<1x128xf32>
    %cst_63 = arith.constant 5.000000e-01 : f32
    %169 = vector.broadcast %cst_63 : f32 to vector<1x128xf32>
    %170 = arith.mulf %169, %168 : vector<1x128xf32>
    %171 = math.tanh %170 : vector<1x128xf32>
    %cst_64 = arith.constant 1.000000e+00 : f32
    %172 = vector.broadcast %cst_64 : f32 to vector<1x128xf32>
    %173 = arith.addf %171, %172 : vector<1x128xf32>
    %cst_65 = arith.constant 5.000000e-01 : f32
    %174 = vector.broadcast %cst_65 : f32 to vector<1x128xf32>
    %175 = arith.mulf %174, %173 : vector<1x128xf32>
    %176 = vector.broadcast %175 : vector<1x128xf32> to vector<2x128xf32>
    %177 = arith.mulf %153, %176 : vector<2x128xf32>
    %cst_66 = arith.constant 1.000000e-01 : f32
    %178 = vector.broadcast %cst_66 : f32 to vector<1x128xf32>
    %179 = arith.mulf %178, %175 : vector<1x128xf32>
    %180 = vector.broadcast %179 : vector<1x128xf32> to vector<2x128xf32>
    %181 = arith.subf %177, %180 : vector<2x128xf32>
    %182 = tpu.concatenate %153, %181 in 0 : vector<2x128xf32>, vector<2x128xf32> -> vector<4x128xf32>
    %c0_67 = arith.constant 0 : index
    %c0_68 = arith.constant 0 : index
    %183 = vector.load %arg8[%c0_67, %c0_68] : memref<4x128xf32, #tpu.memory_space<vmem>>, vector<4x128xf32>
    tpu.vector_store %arg8[%c0_67, %c0_68], %182 {strides = array<i32>} : memref<4x128xf32, #tpu.memory_space<vmem>>, vector<4x128xf32>,
    return
  }
}

</mosaic_0001>

<llo_original>
// kernel: eq.1
$region0: #{eq.1}
  %s0 = inlined_call_operand.vmem [shape: s32[2,8], index: 0, kind: input, shape index: {}]
  %s1 = inlined_call_operand.vmem [shape: s32[16], index: 1, kind: output, shape index: {}]
  $region1: #{eq.1} parent=0
    #allocation0 [shape = 'u8[4096]{0}', space=vmem, size = 0x1000, scoped, tag = 'scoped mem for output reshape']
    #allocation1 [shape = 'u8[4096]{0}', space=vmem, size = 0x1000, scoped, tag = 'scoped mem for input reshape']
    %s3 = sshllo.u32 0, 2
    %v4 = vld [vmem:[%s0] sm:%s3]
    %5 = vst [vmem:[#allocation1] sm:%s3] %v4
    %v6 = vld [vmem:[#allocation1] sm:$0x1]
    %vm7 = vcmask 64512
    %8 = vst.msk [vmem:[#allocation0] sm:$0x1] %vm7, %v6
    %s9 = scalar_lea.vmem [#allocation1], 1
    %v10 = vld [vmem:[%s9] sm:$0x1]
    %11 = vrot.lane.b32.xlu0 %v10, 8
    %v12 = vpop.permute.xlu0 %11
    %vm13 = vcmask 130112
    %14 = vst.msk [vmem:[#allocation0] sm:$0x1] %vm13, %v12
    %s16 = sshllo.u32 0, 1
    %v18 = vld [vmem:[#allocation0] sm:%s16]
    %s19 = sshllo.u32 0, 1
    %20 = vst [vmem:[%s1] sm:%s19] %v18

// kernel: mleup_forward.1
$region0: #{mleup_forward.1}
  #allocation0 [shape = 'u32[]', space=smem, size = 0x4, offset = 0x4, fixed_abs, tag = 'smem constant byte address 0x4 - core index']
  #allocation1 [shape = 'u32[144,128]{1,0:T(1,128)}', space=vmem, size = 0x12000, scoped, tag = 'internal scratch']
  %s0 = inlined_call_operand.vmem [shape: f32[16,32], index: 0, kind: input, shape index: {}]
  %s1 = inlined_call_operand.vmem [shape: f32[256,32], index: 1, kind: input, shape index: {}]
  %s2 = inlined_call_operand.vmem [shape: f32[32,8], index: 2, kind: input, shape index: {}]
  %s3 = inlined_call_operand.vmem [shape: f32[16,16], index: 3, kind: input, shape index: {}]
  %s4 = inlined_call_operand.vmem [shape: f32[2,8], index: 4, kind: input, shape index: {}]
  %s5 = inlined_call_operand.vmem [shape: f32[528,32], index: 5, kind: input, shape index: {}]
  %s6 = inlined_call_operand.vmem [shape: f32[64,64], index: 6, kind: input, shape index: {}]
  %s7 = inlined_call_operand.vmem [shape: f32[32,128], index: 7, kind: input, shape index: {}]
  %s8 = inlined_call_operand.vmem [shape: f32[4,128], index: 8, kind: output, shape index: {}]
  %s9 = sld [smem:[#allocation0]]
  $region42: #{mleup_forward.1} parent=0
    _
  %s11 = ssub.s32 1, %s9
  %s12 = scalar_select 0, %s11, %s9
  // Predicated region
  $region2: #{mleup_forward.1} parent=0 // pred_check
    _
  $region3: #{mleup_forward.1} parent=0 // pred_check_branch
    %14 = sbr.rel (0) target = $region5
  $region4: #{mleup_forward.1} parent=0 // pred_region
    _
  $region5: #{mleup_forward.1} parent=0 // pred_fallthru
    _
  // Predicated region
  $region6: #{mleup_forward.1} parent=0 // pred_check
    _
  $region7: #{mleup_forward.1} parent=0 // pred_check_branch
    %16 = sbr.rel (0) target = $region9
  $region8: #{mleup_forward.1} parent=0 // pred_region
    _
  $region9: #{mleup_forward.1} parent=0 // pred_fallthru
    _
  // Predicated region
  $region10: #{mleup_forward.1} parent=0 // pred_check
    _
  $region11: #{mleup_forward.1} parent=0 // pred_check_branch
    %18 = sbr.rel (0) target = $region13
  $region12: #{mleup_forward.1} parent=0 // pred_region
    _
  $region13: #{mleup_forward.1} parent=0 // pred_fallthru
    _
  // Predicated region
  $region14: #{mleup_forward.1} parent=0 // pred_check
    _
  $region15: #{mleup_forward.1} parent=0 // pred_check_branch
    %20 = sbr.rel (0) target = $region17
  $region16: #{mleup_forward.1} parent=0 // pred_region
    _
  $region17: #{mleup_forward.1} parent=0 // pred_fallthru
    _
  // Predicated region
  $region18: #{mleup_forward.1} parent=0 // pred_check
    _
  $region19: #{mleup_forward.1} parent=0 // pred_check_branch
    %22 = sbr.rel (0) target = $region21
  $region20: #{mleup_forward.1} parent=0 // pred_region
    _
  $region21: #{mleup_forward.1} parent=0 // pred_fallthru
    _
  // Predicated region
  $region22: #{mleup_forward.1} parent=0 // pred_check
    _
  $region23: #{mleup_forward.1} parent=0 // pred_check_branch
    %24 = sbr.rel (0) target = $region25
  $region24: #{mleup_forward.1} parent=0 // pred_region
    _
  $region25: #{mleup_forward.1} parent=0 // pred_fallthru
    _
  // Predicated region
  $region26: #{mleup_forward.1} parent=0 // pred_check
    _
  $region27: #{mleup_forward.1} parent=0 // pred_check_branch
    %26 = sbr.rel (0) target = $region29
  $region28: #{mleup_forward.1} parent=0 // pred_region
    _
  $region29: #{mleup_forward.1} parent=0 // pred_fallthru
    _
  // Predicated region
  $region30: #{mleup_forward.1} parent=0 // pred_check
    _
  $region31: #{mleup_forward.1} parent=0 // pred_check_branch
    %28 = sbr.rel (0) target = $region33
  $region32: #{mleup_forward.1} parent=0 // pred_region
    _
  $region33: #{mleup_forward.1} parent=0 // pred_fallthru
    _
  %v29 = vld [vmem:[%s0] sm:$0xff]
  %v30 = vld [vmem:[%s0 + $0x8] sm:$0xff]
  %v31 = vld [vmem:[%s2] sm:$0xff]
  %v32 = vld [vmem:[%s2 + $0x8] sm:$0xff]
  %v33 = vld [vmem:[%s2 + $0x10] sm:$0xff]
  %v34 = vld [vmem:[%s2 + $0x18] sm:$0xff]
  %vm35 = vcmp.ne.f32.partialorder %v31, 0.0
  %vm36 = vcmp.ne.f32.partialorder %v32, 0.0
  %vm37 = vcmp.ne.f32.partialorder %v33, 0.0
  %vm38 = vcmp.ne.f32.partialorder %v34, 0.0
  %v39 = vsel %vm35, 1, 0
  %v40 = vsel %vm36, 1, 0
  %v41 = vsel %vm37, 1, 0
  %v42 = vsel %vm38, 1, 0
  %v43 = vcvt.s32.f32 %v39
  %v44 = vcvt.s32.f32 %v40
  %v45 = vcvt.s32.f32 %v41
  %v46 = vcvt.s32.f32 %v42
  %v47 = vld [vmem:[%s1] sm:$0xff]
  %v48 = vld [vmem:[%s1 + $0x8] sm:$0xff]
  %v49 = vld [vmem:[%s1 + $0x10] sm:$0xff]
  %v50 = vld [vmem:[%s1 + $0x18] sm:$0xff]
  %v51 = vld [vmem:[%s1 + $0x20] sm:$0xff]
  %v52 = vld [vmem:[%s1 + $0x28] sm:$0xff]
  %v53 = vld [vmem:[%s1 + $0x30] sm:$0xff]
  %v54 = vld [vmem:[%s1 + $0x38] sm:$0xff]
  %v55 = vld [vmem:[%s1 + $0x40] sm:$0xff]
  %v56 = vld [vmem:[%s1 + $0x48] sm:$0xff]
  %v57 = vld [vmem:[%s1 + $0x50] sm:$0xff]
  %v58 = vld [vmem:[%s1 + $0x58] sm:$0xff]
  %v59 = vld [vmem:[%s1 + $0x60] sm:$0xff]
  %v60 = vld [vmem:[%s1 + $0x68] sm:$0xff]
  %v61 = vld [vmem:[%s1 + $0x70] sm:$0xff]
  %v62 = vld [vmem:[%s1 + $0x78] sm:$0xff]
  %v63 = vld [vmem:[%s1 + $0x80] sm:$0xff]
  %v64 = vld [vmem:[%s1 + $0x88] sm:$0xff]
  %v65 = vld [vmem:[%s1 + $0x90] sm:$0xff]
  %v66 = vld [vmem:[%s1 + $0x98] sm:$0xff]
  %v67 = vld [vmem:[%s1 + $0xa0] sm:$0xff]
  %v68 = vld [vmem:[%s1 + $0xa8] sm:$0xff]
  %v69 = vld [vmem:[%s1 + $0xb0] sm:$0xff]
  %v70 = vld [vmem:[%s1 + $0xb8] sm:$0xff]
  %v71 = vld [vmem:[%s1 + $0xc0] sm:$0xff]
  %v72 = vld [vmem:[%s1 + $0xc8] sm:$0xff]
  %v73 = vld [vmem:[%s1 + $0xd0] sm:$0xff]
  %v74 = vld [vmem:[%s1 + $0xd8] sm:$0xff]
  %v75 = vld [vmem:[%s1 + $0xe0] sm:$0xff]
  %v76 = vld [vmem:[%s1 + $0xe8] sm:$0xff]
  %v77 = vld [vmem:[%s1 + $0xf0] sm:$0xff]
  %v78 = vld [vmem:[%s1 + $0xf8] sm:$0xff]
  %v79 = vld [vmem:[%s6] sm:$0xff]
  %v80 = vld [vmem:[%s6 + $0x8] sm:$0xff]
  %v81 = vld [vmem:[%s6 + $0x10] sm:$0xff]
  %v82 = vld [vmem:[%s6 + $0x18] sm:$0xff]
  %vm83 = vcmask 261120
  %v85 = vsel %vm83, %v47, 0
  %v88 = vsel %vm83, %v48, 0
  %v91 = vsel %vm83, %v49, 0
  %v94 = vsel %vm83, %v50, 0
  %v97 = vsel %vm83, %v51, 0
  %v100 = vsel %vm83, %v52, 0
  %v103 = vsel %vm83, %v53, 0
  %v106 = vsel %vm83, %v54, 0
  %v109 = vsel %vm83, %v55, 0
  %v112 = vsel %vm83, %v56, 0
  %v115 = vsel %vm83, %v57, 0
  %v118 = vsel %vm83, %v58, 0
  %v121 = vsel %vm83, %v59, 0
  %v124 = vsel %vm83, %v60, 0
  %v127 = vsel %vm83, %v61, 0
  %v130 = vsel %vm83, %v62, 0
  %v133 = vsel %vm83, %v63, 0
  %v136 = vsel %vm83, %v64, 0
  %v139 = vsel %vm83, %v65, 0
  %v142 = vsel %vm83, %v66, 0
  %v145 = vsel %vm83, %v67, 0
  %v148 = vsel %vm83, %v68, 0
  %v151 = vsel %vm83, %v69, 0
  %v154 = vsel %vm83, %v70, 0
  %v157 = vsel %vm83, %v71, 0
  %v160 = vsel %vm83, %v72, 0
  %v163 = vsel %vm83, %v73, 0
  %v166 = vsel %vm83, %v74, 0
  %v169 = vsel %vm83, %v75, 0
  %v172 = vsel %vm83, %v76, 0
  %v175 = vsel %vm83, %v77, 0
  %v178 = vsel %vm83, %v78, 0
  %180 = vmatprep.subr.mxu0 0.0
  %181 = vmatpush1.msra.mxu0 %v79
  %182 = vmatprep.subr.mxu0 0.0
  %183 = vmatpush1.msra.mxu0 %v80
  %184 = vmatprep.subr.mxu0 0.0
  %185 = vmatpush1.msra.mxu0 %v81
  %186 = vmatprep.subr.mxu0 0.0
  %187 = vmatpush1.msra.mxu0 %v82
  %188 = vmatprep.subr.mxu0 0.0
  %189 = vmatpush1.msra.mxu0 0.0
  %190 = vmatprep.subr.mxu0 0.0
  %191 = vmatpush1.msra.mxu0 0.0
  %192 = vmatprep.subr.mxu0 0.0
  %193 = vmatpush1.msra.mxu0 0.0
  %194 = vmatprep.subr.mxu0 0.0
  %195 = vmatpush1.msra.mxu0 0.0
  %196 = vmatprep.subr.mxu0 0.0
  %197 = vmatpush1.msra.mxu0 0.0
  %198 = vmatprep.subr.mxu0 0.0
  %199 = vmatpush1.msra.mxu0 0.0
  %200 = vmatprep.subr.mxu0 0.0
  %201 = vmatpush1.msra.mxu0 0.0
  %202 = vmatprep.subr.mxu0 0.0
  %203 = vmatpush1.msra.mxu0 0.0
  %204 = vmatprep.subr.mxu0 0.0
  %205 = vmatpush1.msra.mxu0 0.0
  %206 = vmatprep.subr.mxu0 0.0
  %207 = vmatpush1.msra.mxu0 0.0
  %208 = vmatprep.subr.mxu0 0.0
  %209 = vmatpush1.msra.mxu0 0.0
  %210 = vmatprep.subr.mxu0 0.0
  %211 = vmatpush1.msra.mxu0 0.0
  %212 = vmatprep.subr.mxu0 0.0
  %213 = vmatpush1.msra.mxu0 0.0
  %214 = vmatprep.subr.mxu0 0.0
  %215 = vmatpush1.msra.mxu0 0.0
  %216 = vmatprep.subr.mxu0 0.0
  %217 = vmatpush1.msra.mxu0 0.0
  %218 = vmatprep.subr.mxu0 0.0
  %219 = vmatpush1.msra.mxu0 0.0
  %220 = vmatprep.subr.mxu0 0.0
  %221 = vmatpush1.msra.mxu0 0.0
  %222 = vmatprep.subr.mxu0 0.0
  %223 = vmatpush1.msra.mxu0 0.0
  %224 = vmatprep.subr.mxu0 0.0
  %225 = vmatpush1.msra.mxu0 0.0
  %226 = vmatprep.subr.mxu0 0.0
  %227 = vmatpush1.msra.mxu0 0.0
  %228 = vmatprep.subr.mxu0 0.0
  %229 = vmatpush1.msra.mxu0 0.0
  %230 = vmatprep.subr.mxu0 0.0
  %231 = vmatpush1.msra.mxu0 0.0
  %232 = vmatprep.subr.mxu0 0.0
  %233 = vmatpush1.msra.mxu0 0.0
  %234 = vmatprep.subr.mxu0 0.0
  %235 = vmatpush1.msra.mxu0 0.0
  %236 = vmatprep.subr.mxu0 0.0
  %237 = vmatpush1.msra.mxu0 0.0
  %238 = vmatprep.subr.mxu0 0.0
  %239 = vmatpush1.msra.mxu0 0.0
  %240 = vmatprep.subr.mxu0 0.0
  %241 = vmatpush1.msra.mxu0 0.0
  %242 = vmatprep.subr.mxu0 0.0
  %243 = vmatpush1.msra.mxu0 0.0
  %244 = vmatprep.mubr.f32.mxu0 0.0
  %245 = vmatmul.mubr.f32.gmra.mrb[0].mxu0 %v85
  %v246 = vpop.f32.mrb[0].mxu0
  %v247 = vadd.f32 0.0, %v246
  %v248 = vpop.f32.mrb[0].mxu0
  %249 = vmatprep.mubr.f32.mxu0 0.0
  %250 = vmatmul.mubr.f32.gmra.mrb[0].mxu0 %v88
  %v251 = vpop.f32.mrb[0].mxu0
  %v252 = vadd.f32 0.0, %v251
  %v253 = vpop.f32.mrb[0].mxu0
  %254 = vmatprep.mubr.f32.mxu0 0.0
  %255 = vmatmul.mubr.f32.gmra.mrb[0].mxu0 %v91
  %v256 = vpop.f32.mrb[0].mxu0
  %v257 = vadd.f32 0.0, %v256
  %v258 = vpop.f32.mrb[0].mxu0
  %259 = vmatprep.mubr.f32.mxu0 0.0
  %260 = vmatmul.mubr.f32.gmra.mrb[0].mxu0 %v94
  %v261 = vpop.f32.mrb[0].mxu0
  %v262 = vadd.f32 0.0, %v261
  %v263 = vpop.f32.mrb[0].mxu0
  %264 = vmatprep.mubr.f32.mxu0 0.0
  %265 = vmatmul.mubr.f32.gmra.mrb[0].mxu0 %v97
  %v266 = vpop.f32.mrb[0].mxu0
  %v267 = vadd.f32 0.0, %v266
  %v268 = vpop.f32.mrb[0].mxu0
  %269 = vmatprep.mubr.f32.mxu0 0.0
  %270 = vmatmul.mubr.f32.gmra.mrb[0].mxu0 %v100
  %v271 = vpop.f32.mrb[0].mxu0
  %v272 = vadd.f32 0.0, %v271
  %v273 = vpop.f32.mrb[0].mxu0
  %274 = vmatprep.mubr.f32.mxu0 0.0
  %275 = vmatmul.mubr.f32.gmra.mrb[0].mxu0 %v103
  %v276 = vpop.f32.mrb[0].mxu0
  %v277 = vadd.f32 0.0, %v276
  %v278 = vpop.f32.mrb[0].mxu0
  %279 = vmatprep.mubr.f32.mxu0 0.0
  %280 = vmatmul.mubr.f32.gmra.mrb[0].mxu0 %v106
  %v281 = vpop.f32.mrb[0].mxu0
  %v282 = vadd.f32 0.0, %v281
  %v283 = vpop.f32.mrb[0].mxu0
  %284 = vmatprep.mubr.f32.mxu0 0.0
  %285 = vmatmul.mubr.f32.gmra.mrb[0].mxu0 %v109
  %v286 = vpop.f32.mrb[0].mxu0
  %v287 = vadd.f32 0.0, %v286
  %v288 = vpop.f32.mrb[0].mxu0
  %289 = vmatprep.mubr.f32.mxu0 0.0
  %290 = vmatmul.mubr.f32.gmra.mrb[0].mxu0 %v112
  %v291 = vpop.f32.mrb[0].mxu0
  %v292 = vadd.f32 0.0, %v291
  %v293 = vpop.f32.mrb[0].mxu0
  %294 = vmatprep.mubr.f32.mxu0 0.0
  %295 = vmatmul.mubr.f32.gmra.mrb[0].mxu0 %v115
  %v296 = vpop.f32.mrb[0].mxu0
  %v297 = vadd.f32 0.0, %v296
  %v298 = vpop.f32.mrb[0].mxu0
  %299 = vmatprep.mubr.f32.mxu0 0.0
  %300 = vmatmul.mubr.f32.gmra.mrb[0].mxu0 %v118
  %v301 = vpop.f32.mrb[0].mxu0
  %v302 = vadd.f32 0.0, %v301
  %v303 = vpop.f32.mrb[0].mxu0
  %304 = vmatprep.mubr.f32.mxu0 0.0
  %305 = vmatmul.mubr.f32.gmra.mrb[0].mxu0 %v121
  %v306 = vpop.f32.mrb[0].mxu0
  %v307 = vadd.f32 0.0, %v306
  %v308 = vpop.f32.mrb[0].mxu0
  %309 = vmatprep.mubr.f32.mxu0 0.0
  %310 = vmatmul.mubr.f32.gmra.mrb[0].mxu0 %v124
  %v311 = vpop.f32.mrb[0].mxu0
  %v312 = vadd.f32 0.0, %v311
  %v313 = vpop.f32.mrb[0].mxu0
  %314 = vmatprep.mubr.f32.mxu0 0.0
  %315 = vmatmul.mubr.f32.gmra.mrb[0].mxu0 %v127
  %v316 = vpop.f32.mrb[0].mxu0
  %v317 = vadd.f32 0.0, %v316
  %v318 = vpop.f32.mrb[0].mxu0
  %319 = vmatprep.mubr.f32.mxu0 0.0
  %320 = vmatmul.mubr.f32.gmra.mrb[0].mxu0 %v130
  %v321 = vpop.f32.mrb[0].mxu0
  %v322 = vadd.f32 0.0, %v321
  %v323 = vpop.f32.mrb[0].mxu0
  %324 = vmatprep.mubr.f32.mxu0 0.0
  %325 = vmatmul.mubr.f32.gmra.mrb[0].mxu0 %v133
  %v326 = vpop.f32.mrb[0].mxu0
  %v327 = vadd.f32 0.0, %v326
  %v328 = vpop.f32.mrb[0].mxu0
  %329 = vmatprep.mubr.f32.mxu0 0.0
  %330 = vmatmul.mubr.f32.gmra.mrb[0].mxu0 %v136
  %v331 = vpop.f32.mrb[0].mxu0
  %v332 = vadd.f32 0.0, %v331
  %v333 = vpop.f32.mrb[0].mxu0
  %334 = vmatprep.mubr.f32.mxu0 0.0
  %335 = vmatmul.mubr.f32.gmra.mrb[0].mxu0 %v139
  %v336 = vpop.f32.mrb[0].mxu0
  %v337 = vadd.f32 0.0, %v336
  %v338 = vpop.f32.mrb[0].mxu0
  %339 = vmatprep.mubr.f32.mxu0 0.0
  %340 = vmatmul.mubr.f32.gmra.mrb[0].mxu0 %v142
  %v341 = vpop.f32.mrb[0].mxu0
  %v342 = vadd.f32 0.0, %v341
  %v343 = vpop.f32.mrb[0].mxu0
  %344 = vmatprep.mubr.f32.mxu0 0.0
  %345 = vmatmul.mubr.f32.gmra.mrb[0].mxu0 %v145
  %v346 = vpop.f32.mrb[0].mxu0
  %v347 = vadd.f32 0.0, %v346
  %v348 = vpop.f32.mrb[0].mxu0
  %349 = vmatprep.mubr.f32.mxu0 0.0
  %350 = vmatmul.mubr.f32.gmra.mrb[0].mxu0 %v148
  %v351 = vpop.f32.mrb[0].mxu0
  %v352 = vadd.f32 0.0, %v351
  %v353 = vpop.f32.mrb[0].mxu0
  %354 = vmatprep.mubr.f32.mxu0 0.0
  %355 = vmatmul.mubr.f32.gmra.mrb[0].mxu0 %v151
  %v356 = vpop.f32.mrb[0].mxu0
  %v357 = vadd.f32 0.0, %v356
  %v358 = vpop.f32.mrb[0].mxu0
  %359 = vmatprep.mubr.f32.mxu0 0.0
  %360 = vmatmul.mubr.f32.gmra.mrb[0].mxu0 %v154
  %v361 = vpop.f32.mrb[0].mxu0
  %v362 = vadd.f32 0.0, %v361
  %v363 = vpop.f32.mrb[0].mxu0
  %364 = vmatprep.mubr.f32.mxu0 0.0
  %365 = vmatmul.mubr.f32.gmra.mrb[0].mxu0 %v157
  %v366 = vpop.f32.mrb[0].mxu0
  %v367 = vadd.f32 0.0, %v366
  %v368 = vpop.f32.mrb[0].mxu0
  %369 = vmatprep.mubr.f32.mxu0 0.0
  %370 = vmatmul.mubr.f32.gmra.mrb[0].mxu0 %v160
  %v371 = vpop.f32.mrb[0].mxu0
  %v372 = vadd.f32 0.0, %v371
  %v373 = vpop.f32.mrb[0].mxu0
  %374 = vmatprep.mubr.f32.mxu0 0.0
  %375 = vmatmul.mubr.f32.gmra.mrb[0].mxu0 %v163
  %v376 = vpop.f32.mrb[0].mxu0
  %v377 = vadd.f32 0.0, %v376
  %v378 = vpop.f32.mrb[0].mxu0
  %379 = vmatprep.mubr.f32.mxu0 0.0
  %380 = vmatmul.mubr.f32.gmra.mrb[0].mxu0 %v166
  %v381 = vpop.f32.mrb[0].mxu0
  %v382 = vadd.f32 0.0, %v381
  %v383 = vpop.f32.mrb[0].mxu0
  %384 = vmatprep.mubr.f32.mxu0 0.0
  %385 = vmatmul.mubr.f32.gmra.mrb[0].mxu0 %v169
  %v386 = vpop.f32.mrb[0].mxu0
  %v387 = vadd.f32 0.0, %v386
  %v388 = vpop.f32.mrb[0].mxu0
  %389 = vmatprep.mubr.f32.mxu0 0.0
  %390 = vmatmul.mubr.f32.gmra.mrb[0].mxu0 %v172
  %v391 = vpop.f32.mrb[0].mxu0
  %v392 = vadd.f32 0.0, %v391
  %v393 = vpop.f32.mrb[0].mxu0
  %394 = vmatprep.mubr.f32.mxu0 0.0
  %395 = vmatmul.mubr.f32.gmra.mrb[0].mxu0 %v175
  %v396 = vpop.f32.mrb[0].mxu0
  %v397 = vadd.f32 0.0, %v396
  %v398 = vpop.f32.mrb[0].mxu0
  %399 = vmatprep.mubr.f32.mxu0 0.0
  %400 = vmatmul.mubr.f32.gmra.mrb[0].mxu0 %v178
  %v401 = vpop.f32.mrb[0].mxu0
  %v402 = vadd.f32 0.0, %v401
  %v403 = vpop.f32.mrb[0].mxu0
  %404 = vdwg.mxu0
  %421 = vrot.lane.b32.xlu0 %v327, 96
  %v422 = vpop.permute.xlu0 %421
  %423 = vrot.lane.b32.xlu0 %v332, 96
  %v424 = vpop.permute.xlu0 %423
  %425 = vrot.lane.b32.xlu0 %v337, 96
  %v426 = vpop.permute.xlu0 %425
  %427 = vrot.lane.b32.xlu0 %v342, 96
  %v428 = vpop.permute.xlu0 %427
  %429 = vrot.lane.b32.xlu0 %v347, 96
  %v430 = vpop.permute.xlu0 %429
  %431 = vrot.lane.b32.xlu0 %v352, 96
  %v432 = vpop.permute.xlu0 %431
  %433 = vrot.lane.b32.xlu0 %v357, 96
  %v434 = vpop.permute.xlu0 %433
  %435 = vrot.lane.b32.xlu0 %v362, 96
  %v436 = vpop.permute.xlu0 %435
  %437 = vrot.lane.b32.xlu0 %v367, 96
  %v438 = vpop.permute.xlu0 %437
  %439 = vrot.lane.b32.xlu0 %v372, 96
  %v440 = vpop.permute.xlu0 %439
  %441 = vrot.lane.b32.xlu0 %v377, 96
  %v442 = vpop.permute.xlu0 %441
  %443 = vrot.lane.b32.xlu0 %v382, 96
  %v444 = vpop.permute.xlu0 %443
  %445 = vrot.lane.b32.xlu0 %v387, 96
  %v446 = vpop.permute.xlu0 %445
  %447 = vrot.lane.b32.xlu0 %v392, 96
  %v448 = vpop.permute.xlu0 %447
  %449 = vrot.lane.b32.xlu0 %v397, 96
  %v450 = vpop.permute.xlu0 %449
  %451 = vrot.lane.b32.xlu0 %v402, 96
  %v452 = vpop.permute.xlu0 %451
  %v469 = vld [vmem:[%s5] sm:$0xff]
  %v470 = vld [vmem:[%s5 + $0x8] sm:$0xff]
  %v471 = vld [vmem:[%s5 + $0x10] sm:$0xff]
  %v472 = vld [vmem:[%s5 + $0x18] sm:$0xff]
  %v473 = vld [vmem:[%s5 + $0x20] sm:$0xff]
  %v474 = vld [vmem:[%s5 + $0x28] sm:$0xff]
  %v475 = vld [vmem:[%s5 + $0x30] sm:$0xff]
  %v476 = vld [vmem:[%s5 + $0x38] sm:$0xff]
  %v477 = vld [vmem:[%s5 + $0x40] sm:$0xff]
  %v478 = vld [vmem:[%s5 + $0x48] sm:$0xff]
  %v479 = vld [vmem:[%s5 + $0x50] sm:$0xff]
  %v480 = vld [vmem:[%s5 + $0x58] sm:$0xff]
  %v481 = vld [vmem:[%s5 + $0x60] sm:$0xff]
  %v482 = vld [vmem:[%s5 + $0x68] sm:$0xff]
  %v483 = vld [vmem:[%s5 + $0x70] sm:$0xff]
  %v484 = vld [vmem:[%s5 + $0x78] sm:$0xff]
  %v485 = vld [vmem:[%s5 + $0x80] sm:$0xff]
  %v486 = vld [vmem:[%s5 + $0x88] sm:$0xff]
  %v487 = vld [vmem:[%s5 + $0x90] sm:$0xff]
  %v488 = vld [vmem:[%s5 + $0x98] sm:$0xff]
  %v489 = vld [vmem:[%s5 + $0xa0] sm:$0xff]
  %v490 = vld [vmem:[%s5 + $0xa8] sm:$0xff]
  %v491 = vld [vmem:[%s5 + $0xb0] sm:$0xff]
  %v492 = vld [vmem:[%s5 + $0xb8] sm:$0xff]
  %v493 = vld [vmem:[%s5 + $0xc0] sm:$0xff]
  %v494 = vld [vmem:[%s5 + $0xc8] sm:$0xff]
  %v495 = vld [vmem:[%s5 + $0xd0] sm:$0xff]
  %v496 = vld [vmem:[%s5 + $0xd8] sm:$0xff]
  %v497 = vld [vmem:[%s5 + $0xe0] sm:$0xff]
  %v498 = vld [vmem:[%s5 + $0xe8] sm:$0xff]
  %v499 = vld [vmem:[%s5 + $0xf0] sm:$0xff]
  %v500 = vld [vmem:[%s5 + $0xf8] sm:$0xff]
  %v501 = vadd.f32 %v247, %v469
  %v502 = vadd.f32 %v252, %v470
  %v503 = vadd.f32 %v257, %v471
  %v504 = vadd.f32 %v262, %v472
  %v505 = vadd.f32 %v267, %v473
  %v506 = vadd.f32 %v272, %v474
  %v507 = vadd.f32 %v277, %v475
  %v508 = vadd.f32 %v282, %v476
  %v509 = vadd.f32 %v287, %v477
  %v510 = vadd.f32 %v292, %v478
  %v511 = vadd.f32 %v297, %v479
  %v512 = vadd.f32 %v302, %v480
  %v513 = vadd.f32 %v307, %v481
  %v514 = vadd.f32 %v312, %v482
  %v515 = vadd.f32 %v317, %v483
  %v516 = vadd.f32 %v322, %v484
  %v517 = vadd.f32 %v422, %v485
  %v518 = vadd.f32 %v424, %v486
  %v519 = vadd.f32 %v426, %v487
  %v520 = vadd.f32 %v428, %v488
  %v521 = vadd.f32 %v430, %v489
  %v522 = vadd.f32 %v432, %v490
  %v523 = vadd.f32 %v434, %v491
  %v524 = vadd.f32 %v436, %v492
  %v525 = vadd.f32 %v438, %v493
  %v526 = vadd.f32 %v440, %v494
  %v527 = vadd.f32 %v442, %v495
  %v528 = vadd.f32 %v444, %v496
  %v529 = vadd.f32 %v446, %v497
  %v530 = vadd.f32 %v448, %v498
  %v531 = vadd.f32 %v450, %v499
  %v532 = vadd.f32 %v452, %v500
  %v533 = vtanh.pop %v501
  %v534 = vtanh.pop %v502
  %v535 = vtanh.pop %v503
  %v536 = vtanh.pop %v504
  %v537 = vtanh.pop %v505
  %v538 = vtanh.pop %v506
  %v539 = vtanh.pop %v507
  %v540 = vtanh.pop %v508
  %v541 = vtanh.pop %v509
  %v542 = vtanh.pop %v510
  %v543 = vtanh.pop %v511
  %v544 = vtanh.pop %v512
  %v545 = vtanh.pop %v513
  %v546 = vtanh.pop %v514
  %v547 = vtanh.pop %v515
  %v548 = vtanh.pop %v516
  %v549 = vtanh.pop %v517
  %v550 = vtanh.pop %v518
  %v551 = vtanh.pop %v519
  %v552 = vtanh.pop %v520
  %v553 = vtanh.pop %v521
  %v554 = vtanh.pop %v522
  %v555 = vtanh.pop %v523
  %v556 = vtanh.pop %v524
  %v557 = vtanh.pop %v525
  %v558 = vtanh.pop %v526
  %v559 = vtanh.pop %v527
  %v560 = vtanh.pop %v528
  %v561 = vtanh.pop %v529
  %v562 = vtanh.pop %v530
  %v563 = vtanh.pop %v531
  %v564 = vtanh.pop %v532
  %v565 = vlaneseq
  %v566 = vshrl.u32 %v565, 7
  %v567 = vsub.s32 0, %v566
  %v568 = vrot.slane %v43, %v567
  %570 = vbcast.lane.b32.xlu0 %v568, 256
  %v571 = vpop.permute.xlu0 %570
  %v572 = vlaneseq
  %v573 = vshrl.u32 %v572, 7
  %v574 = vsub.s32 1, %v573
  %v575 = vrot.slane %v43, %v574
  %577 = vbcast.lane.b32.xlu0 %v575, 256
  %v578 = vpop.permute.xlu0 %577
  %v579 = vlaneseq
  %v580 = vshrl.u32 %v579, 7
  %v581 = vsub.s32 2, %v580
  %v582 = vrot.slane %v43, %v581
  %584 = vbcast.lane.b32.xlu0 %v582, 256
  %v585 = vpop.permute.xlu0 %584
  %v586 = vlaneseq
  %v587 = vshrl.u32 %v586, 7
  %v588 = vsub.s32 3, %v587
  %v589 = vrot.slane %v43, %v588
  %591 = vbcast.lane.b32.xlu0 %v589, 256
  %v592 = vpop.permute.xlu0 %591
  %v593 = vlaneseq
  %v594 = vshrl.u32 %v593, 7
  %v595 = vsub.s32 4, %v594
  %v596 = vrot.slane %v43, %v595
  %598 = vbcast.lane.b32.xlu0 %v596, 256
  %v599 = vpop.permute.xlu0 %598
  %v600 = vlaneseq
  %v601 = vshrl.u32 %v600, 7
  %v602 = vsub.s32 5, %v601
  %v603 = vrot.slane %v43, %v602
  %605 = vbcast.lane.b32.xlu0 %v603, 256
  %v606 = vpop.permute.xlu0 %605
  %v607 = vlaneseq
  %v608 = vshrl.u32 %v607, 7
  %v609 = vsub.s32 6, %v608
  %v610 = vrot.slane %v43, %v609
  %612 = vbcast.lane.b32.xlu0 %v610, 256
  %v613 = vpop.permute.xlu0 %612
  %v614 = vlaneseq
  %v615 = vshrl.u32 %v614, 7
  %v616 = vsub.s32 7, %v615
  %v617 = vrot.slane %v43, %v616
  %619 = vbcast.lane.b32.xlu0 %v617, 256
  %v620 = vpop.permute.xlu0 %619
  %v621 = vlaneseq
  %v622 = vshrl.u32 %v621, 7
  %v623 = vsub.s32 0, %v622
  %v624 = vrot.slane %v44, %v623
  %626 = vbcast.lane.b32.xlu0 %v624, 256
  %v627 = vpop.permute.xlu0 %626
  %v628 = vlaneseq
  %v629 = vshrl.u32 %v628, 7
  %v630 = vsub.s32 1, %v629
  %v631 = vrot.slane %v44, %v630
  %633 = vbcast.lane.b32.xlu0 %v631, 256
  %v634 = vpop.permute.xlu0 %633
  %v635 = vlaneseq
  %v636 = vshrl.u32 %v635, 7
  %v637 = vsub.s32 2, %v636
  %v638 = vrot.slane %v44, %v637
  %640 = vbcast.lane.b32.xlu0 %v638, 256
  %v641 = vpop.permute.xlu0 %640
  %v642 = vlaneseq
  %v643 = vshrl.u32 %v642, 7
  %v644 = vsub.s32 3, %v643
  %v645 = vrot.slane %v44, %v644
  %647 = vbcast.lane.b32.xlu0 %v645, 256
  %v648 = vpop.permute.xlu0 %647
  %v649 = vlaneseq
  %v650 = vshrl.u32 %v649, 7
  %v651 = vsub.s32 4, %v650
  %v652 = vrot.slane %v44, %v651
  %654 = vbcast.lane.b32.xlu0 %v652, 256
  %v655 = vpop.permute.xlu0 %654
  %v656 = vlaneseq
  %v657 = vshrl.u32 %v656, 7
  %v658 = vsub.s32 5, %v657
  %v659 = vrot.slane %v44, %v658
  %661 = vbcast.lane.b32.xlu0 %v659, 256
  %v662 = vpop.permute.xlu0 %661
  %v663 = vlaneseq
  %v664 = vshrl.u32 %v663, 7
  %v665 = vsub.s32 6, %v664
  %v666 = vrot.slane %v44, %v665
  %668 = vbcast.lane.b32.xlu0 %v666, 256
  %v669 = vpop.permute.xlu0 %668
  %v670 = vlaneseq
  %v671 = vshrl.u32 %v670, 7
  %v672 = vsub.s32 7, %v671
  %v673 = vrot.slane %v44, %v672
  %675 = vbcast.lane.b32.xlu0 %v673, 256
  %v676 = vpop.permute.xlu0 %675
  %v677 = vlaneseq
  %v678 = vshrl.u32 %v677, 7
  %v679 = vsub.s32 0, %v678
  %v680 = vrot.slane %v45, %v679
  %682 = vbcast.lane.b32.xlu0 %v680, 256
  %v683 = vpop.permute.xlu0 %682
  %v684 = vlaneseq
  %v685 = vshrl.u32 %v684, 7
  %v686 = vsub.s32 1, %v685
  %v687 = vrot.slane %v45, %v686
  %689 = vbcast.lane.b32.xlu0 %v687, 256
  %v690 = vpop.permute.xlu0 %689
  %v691 = vlaneseq
  %v692 = vshrl.u32 %v691, 7
  %v693 = vsub.s32 2, %v692
  %v694 = vrot.slane %v45, %v693
  %696 = vbcast.lane.b32.xlu0 %v694, 256
  %v697 = vpop.permute.xlu0 %696
  %v698 = vlaneseq
  %v699 = vshrl.u32 %v698, 7
  %v700 = vsub.s32 3, %v699
  %v701 = vrot.slane %v45, %v700
  %703 = vbcast.lane.b32.xlu0 %v701, 256
  %v704 = vpop.permute.xlu0 %703
  %v705 = vlaneseq
  %v706 = vshrl.u32 %v705, 7
  %v707 = vsub.s32 4, %v706
  %v708 = vrot.slane %v45, %v707
  %710 = vbcast.lane.b32.xlu0 %v708, 256
  %v711 = vpop.permute.xlu0 %710
  %v712 = vlaneseq
  %v713 = vshrl.u32 %v712, 7
  %v714 = vsub.s32 5, %v713
  %v715 = vrot.slane %v45, %v714
  %717 = vbcast.lane.b32.xlu0 %v715, 256
  %v718 = vpop.permute.xlu0 %717
  %v719 = vlaneseq
  %v720 = vshrl.u32 %v719, 7
  %v721 = vsub.s32 6, %v720
  %v722 = vrot.slane %v45, %v721
  %724 = vbcast.lane.b32.xlu0 %v722, 256
  %v725 = vpop.permute.xlu0 %724
  %v726 = vlaneseq
  %v727 = vshrl.u32 %v726, 7
  %v728 = vsub.s32 7, %v727
  %v729 = vrot.slane %v45, %v728
  %731 = vbcast.lane.b32.xlu0 %v729, 256
  %v732 = vpop.permute.xlu0 %731
  %v733 = vlaneseq
  %v734 = vshrl.u32 %v733, 7
  %v735 = vsub.s32 0, %v734
  %v736 = vrot.slane %v46, %v735
  %738 = vbcast.lane.b32.xlu0 %v736, 256
  %v739 = vpop.permute.xlu0 %738
  %v740 = vlaneseq
  %v741 = vshrl.u32 %v740, 7
  %v742 = vsub.s32 1, %v741
  %v743 = vrot.slane %v46, %v742
  %745 = vbcast.lane.b32.xlu0 %v743, 256
  %v746 = vpop.permute.xlu0 %745
  %v747 = vlaneseq
  %v748 = vshrl.u32 %v747, 7
  %v749 = vsub.s32 2, %v748
  %v750 = vrot.slane %v46, %v749
  %752 = vbcast.lane.b32.xlu0 %v750, 256
  %v753 = vpop.permute.xlu0 %752
  %v754 = vlaneseq
  %v755 = vshrl.u32 %v754, 7
  %v756 = vsub.s32 3, %v755
  %v757 = vrot.slane %v46, %v756
  %759 = vbcast.lane.b32.xlu0 %v757, 256
  %v760 = vpop.permute.xlu0 %759
  %v761 = vlaneseq
  %v762 = vshrl.u32 %v761, 7
  %v763 = vsub.s32 4, %v762
  %v764 = vrot.slane %v46, %v763
  %766 = vbcast.lane.b32.xlu0 %v764, 256
  %v767 = vpop.permute.xlu0 %766
  %v768 = vlaneseq
  %v769 = vshrl.u32 %v768, 7
  %v770 = vsub.s32 5, %v769
  %v771 = vrot.slane %v46, %v770
  %773 = vbcast.lane.b32.xlu0 %v771, 256
  %v774 = vpop.permute.xlu0 %773
  %v775 = vlaneseq
  %v776 = vshrl.u32 %v775, 7
  %v777 = vsub.s32 6, %v776
  %v778 = vrot.slane %v46, %v777
  %780 = vbcast.lane.b32.xlu0 %v778, 256
  %v781 = vpop.permute.xlu0 %780
  %v782 = vlaneseq
  %v783 = vshrl.u32 %v782, 7
  %v784 = vsub.s32 7, %v783
  %v785 = vrot.slane %v46, %v784
  %787 = vbcast.lane.b32.xlu0 %v785, 256
  %v788 = vpop.permute.xlu0 %787
  %v789 = vmul.f32 %v533, %v571
  %v790 = vmul.f32 %v534, %v578
  %v791 = vmul.f32 %v535, %v585
  %v792 = vmul.f32 %v536, %v592
  %v793 = vmul.f32 %v537, %v599
  %v794 = vmul.f32 %v538, %v606
  %v795 = vmul.f32 %v539, %v613
  %v796 = vmul.f32 %v540, %v620
  %v797 = vmul.f32 %v541, %v627
  %v798 = vmul.f32 %v542, %v634
  %v799 = vmul.f32 %v543, %v641
  %v800 = vmul.f32 %v544, %v648
  %v801 = vmul.f32 %v545, %v655
  %v802 = vmul.f32 %v546, %v662
  %v803 = vmul.f32 %v547, %v669
  %v804 = vmul.f32 %v548, %v676
  %v805 = vmul.f32 %v549, %v683
  %v806 = vmul.f32 %v550, %v690
  %v807 = vmul.f32 %v551, %v697
  %v808 = vmul.f32 %v552, %v704
  %v809 = vmul.f32 %v553, %v711
  %v810 = vmul.f32 %v554, %v718
  %v811 = vmul.f32 %v555, %v725
  %v812 = vmul.f32 %v556, %v732
  %v813 = vmul.f32 %v557, %v739
  %v814 = vmul.f32 %v558, %v746
  %v815 = vmul.f32 %v559, %v753
  %v816 = vmul.f32 %v560, %v760
  %v817 = vmul.f32 %v561, %v767
  %v818 = vmul.f32 %v562, %v774
  %v819 = vmul.f32 %v563, %v781
  %v820 = vmul.f32 %v564, %v788
  %v823 = vcombine.high %v29, %v29
  %v825 = vunpack.c.l.s4 1966171168
  %v826 = vunpack.c.0.s8 %v825
  %v827 = vlaneseq
  %v828 = vshrl.u32 %v827, 7
  %v829 = vsub.s32 %v826, %v828
  %v830 = vrot.slane %v29, %v829
  %v832 = vunpack.c.l.s4 1966171168
  %v833 = vunpack.c.0.s8 %v832
  %v834 = vlaneseq
  %v835 = vshrl.u32 %v834, 7
  %v836 = vsub.s32 %v833, %v835
  %v837 = vrot.slane %v823, %v836
  %v838 = vcombine.high %v830, %v830
  %v839 = vcombine.high %v837, %v837
  %v841 = vunpack.c.l.s4 1966171168
  %v842 = vunpack.c.0.s8 %v841
  %v843 = vlaneseq
  %v844 = vshrl.u32 %v843, 7
  %v845 = vsub.s32 %v842, %v844
  %v846 = vrot.slane %v830, %v845
  %v848 = vunpack.c.l.s4 1966171168
  %v849 = vunpack.c.0.s8 %v848
  %v850 = vlaneseq
  %v851 = vshrl.u32 %v850, 7
  %v852 = vsub.s32 %v849, %v851
  %v853 = vrot.slane %v837, %v852
  %v855 = vunpack.c.l.s4 1966171168
  %v856 = vunpack.c.0.s8 %v855
  %v857 = vlaneseq
  %v858 = vshrl.u32 %v857, 7
  %v859 = vsub.s32 %v856, %v858
  %v860 = vrot.slane %v838, %v859
  %v862 = vunpack.c.l.s4 1966171168
  %v863 = vunpack.c.0.s8 %v862
  %v864 = vlaneseq
  %v865 = vshrl.u32 %v864, 7
  %v866 = vsub.s32 %v863, %v865
  %v867 = vrot.slane %v839, %v866
  %v868 = vcombine.high %v846, %v846
  %v869 = vcombine.high %v853, %v853
  %v870 = vcombine.high %v860, %v860
  %v871 = vcombine.high %v867, %v867
  %v872 = vcombine.high %v30, %v30
  %v874 = vunpack.c.l.s4 1966171168
  %v875 = vunpack.c.0.s8 %v874
  %v876 = vlaneseq
  %v877 = vshrl.u32 %v876, 7
  %v878 = vsub.s32 %v875, %v877
  %v879 = vrot.slane %v30, %v878
  %v881 = vunpack.c.l.s4 1966171168
  %v882 = vunpack.c.0.s8 %v881
  %v883 = vlaneseq
  %v884 = vshrl.u32 %v883, 7
  %v885 = vsub.s32 %v882, %v884
  %v886 = vrot.slane %v872, %v885
  %v887 = vcombine.high %v879, %v879
  %v888 = vcombine.high %v886, %v886
  %v890 = vunpack.c.l.s4 1966171168
  %v891 = vunpack.c.0.s8 %v890
  %v892 = vlaneseq
  %v893 = vshrl.u32 %v892, 7
  %v894 = vsub.s32 %v891, %v893
  %v895 = vrot.slane %v879, %v894
  %v897 = vunpack.c.l.s4 1966171168
  %v898 = vunpack.c.0.s8 %v897
  %v899 = vlaneseq
  %v900 = vshrl.u32 %v899, 7
  %v901 = vsub.s32 %v898, %v900
  %v902 = vrot.slane %v886, %v901
  %v904 = vunpack.c.l.s4 1966171168
  %v905 = vunpack.c.0.s8 %v904
  %v906 = vlaneseq
  %v907 = vshrl.u32 %v906, 7
  %v908 = vsub.s32 %v905, %v907
  %v909 = vrot.slane %v887, %v908
  %v911 = vunpack.c.l.s4 1966171168
  %v912 = vunpack.c.0.s8 %v911
  %v913 = vlaneseq
  %v914 = vshrl.u32 %v913, 7
  %v915 = vsub.s32 %v912, %v914
  %v916 = vrot.slane %v888, %v915
  %v917 = vcombine.high %v895, %v895
  %v918 = vcombine.high %v902, %v902
  %v919 = vcombine.high %v909, %v909
  %v920 = vcombine.high %v916, %v916
  %v921 = vlaneseq
  %v922 = vshrl.u32 %v921, 7
  %v923 = vsub.s32 0, %v922
  %v924 = vrot.slane %v846, %v923
  %v925 = vlaneseq
  %v926 = vshrl.u32 %v925, 7
  %v927 = vsub.s32 0, %v926
  %v928 = vrot.slane %v860, %v927
  %v929 = vlaneseq
  %v930 = vshrl.u32 %v929, 7
  %v931 = vsub.s32 0, %v930
  %v932 = vrot.slane %v868, %v931
  %v933 = vlaneseq
  %v934 = vshrl.u32 %v933, 7
  %v935 = vsub.s32 0, %v934
  %v936 = vrot.slane %v870, %v935
  %v937 = vlaneseq
  %v938 = vshrl.u32 %v937, 7
  %v939 = vsub.s32 0, %v938
  %v940 = vrot.slane %v853, %v939
  %v941 = vlaneseq
  %v942 = vshrl.u32 %v941, 7
  %v943 = vsub.s32 0, %v942
  %v944 = vrot.slane %v867, %v943
  %v945 = vlaneseq
  %v946 = vshrl.u32 %v945, 7
  %v947 = vsub.s32 0, %v946
  %v948 = vrot.slane %v869, %v947
  %v949 = vlaneseq
  %v950 = vshrl.u32 %v949, 7
  %v951 = vsub.s32 0, %v950
  %v952 = vrot.slane %v871, %v951
  %v953 = vlaneseq
  %v954 = vshrl.u32 %v953, 7
  %v955 = vsub.s32 0, %v954
  %v956 = vrot.slane %v895, %v955
  %v957 = vlaneseq
  %v958 = vshrl.u32 %v957, 7
  %v959 = vsub.s32 0, %v958
  %v960 = vrot.slane %v909, %v959
  %v961 = vlaneseq
  %v962 = vshrl.u32 %v961, 7
  %v963 = vsub.s32 0, %v962
  %v964 = vrot.slane %v917, %v963
  %v965 = vlaneseq
  %v966 = vshrl.u32 %v965, 7
  %v967 = vsub.s32 0, %v966
  %v968 = vrot.slane %v919, %v967
  %v969 = vlaneseq
  %v970 = vshrl.u32 %v969, 7
  %v971 = vsub.s32 0, %v970
  %v972 = vrot.slane %v902, %v971
  %v973 = vlaneseq
  %v974 = vshrl.u32 %v973, 7
  %v975 = vsub.s32 0, %v974
  %v976 = vrot.slane %v916, %v975
  %v977 = vlaneseq
  %v978 = vshrl.u32 %v977, 7
  %v979 = vsub.s32 0, %v978
  %v980 = vrot.slane %v918, %v979
  %v981 = vlaneseq
  %v982 = vshrl.u32 %v981, 7
  %v983 = vsub.s32 0, %v982
  %v984 = vrot.slane %v920, %v983
  %v1001 = vmul.f32 %v924, %v789
  %v1002 = vmul.f32 %v928, %v790
  %v1003 = vmul.f32 %v932, %v791
  %v1004 = vmul.f32 %v936, %v792
  %v1005 = vmul.f32 %v940, %v793
  %v1006 = vmul.f32 %v944, %v794
  %v1007 = vmul.f32 %v948, %v795
  %v1008 = vmul.f32 %v952, %v796
  %v1009 = vmul.f32 %v956, %v797
  %v1010 = vmul.f32 %v960, %v798
  %v1011 = vmul.f32 %v964, %v799
  %v1012 = vmul.f32 %v968, %v800
  %v1013 = vmul.f32 %v972, %v801
  %v1014 = vmul.f32 %v976, %v802
  %v1015 = vmul.f32 %v980, %v803
  %v1016 = vmul.f32 %v984, %v804
  %v1017 = vmul.f32 %v924, %v805
  %v1018 = vmul.f32 %v928, %v806
  %v1019 = vmul.f32 %v932, %v807
  %v1020 = vmul.f32 %v936, %v808
  %v1021 = vmul.f32 %v940, %v809
  %v1022 = vmul.f32 %v944, %v810
  %v1023 = vmul.f32 %v948, %v811
  %v1024 = vmul.f32 %v952, %v812
  %v1025 = vmul.f32 %v956, %v813
  %v1026 = vmul.f32 %v960, %v814
  %v1027 = vmul.f32 %v964, %v815
  %v1028 = vmul.f32 %v968, %v816
  %v1029 = vmul.f32 %v972, %v817
  %v1030 = vmul.f32 %v976, %v818
  %v1031 = vmul.f32 %v980, %v819
  %v1032 = vmul.f32 %v984, %v820
  %v1033 = vld [vmem:[%s6 + $0x20] sm:$0xff]
  %v1034 = vld [vmem:[%s6 + $0x28] sm:$0xff]
  %v1035 = vld [vmem:[%s6 + $0x30] sm:$0xff]
  %v1036 = vld [vmem:[%s6 + $0x38] sm:$0xff]
  %v1038 = vsel %vm83, %v1001, 0
  %v1041 = vsel %vm83, %v1002, 0
  %v1044 = vsel %vm83, %v1003, 0
  %v1047 = vsel %vm83, %v1004, 0
  %v1050 = vsel %vm83, %v1005, 0
  %v1053 = vsel %vm83, %v1006, 0
  %v1056 = vsel %vm83, %v1007, 0
  %v1059 = vsel %vm83, %v1008, 0
  %v1062 = vsel %vm83, %v1009, 0
  %v1065 = vsel %vm83, %v1010, 0
  %v1068 = vsel %vm83, %v1011, 0
  %v1071 = vsel %vm83, %v1012, 0
  %v1074 = vsel %vm83, %v1013, 0
  %v1077 = vsel %vm83, %v1014, 0
  %v1080 = vsel %vm83, %v1015, 0
  %v1083 = vsel %vm83, %v1016, 0
  %v1086 = vsel %vm83, %v1017, 0
  %v1089 = vsel %vm83, %v1018, 0
  %v1092 = vsel %vm83, %v1019, 0
  %v1095 = vsel %vm83, %v1020, 0
  %v1098 = vsel %vm83, %v1021, 0
  %v1101 = vsel %vm83, %v1022, 0
  %v1104 = vsel %vm83, %v1023, 0
  %v1107 = vsel %vm83, %v1024, 0
  %v1110 = vsel %vm83, %v1025, 0
  %v1113 = vsel %vm83, %v1026, 0
  %v1116 = vsel %vm83, %v1027, 0
  %v1119 = vsel %vm83, %v1028, 0
  %v1122 = vsel %vm83, %v1029, 0
  %v1125 = vsel %vm83, %v1030, 0
  %v1128 = vsel %vm83, %v1031, 0
  %v1131 = vsel %vm83, %v1032, 0
  %1133 = vmatprep.subr.mxu0 0.0
  %1134 = vmatpush1.msra.mxu0 %v1033
  %1135 = vmatprep.subr.mxu0 0.0
  %1136 = vmatpush1.msra.mxu0 %v1034
  %1137 = vmatprep.subr.mxu0 0.0
  %1138 = vmatpush1.msra.mxu0 %v1035
  %1139 = vmatprep.subr.mxu0 0.0
  %1140 = vmatpush1.msra.mxu0 %v1036
  %1141 = vmatprep.subr.mxu0 0.0
  %1142 = vmatpush1.msra.mxu0 0.0
  %1143 = vmatprep.subr.mxu0 0.0
  %1144 = vmatpush1.msra.mxu0 0.0
  %1145 = vmatprep.subr.mxu0 0.0
  %1146 = vmatpush1.msra.mxu0 0.0
  %1147 = vmatprep.subr.mxu0 0.0
  %1148 = vmatpush1.msra.mxu0 0.0
  %1149 = vmatprep.subr.mxu0 0.0
  %1150 = vmatpush1.msra.mxu0 0.0
  %1151 = vmatprep.subr.mxu0 0.0
  %1152 = vmatpush1.msra.mxu0 0.0
  %1153 = vmatprep.subr.mxu0 0.0
  %1154 = vmatpush1.msra.mxu0 0.0
  %1155 = vmatprep.subr.mxu0 0.0
  %1156 = vmatpush1.msra.mxu0 0.0
  %1157 = vmatprep.subr.mxu0 0.0
  %1158 = vmatpush1.msra.mxu0 0.0
  %1159 = vmatprep.subr.mxu0 0.0
  %1160 = vmatpush1.msra.mxu0 0.0
  %1161 = vmatprep.subr.mxu0 0.0
  %1162 = vmatpush1.msra.mxu0 0.0
  %1163 = vmatprep.subr.mxu0 0.0
  %1164 = vmatpush1.msra.mxu0 0.0
  %1165 = vmatprep.subr.mxu0 0.0
  %1166 = vmatpush1.msra.mxu0 0.0
  %1167 = vmatprep.subr.mxu0 0.0
  %1168 = vmatpush1.msra.mxu0 0.0
  %1169 = vmatprep.subr.mxu0 0.0
  %1170 = vmatpush1.msra.mxu0 0.0
  %1171 = vmatprep.subr.mxu0 0.0
  %1172 = vmatpush1.msra.mxu0 0.0
  %1173 = vmatprep.subr.mxu0 0.0
  %1174 = vmatpush1.msra.mxu0 0.0
  %1175 = vmatprep.subr.mxu0 0.0
  %1176 = vmatpush1.msra.mxu0 0.0
  %1177 = vmatprep.subr.mxu0 0.0
  %1178 = vmatpush1.msra.mxu0 0.0
  %1179 = vmatprep.subr.mxu0 0.0
  %1180 = vmatpush1.msra.mxu0 0.0
  %1181 = vmatprep.subr.mxu0 0.0
  %1182 = vmatpush1.msra.mxu0 0.0
  %1183 = vmatprep.subr.mxu0 0.0
  %1184 = vmatpush1.msra.mxu0 0.0
  %1185 = vmatprep.subr.mxu0 0.0
  %1186 = vmatpush1.msra.mxu0 0.0
  %1187 = vmatprep.subr.mxu0 0.0
  %1188 = vmatpush1.msra.mxu0 0.0
  %1189 = vmatprep.subr.mxu0 0.0
  %1190 = vmatpush1.msra.mxu0 0.0
  %1191 = vmatprep.subr.mxu0 0.0
  %1192 = vmatpush1.msra.mxu0 0.0
  %1193 = vmatprep.subr.mxu0 0.0
  %1194 = vmatpush1.msra.mxu0 0.0
  %1195 = vmatprep.subr.mxu0 0.0
  %1196 = vmatpush1.msra.mxu0 0.0
  %1197 = vmatprep.mubr.f32.mxu0 0.0
  %1198 = vmatmul.mubr.f32.gmra.mrb[0].mxu0 %v1038
  %v1199 = vpop.f32.mrb[0].mxu0
  %v1200 = vadd.f32 0.0, %v1199
  %v1201 = vpop.f32.mrb[0].mxu0
  %1202 = vmatprep.mubr.f32.mxu0 0.0
  %1203 = vmatmul.mubr.f32.gmra.mrb[0].mxu0 %v1041
  %v1204 = vpop.f32.mrb[0].mxu0
  %v1205 = vadd.f32 0.0, %v1204
  %v1206 = vpop.f32.mrb[0].mxu0
  %1207 = vmatprep.mubr.f32.mxu0 0.0
  %1208 = vmatmul.mubr.f32.gmra.mrb[0].mxu0 %v1044
  %v1209 = vpop.f32.mrb[0].mxu0
  %v1210 = vadd.f32 0.0, %v1209
  %v1211 = vpop.f32.mrb[0].mxu0
  %1212 = vmatprep.mubr.f32.mxu0 0.0
  %1213 = vmatmul.mubr.f32.gmra.mrb[0].mxu0 %v1047
  %v1214 = vpop.f32.mrb[0].mxu0
  %v1215 = vadd.f32 0.0, %v1214
  %v1216 = vpop.f32.mrb[0].mxu0
  %1217 = vmatprep.mubr.f32.mxu0 0.0
  %1218 = vmatmul.mubr.f32.gmra.mrb[0].mxu0 %v1050
  %v1219 = vpop.f32.mrb[0].mxu0
  %v1220 = vadd.f32 0.0, %v1219
  %v1221 = vpop.f32.mrb[0].mxu0
  %1222 = vmatprep.mubr.f32.mxu0 0.0
  %1223 = vmatmul.mubr.f32.gmra.mrb[0].mxu0 %v1053
  %v1224 = vpop.f32.mrb[0].mxu0
  %v1225 = vadd.f32 0.0, %v1224
  %v1226 = vpop.f32.mrb[0].mxu0
  %1227 = vmatprep.mubr.f32.mxu0 0.0
  %1228 = vmatmul.mubr.f32.gmra.mrb[0].mxu0 %v1056
  %v1229 = vpop.f32.mrb[0].mxu0
  %v1230 = vadd.f32 0.0, %v1229
  %v1231 = vpop.f32.mrb[0].mxu0
  %1232 = vmatprep.mubr.f32.mxu0 0.0
  %1233 = vmatmul.mubr.f32.gmra.mrb[0].mxu0 %v1059
  %v1234 = vpop.f32.mrb[0].mxu0
  %v1235 = vadd.f32 0.0, %v1234
  %v1236 = vpop.f32.mrb[0].mxu0
  %1237 = vmatprep.mubr.f32.mxu0 0.0
  %1238 = vmatmul.mubr.f32.gmra.mrb[0].mxu0 %v1062
  %v1239 = vpop.f32.mrb[0].mxu0
  %v1240 = vadd.f32 0.0, %v1239
  %v1241 = vpop.f32.mrb[0].mxu0
  %1242 = vmatprep.mubr.f32.mxu0 0.0
  %1243 = vmatmul.mubr.f32.gmra.mrb[0].mxu0 %v1065
  %v1244 = vpop.f32.mrb[0].mxu0
  %v1245 = vadd.f32 0.0, %v1244
  %v1246 = vpop.f32.mrb[0].mxu0
  %1247 = vmatprep.mubr.f32.mxu0 0.0
  %1248 = vmatmul.mubr.f32.gmra.mrb[0].mxu0 %v1068
  %v1249 = vpop.f32.mrb[0].mxu0
  %v1250 = vadd.f32 0.0, %v1249
  %v1251 = vpop.f32.mrb[0].mxu0
  %1252 = vmatprep.mubr.f32.mxu0 0.0
  %1253 = vmatmul.mubr.f32.gmra.mrb[0].mxu0 %v1071
  %v1254 = vpop.f32.mrb[0].mxu0
  %v1255 = vadd.f32 0.0, %v1254
  %v1256 = vpop.f32.mrb[0].mxu0
  %1257 = vmatprep.mubr.f32.mxu0 0.0
  %1258 = vmatmul.mubr.f32.gmra.mrb[0].mxu0 %v1074
  %v1259 = vpop.f32.mrb[0].mxu0
  %v1260 = vadd.f32 0.0, %v1259
  %v1261 = vpop.f32.mrb[0].mxu0
  %1262 = vmatprep.mubr.f32.mxu0 0.0
  %1263 = vmatmul.mubr.f32.gmra.mrb[0].mxu0 %v1077
  %v1264 = vpop.f32.mrb[0].mxu0
  %v1265 = vadd.f32 0.0, %v1264
  %v1266 = vpop.f32.mrb[0].mxu0
  %1267 = vmatprep.mubr.f32.mxu0 0.0
  %1268 = vmatmul.mubr.f32.gmra.mrb[0].mxu0 %v1080
  %v1269 = vpop.f32.mrb[0].mxu0
  %v1270 = vadd.f32 0.0, %v1269
  %v1271 = vpop.f32.mrb[0].mxu0
  %1272 = vmatprep.mubr.f32.mxu0 0.0
  %1273 = vmatmul.mubr.f32.gmra.mrb[0].mxu0 %v1083
  %v1274 = vpop.f32.mrb[0].mxu0
  %v1275 = vadd.f32 0.0, %v1274
  %v1276 = vpop.f32.mrb[0].mxu0
  %1277 = vmatprep.mubr.f32.mxu0 0.0
  %1278 = vmatmul.mubr.f32.gmra.mrb[0].mxu0 %v1086
  %v1279 = vpop.f32.mrb[0].mxu0
  %v1280 = vadd.f32 0.0, %v1279
  %v1281 = vpop.f32.mrb[0].mxu0
  %1282 = vmatprep.mubr.f32.mxu0 0.0
  %1283 = vmatmul.mubr.f32.gmra.mrb[0].mxu0 %v1089
  %v1284 = vpop.f32.mrb[0].mxu0
  %v1285 = vadd.f32 0.0, %v1284
  %v1286 = vpop.f32.mrb[0].mxu0
  %1287 = vmatprep.mubr.f32.mxu0 0.0
  %1288 = vmatmul.mubr.f32.gmra.mrb[0].mxu0 %v1092
  %v1289 = vpop.f32.mrb[0].mxu0
  %v1290 = vadd.f32 0.0, %v1289
  %v1291 = vpop.f32.mrb[0].mxu0
  %1292 = vmatprep.mubr.f32.mxu0 0.0
  %1293 = vmatmul.mubr.f32.gmra.mrb[0].mxu0 %v1095
  %v1294 = vpop.f32.mrb[0].mxu0
  %v1295 = vadd.f32 0.0, %v1294
  %v1296 = vpop.f32.mrb[0].mxu0
  %1297 = vmatprep.mubr.f32.mxu0 0.0
  %1298 = vmatmul.mubr.f32.gmra.mrb[0].mxu0 %v1098
  %v1299 = vpop.f32.mrb[0].mxu0
  %v1300 = vadd.f32 0.0, %v1299
  %v1301 = vpop.f32.mrb[0].mxu0
  %1302 = vmatprep.mubr.f32.mxu0 0.0
  %1303 = vmatmul.mubr.f32.gmra.mrb[0].mxu0 %v1101
  %v1304 = vpop.f32.mrb[0].mxu0
  %v1305 = vadd.f32 0.0, %v1304
  %v1306 = vpop.f32.mrb[0].mxu0
  %1307 = vmatprep.mubr.f32.mxu0 0.0
  %1308 = vmatmul.mubr.f32.gmra.mrb[0].mxu0 %v1104
  %v1309 = vpop.f32.mrb[0].mxu0
  %v1310 = vadd.f32 0.0, %v1309
  %v1311 = vpop.f32.mrb[0].mxu0
  %1312 = vmatprep.mubr.f32.mxu0 0.0
  %1313 = vmatmul.mubr.f32.gmra.mrb[0].mxu0 %v1107
  %v1314 = vpop.f32.mrb[0].mxu0
  %v1315 = vadd.f32 0.0, %v1314
  %v1316 = vpop.f32.mrb[0].mxu0
  %1317 = vmatprep.mubr.f32.mxu0 0.0
  %1318 = vmatmul.mubr.f32.gmra.mrb[0].mxu0 %v1110
  %v1319 = vpop.f32.mrb[0].mxu0
  %v1320 = vadd.f32 0.0, %v1319
  %v1321 = vpop.f32.mrb[0].mxu0
  %1322 = vmatprep.mubr.f32.mxu0 0.0
  %1323 = vmatmul.mubr.f32.gmra.mrb[0].mxu0 %v1113
  %v1324 = vpop.f32.mrb[0].mxu0
  %v1325 = vadd.f32 0.0, %v1324
  %v1326 = vpop.f32.mrb[0].mxu0
  %1327 = vmatprep.mubr.f32.mxu0 0.0
  %1328 = vmatmul.mubr.f32.gmra.mrb[0].mxu0 %v1116
  %v1329 = vpop.f32.mrb[0].mxu0
  %v1330 = vadd.f32 0.0, %v1329
  %v1331 = vpop.f32.mrb[0].mxu0
  %1332 = vmatprep.mubr.f32.mxu0 0.0
  %1333 = vmatmul.mubr.f32.gmra.mrb[0].mxu0 %v1119
  %v1334 = vpop.f32.mrb[0].mxu0
  %v1335 = vadd.f32 0.0, %v1334
  %v1336 = vpop.f32.mrb[0].mxu0
  %1337 = vmatprep.mubr.f32.mxu0 0.0
  %1338 = vmatmul.mubr.f32.gmra.mrb[0].mxu0 %v1122
  %v1339 = vpop.f32.mrb[0].mxu0
  %v1340 = vadd.f32 0.0, %v1339
  %v1341 = vpop.f32.mrb[0].mxu0
  %1342 = vmatprep.mubr.f32.mxu0 0.0
  %1343 = vmatmul.mubr.f32.gmra.mrb[0].mxu0 %v1125
  %v1344 = vpop.f32.mrb[0].mxu0
  %v1345 = vadd.f32 0.0, %v1344
  %v1346 = vpop.f32.mrb[0].mxu0
  %1347 = vmatprep.mubr.f32.mxu0 0.0
  %1348 = vmatmul.mubr.f32.gmra.mrb[0].mxu0 %v1128
  %v1349 = vpop.f32.mrb[0].mxu0
  %v1350 = vadd.f32 0.0, %v1349
  %v1351 = vpop.f32.mrb[0].mxu0
  %1352 = vmatprep.mubr.f32.mxu0 0.0
  %1353 = vmatmul.mubr.f32.gmra.mrb[0].mxu0 %v1131
  %v1354 = vpop.f32.mrb[0].mxu0
  %v1355 = vadd.f32 0.0, %v1354
  %v1356 = vpop.f32.mrb[0].mxu0
  %1357 = vdwg.mxu0
  %1374 = vrot.lane.b32.xlu0 %v1280, 96
  %v1375 = vpop.permute.xlu0 %1374
  %1376 = vrot.lane.b32.xlu0 %v1285, 96
  %v1377 = vpop.permute.xlu0 %1376
  %1378 = vrot.lane.b32.xlu0 %v1290, 96
  %v1379 = vpop.permute.xlu0 %1378
  %1380 = vrot.lane.b32.xlu0 %v1295, 96
  %v1381 = vpop.permute.xlu0 %1380
  %1382 = vrot.lane.b32.xlu0 %v1300, 96
  %v1383 = vpop.permute.xlu0 %1382
  %1384 = vrot.lane.b32.xlu0 %v1305, 96
  %v1385 = vpop.permute.xlu0 %1384
  %1386 = vrot.lane.b32.xlu0 %v1310, 96
  %v1387 = vpop.permute.xlu0 %1386
  %1388 = vrot.lane.b32.xlu0 %v1315, 96
  %v1389 = vpop.permute.xlu0 %1388
  %1390 = vrot.lane.b32.xlu0 %v1320, 96
  %v1391 = vpop.permute.xlu0 %1390
  %1392 = vrot.lane.b32.xlu0 %v1325, 96
  %v1393 = vpop.permute.xlu0 %1392
  %1394 = vrot.lane.b32.xlu0 %v1330, 96
  %v1395 = vpop.permute.xlu0 %1394
  %1396 = vrot.lane.b32.xlu0 %v1335, 96
  %v1397 = vpop.permute.xlu0 %1396
  %1398 = vrot.lane.b32.xlu0 %v1340, 96
  %v1399 = vpop.permute.xlu0 %1398
  %1400 = vrot.lane.b32.xlu0 %v1345, 96
  %v1401 = vpop.permute.xlu0 %1400
  %1402 = vrot.lane.b32.xlu0 %v1350, 96
  %v1403 = vpop.permute.xlu0 %1402
  %1404 = vrot.lane.b32.xlu0 %v1355, 96
  %v1405 = vpop.permute.xlu0 %1404
  %v1422 = vld [vmem:[%s5 + $0x100] sm:$0xff]
  %v1423 = vld [vmem:[%s5 + $0x108] sm:$0xff]
  %v1424 = vld [vmem:[%s5 + $0x110] sm:$0xff]
  %v1425 = vld [vmem:[%s5 + $0x118] sm:$0xff]
  %v1430 = vcombine.high %v1422, %v1422
  %v1432 = vunpack.c.l.s4 1966171168
  %v1433 = vunpack.c.0.s8 %v1432
  %v1434 = vlaneseq
  %v1435 = vshrl.u32 %v1434, 7
  %v1436 = vsub.s32 %v1433, %v1435
  %v1437 = vrot.slane %v1422, %v1436
  %v1439 = vunpack.c.l.s4 1966171168
  %v1440 = vunpack.c.0.s8 %v1439
  %v1441 = vlaneseq
  %v1442 = vshrl.u32 %v1441, 7
  %v1443 = vsub.s32 %v1440, %v1442
  %v1444 = vrot.slane %v1430, %v1443
  %v1445 = vcombine.high %v1437, %v1437
  %v1446 = vcombine.high %v1444, %v1444
  %v1448 = vunpack.c.l.s4 1966171168
  %v1449 = vunpack.c.0.s8 %v1448
  %v1450 = vlaneseq
  %v1451 = vshrl.u32 %v1450, 7
  %v1452 = vsub.s32 %v1449, %v1451
  %v1453 = vrot.slane %v1437, %v1452
  %v1455 = vunpack.c.l.s4 1966171168
  %v1456 = vunpack.c.0.s8 %v1455
  %v1457 = vlaneseq
  %v1458 = vshrl.u32 %v1457, 7
  %v1459 = vsub.s32 %v1456, %v1458
  %v1460 = vrot.slane %v1444, %v1459
  %v1462 = vunpack.c.l.s4 1966171168
  %v1463 = vunpack.c.0.s8 %v1462
  %v1464 = vlaneseq
  %v1465 = vshrl.u32 %v1464, 7
  %v1466 = vsub.s32 %v1463, %v1465
  %v1467 = vrot.slane %v1445, %v1466
  %v1469 = vunpack.c.l.s4 1966171168
  %v1470 = vunpack.c.0.s8 %v1469
  %v1471 = vlaneseq
  %v1472 = vshrl.u32 %v1471, 7
  %v1473 = vsub.s32 %v1470, %v1472
  %v1474 = vrot.slane %v1446, %v1473
  %v1475 = vcombine.high %v1453, %v1453
  %v1476 = vcombine.high %v1460, %v1460
  %v1477 = vcombine.high %v1467, %v1467
  %v1478 = vcombine.high %v1474, %v1474
  %v1479 = vcombine.high %v1423, %v1423
  %v1481 = vunpack.c.l.s4 1966171168
  %v1482 = vunpack.c.0.s8 %v1481
  %v1483 = vlaneseq
  %v1484 = vshrl.u32 %v1483, 7
  %v1485 = vsub.s32 %v1482, %v1484
  %v1486 = vrot.slane %v1423, %v1485
  %v1488 = vunpack.c.l.s4 1966171168
  %v1489 = vunpack.c.0.s8 %v1488
  %v1490 = vlaneseq
  %v1491 = vshrl.u32 %v1490, 7
  %v1492 = vsub.s32 %v1489, %v1491
  %v1493 = vrot.slane %v1479, %v1492
  %v1494 = vcombine.high %v1486, %v1486
  %v1495 = vcombine.high %v1493, %v1493
  %v1497 = vunpack.c.l.s4 1966171168
  %v1498 = vunpack.c.0.s8 %v1497
  %v1499 = vlaneseq
  %v1500 = vshrl.u32 %v1499, 7
  %v1501 = vsub.s32 %v1498, %v1500
  %v1502 = vrot.slane %v1486, %v1501
  %v1504 = vunpack.c.l.s4 1966171168
  %v1505 = vunpack.c.0.s8 %v1504
  %v1506 = vlaneseq
  %v1507 = vshrl.u32 %v1506, 7
  %v1508 = vsub.s32 %v1505, %v1507
  %v1509 = vrot.slane %v1493, %v1508
  %v1511 = vunpack.c.l.s4 1966171168
  %v1512 = vunpack.c.0.s8 %v1511
  %v1513 = vlaneseq
  %v1514 = vshrl.u32 %v1513, 7
  %v1515 = vsub.s32 %v1512, %v1514
  %v1516 = vrot.slane %v1494, %v1515
  %v1518 = vunpack.c.l.s4 1966171168
  %v1519 = vunpack.c.0.s8 %v1518
  %v1520 = vlaneseq
  %v1521 = vshrl.u32 %v1520, 7
  %v1522 = vsub.s32 %v1519, %v1521
  %v1523 = vrot.slane %v1495, %v1522
  %v1524 = vcombine.high %v1502, %v1502
  %v1525 = vcombine.high %v1509, %v1509
  %v1526 = vcombine.high %v1516, %v1516
  %v1527 = vcombine.high %v1523, %v1523
  %v1528 = vcombine.high %v1424, %v1424
  %v1530 = vunpack.c.l.s4 1966171168
  %v1531 = vunpack.c.0.s8 %v1530
  %v1532 = vlaneseq
  %v1533 = vshrl.u32 %v1532, 7
  %v1534 = vsub.s32 %v1531, %v1533
  %v1535 = vrot.slane %v1424, %v1534
  %v1537 = vunpack.c.l.s4 1966171168
  %v1538 = vunpack.c.0.s8 %v1537
  %v1539 = vlaneseq
  %v1540 = vshrl.u32 %v1539, 7
  %v1541 = vsub.s32 %v1538, %v1540
  %v1542 = vrot.slane %v1528, %v1541
  %v1543 = vcombine.high %v1535, %v1535
  %v1544 = vcombine.high %v1542, %v1542
  %v1546 = vunpack.c.l.s4 1966171168
  %v1547 = vunpack.c.0.s8 %v1546
  %v1548 = vlaneseq
  %v1549 = vshrl.u32 %v1548, 7
  %v1550 = vsub.s32 %v1547, %v1549
  %v1551 = vrot.slane %v1535, %v1550
  %v1553 = vunpack.c.l.s4 1966171168
  %v1554 = vunpack.c.0.s8 %v1553
  %v1555 = vlaneseq
  %v1556 = vshrl.u32 %v1555, 7
  %v1557 = vsub.s32 %v1554, %v1556
  %v1558 = vrot.slane %v1542, %v1557
  %v1560 = vunpack.c.l.s4 1966171168
  %v1561 = vunpack.c.0.s8 %v1560
  %v1562 = vlaneseq
  %v1563 = vshrl.u32 %v1562, 7
  %v1564 = vsub.s32 %v1561, %v1563
  %v1565 = vrot.slane %v1543, %v1564
  %v1567 = vunpack.c.l.s4 1966171168
  %v1568 = vunpack.c.0.s8 %v1567
  %v1569 = vlaneseq
  %v1570 = vshrl.u32 %v1569, 7
  %v1571 = vsub.s32 %v1568, %v1570
  %v1572 = vrot.slane %v1544, %v1571
  %v1573 = vcombine.high %v1551, %v1551
  %v1574 = vcombine.high %v1558, %v1558
  %v1575 = vcombine.high %v1565, %v1565
  %v1576 = vcombine.high %v1572, %v1572
  %v1577 = vcombine.high %v1425, %v1425
  %v1579 = vunpack.c.l.s4 1966171168
  %v1580 = vunpack.c.0.s8 %v1579
  %v1581 = vlaneseq
  %v1582 = vshrl.u32 %v1581, 7
  %v1583 = vsub.s32 %v1580, %v1582
  %v1584 = vrot.slane %v1425, %v1583
  %v1586 = vunpack.c.l.s4 1966171168
  %v1587 = vunpack.c.0.s8 %v1586
  %v1588 = vlaneseq
  %v1589 = vshrl.u32 %v1588, 7
  %v1590 = vsub.s32 %v1587, %v1589
  %v1591 = vrot.slane %v1577, %v1590
  %v1592 = vcombine.high %v1584, %v1584
  %v1593 = vcombine.high %v1591, %v1591
  %v1595 = vunpack.c.l.s4 1966171168
  %v1596 = vunpack.c.0.s8 %v1595
  %v1597 = vlaneseq
  %v1598 = vshrl.u32 %v1597, 7
  %v1599 = vsub.s32 %v1596, %v1598
  %v1600 = vrot.slane %v1584, %v1599
  %v1602 = vunpack.c.l.s4 1966171168
  %v1603 = vunpack.c.0.s8 %v1602
  %v1604 = vlaneseq
  %v1605 = vshrl.u32 %v1604, 7
  %v1606 = vsub.s32 %v1603, %v1605
  %v1607 = vrot.slane %v1591, %v1606
  %v1609 = vunpack.c.l.s4 1966171168
  %v1610 = vunpack.c.0.s8 %v1609
  %v1611 = vlaneseq
  %v1612 = vshrl.u32 %v1611, 7
  %v1613 = vsub.s32 %v1610, %v1612
  %v1614 = vrot.slane %v1592, %v1613
  %v1616 = vunpack.c.l.s4 1966171168
  %v1617 = vunpack.c.0.s8 %v1616
  %v1618 = vlaneseq
  %v1619 = vshrl.u32 %v1618, 7
  %v1620 = vsub.s32 %v1617, %v1619
  %v1621 = vrot.slane %v1593, %v1620
  %v1622 = vcombine.high %v1600, %v1600
  %v1623 = vcombine.high %v1607, %v1607
  %v1624 = vcombine.high %v1614, %v1614
  %v1625 = vcombine.high %v1621, %v1621
  %v1626 = vld [vmem:[%s5 + $0x120] sm:$0xff]
  %v1627 = vld [vmem:[%s5 + $0x128] sm:$0xff]
  %v1628 = vld [vmem:[%s5 + $0x130] sm:$0xff]
  %v1629 = vld [vmem:[%s5 + $0x138] sm:$0xff]
  %v1634 = vcombine.high %v1626, %v1626
  %v1636 = vunpack.c.l.s4 1966171168
  %v1637 = vunpack.c.0.s8 %v1636
  %v1638 = vlaneseq
  %v1639 = vshrl.u32 %v1638, 7
  %v1640 = vsub.s32 %v1637, %v1639
  %v1641 = vrot.slane %v1626, %v1640
  %v1643 = vunpack.c.l.s4 1966171168
  %v1644 = vunpack.c.0.s8 %v1643
  %v1645 = vlaneseq
  %v1646 = vshrl.u32 %v1645, 7
  %v1647 = vsub.s32 %v1644, %v1646
  %v1648 = vrot.slane %v1634, %v1647
  %v1649 = vcombine.high %v1641, %v1641
  %v1650 = vcombine.high %v1648, %v1648
  %v1652 = vunpack.c.l.s4 1966171168
  %v1653 = vunpack.c.0.s8 %v1652
  %v1654 = vlaneseq
  %v1655 = vshrl.u32 %v1654, 7
  %v1656 = vsub.s32 %v1653, %v1655
  %v1657 = vrot.slane %v1641, %v1656
  %v1659 = vunpack.c.l.s4 1966171168
  %v1660 = vunpack.c.0.s8 %v1659
  %v1661 = vlaneseq
  %v1662 = vshrl.u32 %v1661, 7
  %v1663 = vsub.s32 %v1660, %v1662
  %v1664 = vrot.slane %v1648, %v1663
  %v1666 = vunpack.c.l.s4 1966171168
  %v1667 = vunpack.c.0.s8 %v1666
  %v1668 = vlaneseq
  %v1669 = vshrl.u32 %v1668, 7
  %v1670 = vsub.s32 %v1667, %v1669
  %v1671 = vrot.slane %v1649, %v1670
  %v1673 = vunpack.c.l.s4 1966171168
  %v1674 = vunpack.c.0.s8 %v1673
  %v1675 = vlaneseq
  %v1676 = vshrl.u32 %v1675, 7
  %v1677 = vsub.s32 %v1674, %v1676
  %v1678 = vrot.slane %v1650, %v1677
  %v1679 = vcombine.high %v1657, %v1657
  %v1680 = vcombine.high %v1664, %v1664
  %v1681 = vcombine.high %v1671, %v1671
  %v1682 = vcombine.high %v1678, %v1678
  %v1683 = vcombine.high %v1627, %v1627
  %v1685 = vunpack.c.l.s4 1966171168
  %v1686 = vunpack.c.0.s8 %v1685
  %v1687 = vlaneseq
  %v1688 = vshrl.u32 %v1687, 7
  %v1689 = vsub.s32 %v1686, %v1688
  %v1690 = vrot.slane %v1627, %v1689
  %v1692 = vunpack.c.l.s4 1966171168
  %v1693 = vunpack.c.0.s8 %v1692
  %v1694 = vlaneseq
  %v1695 = vshrl.u32 %v1694, 7
  %v1696 = vsub.s32 %v1693, %v1695
  %v1697 = vrot.slane %v1683, %v1696
  %v1698 = vcombine.high %v1690, %v1690
  %v1699 = vcombine.high %v1697, %v1697
  %v1701 = vunpack.c.l.s4 1966171168
  %v1702 = vunpack.c.0.s8 %v1701
  %v1703 = vlaneseq
  %v1704 = vshrl.u32 %v1703, 7
  %v1705 = vsub.s32 %v1702, %v1704
  %v1706 = vrot.slane %v1690, %v1705
  %v1708 = vunpack.c.l.s4 1966171168
  %v1709 = vunpack.c.0.s8 %v1708
  %v1710 = vlaneseq
  %v1711 = vshrl.u32 %v1710, 7
  %v1712 = vsub.s32 %v1709, %v1711
  %v1713 = vrot.slane %v1697, %v1712
  %v1715 = vunpack.c.l.s4 1966171168
  %v1716 = vunpack.c.0.s8 %v1715
  %v1717 = vlaneseq
  %v1718 = vshrl.u32 %v1717, 7
  %v1719 = vsub.s32 %v1716, %v1718
  %v1720 = vrot.slane %v1698, %v1719
  %v1722 = vunpack.c.l.s4 1966171168
  %v1723 = vunpack.c.0.s8 %v1722
  %v1724 = vlaneseq
  %v1725 = vshrl.u32 %v1724, 7
  %v1726 = vsub.s32 %v1723, %v1725
  %v1727 = vrot.slane %v1699, %v1726
  %v1728 = vcombine.high %v1706, %v1706
  %v1729 = vcombine.high %v1713, %v1713
  %v1730 = vcombine.high %v1720, %v1720
  %v1731 = vcombine.high %v1727, %v1727
  %v1732 = vcombine.high %v1628, %v1628
  %v1734 = vunpack.c.l.s4 1966171168
  %v1735 = vunpack.c.0.s8 %v1734
  %v1736 = vlaneseq
  %v1737 = vshrl.u32 %v1736, 7
  %v1738 = vsub.s32 %v1735, %v1737
  %v1739 = vrot.slane %v1628, %v1738
  %v1741 = vunpack.c.l.s4 1966171168
  %v1742 = vunpack.c.0.s8 %v1741
  %v1743 = vlaneseq
  %v1744 = vshrl.u32 %v1743, 7
  %v1745 = vsub.s32 %v1742, %v1744
  %v1746 = vrot.slane %v1732, %v1745
  %v1747 = vcombine.high %v1739, %v1739
  %v1748 = vcombine.high %v1746, %v1746
  %v1750 = vunpack.c.l.s4 1966171168
  %v1751 = vunpack.c.0.s8 %v1750
  %v1752 = vlaneseq
  %v1753 = vshrl.u32 %v1752, 7
  %v1754 = vsub.s32 %v1751, %v1753
  %v1755 = vrot.slane %v1739, %v1754
  %v1757 = vunpack.c.l.s4 1966171168
  %v1758 = vunpack.c.0.s8 %v1757
  %v1759 = vlaneseq
  %v1760 = vshrl.u32 %v1759, 7
  %v1761 = vsub.s32 %v1758, %v1760
  %v1762 = vrot.slane %v1746, %v1761
  %v1764 = vunpack.c.l.s4 1966171168
  %v1765 = vunpack.c.0.s8 %v1764
  %v1766 = vlaneseq
  %v1767 = vshrl.u32 %v1766, 7
  %v1768 = vsub.s32 %v1765, %v1767
  %v1769 = vrot.slane %v1747, %v1768
  %v1771 = vunpack.c.l.s4 1966171168
  %v1772 = vunpack.c.0.s8 %v1771
  %v1773 = vlaneseq
  %v1774 = vshrl.u32 %v1773, 7
  %v1775 = vsub.s32 %v1772, %v1774
  %v1776 = vrot.slane %v1748, %v1775
  %v1777 = vcombine.high %v1755, %v1755
  %v1778 = vcombine.high %v1762, %v1762
  %v1779 = vcombine.high %v1769, %v1769
  %v1780 = vcombine.high %v1776, %v1776
  %v1781 = vcombine.high %v1629, %v1629
  %v1783 = vunpack.c.l.s4 1966171168
  %v1784 = vunpack.c.0.s8 %v1783
  %v1785 = vlaneseq
  %v1786 = vshrl.u32 %v1785, 7
  %v1787 = vsub.s32 %v1784, %v1786
  %v1788 = vrot.slane %v1629, %v1787
  %v1790 = vunpack.c.l.s4 1966171168
  %v1791 = vunpack.c.0.s8 %v1790
  %v1792 = vlaneseq
  %v1793 = vshrl.u32 %v1792, 7
  %v1794 = vsub.s32 %v1791, %v1793
  %v1795 = vrot.slane %v1781, %v1794
  %v1796 = vcombine.high %v1788, %v1788
  %v1797 = vcombine.high %v1795, %v1795
  %v1799 = vunpack.c.l.s4 1966171168
  %v1800 = vunpack.c.0.s8 %v1799
  %v1801 = vlaneseq
  %v1802 = vshrl.u32 %v1801, 7
  %v1803 = vsub.s32 %v1800, %v1802
  %v1804 = vrot.slane %v1788, %v1803
  %v1806 = vunpack.c.l.s4 1966171168
  %v1807 = vunpack.c.0.s8 %v1806
  %v1808 = vlaneseq
  %v1809 = vshrl.u32 %v1808, 7
  %v1810 = vsub.s32 %v1807, %v1809
  %v1811 = vrot.slane %v1795, %v1810
  %v1813 = vunpack.c.l.s4 1966171168
  %v1814 = vunpack.c.0.s8 %v1813
  %v1815 = vlaneseq
  %v1816 = vshrl.u32 %v1815, 7
  %v1817 = vsub.s32 %v1814, %v1816
  %v1818 = vrot.slane %v1796, %v1817
  %v1820 = vunpack.c.l.s4 1966171168
  %v1821 = vunpack.c.0.s8 %v1820
  %v1822 = vlaneseq
  %v1823 = vshrl.u32 %v1822, 7
  %v1824 = vsub.s32 %v1821, %v1823
  %v1825 = vrot.slane %v1797, %v1824
  %v1826 = vcombine.high %v1804, %v1804
  %v1827 = vcombine.high %v1811, %v1811
  %v1828 = vcombine.high %v1818, %v1818
  %v1829 = vcombine.high %v1825, %v1825
  %v1830 = vlaneseq
  %v1831 = vshrl.u32 %v1830, 7
  %v1832 = vsub.s32 0, %v1831
  %v1833 = vrot.slane %v31, %v1832
  %1835 = vbcast.lane.b32.xlu0 %v1833, 256
  %v1836 = vpop.permute.xlu0 %1835
  %v1837 = vlaneseq
  %v1838 = vshrl.u32 %v1837, 7
  %v1839 = vsub.s32 1, %v1838
  %v1840 = vrot.slane %v31, %v1839
  %1842 = vbcast.lane.b32.xlu0 %v1840, 256
  %v1843 = vpop.permute.xlu0 %1842
  %v1844 = vlaneseq
  %v1845 = vshrl.u32 %v1844, 7
  %v1846 = vsub.s32 2, %v1845
  %v1847 = vrot.slane %v31, %v1846
  %1849 = vbcast.lane.b32.xlu0 %v1847, 256
  %v1850 = vpop.permute.xlu0 %1849
  %v1851 = vlaneseq
  %v1852 = vshrl.u32 %v1851, 7
  %v1853 = vsub.s32 3, %v1852
  %v1854 = vrot.slane %v31, %v1853
  %1856 = vbcast.lane.b32.xlu0 %v1854, 256
  %v1857 = vpop.permute.xlu0 %1856
  %v1858 = vlaneseq
  %v1859 = vshrl.u32 %v1858, 7
  %v1860 = vsub.s32 4, %v1859
  %v1861 = vrot.slane %v31, %v1860
  %1863 = vbcast.lane.b32.xlu0 %v1861, 256
  %v1864 = vpop.permute.xlu0 %1863
  %v1865 = vlaneseq
  %v1866 = vshrl.u32 %v1865, 7
  %v1867 = vsub.s32 5, %v1866
  %v1868 = vrot.slane %v31, %v1867
  %1870 = vbcast.lane.b32.xlu0 %v1868, 256
  %v1871 = vpop.permute.xlu0 %1870
  %v1872 = vlaneseq
  %v1873 = vshrl.u32 %v1872, 7
  %v1874 = vsub.s32 6, %v1873
  %v1875 = vrot.slane %v31, %v1874
  %1877 = vbcast.lane.b32.xlu0 %v1875, 256
  %v1878 = vpop.permute.xlu0 %1877
  %v1879 = vlaneseq
  %v1880 = vshrl.u32 %v1879, 7
  %v1881 = vsub.s32 7, %v1880
  %v1882 = vrot.slane %v31, %v1881
  %1884 = vbcast.lane.b32.xlu0 %v1882, 256
  %v1885 = vpop.permute.xlu0 %1884
  %v1886 = vlaneseq
  %v1887 = vshrl.u32 %v1886, 7
  %v1888 = vsub.s32 0, %v1887
  %v1889 = vrot.slane %v32, %v1888
  %1891 = vbcast.lane.b32.xlu0 %v1889, 256
  %v1892 = vpop.permute.xlu0 %1891
  %v1893 = vlaneseq
  %v1894 = vshrl.u32 %v1893, 7
  %v1895 = vsub.s32 1, %v1894
  %v1896 = vrot.slane %v32, %v1895
  %1898 = vbcast.lane.b32.xlu0 %v1896, 256
  %v1899 = vpop.permute.xlu0 %1898
  %v1900 = vlaneseq
  %v1901 = vshrl.u32 %v1900, 7
  %v1902 = vsub.s32 2, %v1901
  %v1903 = vrot.slane %v32, %v1902
  %1905 = vbcast.lane.b32.xlu0 %v1903, 256
  %v1906 = vpop.permute.xlu0 %1905
  %v1907 = vlaneseq
  %v1908 = vshrl.u32 %v1907, 7
  %v1909 = vsub.s32 3, %v1908
  %v1910 = vrot.slane %v32, %v1909
  %1912 = vbcast.lane.b32.xlu0 %v1910, 256
  %v1913 = vpop.permute.xlu0 %1912
  %v1914 = vlaneseq
  %v1915 = vshrl.u32 %v1914, 7
  %v1916 = vsub.s32 4, %v1915
  %v1917 = vrot.slane %v32, %v1916
  %1919 = vbcast.lane.b32.xlu0 %v1917, 256
  %v1920 = vpop.permute.xlu0 %1919
  %v1921 = vlaneseq
  %v1922 = vshrl.u32 %v1921, 7
  %v1923 = vsub.s32 5, %v1922
  %v1924 = vrot.slane %v32, %v1923
  %1926 = vbcast.lane.b32.xlu0 %v1924, 256
  %v1927 = vpop.permute.xlu0 %1926
  %v1928 = vlaneseq
  %v1929 = vshrl.u32 %v1928, 7
  %v1930 = vsub.s32 6, %v1929
  %v1931 = vrot.slane %v32, %v1930
  %1933 = vbcast.lane.b32.xlu0 %v1931, 256
  %v1934 = vpop.permute.xlu0 %1933
  %v1935 = vlaneseq
  %v1936 = vshrl.u32 %v1935, 7
  %v1937 = vsub.s32 7, %v1936
  %v1938 = vrot.slane %v32, %v1937
  %1940 = vbcast.lane.b32.xlu0 %v1938, 256
  %v1941 = vpop.permute.xlu0 %1940
  %v1942 = vlaneseq
  %v1943 = vshrl.u32 %v1942, 7
  %v1944 = vsub.s32 0, %v1943
  %v1945 = vrot.slane %v33, %v1944
  %1947 = vbcast.lane.b32.xlu0 %v1945, 256
  %v1948 = vpop.permute.xlu0 %1947
  %v1949 = vlaneseq
  %v1950 = vshrl.u32 %v1949, 7
  %v1951 = vsub.s32 1, %v1950
  %v1952 = vrot.slane %v33, %v1951
  %1954 = vbcast.lane.b32.xlu0 %v1952, 256
  %v1955 = vpop.permute.xlu0 %1954
  %v1956 = vlaneseq
  %v1957 = vshrl.u32 %v1956, 7
  %v1958 = vsub.s32 2, %v1957
  %v1959 = vrot.slane %v33, %v1958
  %1961 = vbcast.lane.b32.xlu0 %v1959, 256
  %v1962 = vpop.permute.xlu0 %1961
  %v1963 = vlaneseq
  %v1964 = vshrl.u32 %v1963, 7
  %v1965 = vsub.s32 3, %v1964
  %v1966 = vrot.slane %v33, %v1965
  %1968 = vbcast.lane.b32.xlu0 %v1966, 256
  %v1969 = vpop.permute.xlu0 %1968
  %v1970 = vlaneseq
  %v1971 = vshrl.u32 %v1970, 7
  %v1972 = vsub.s32 4, %v1971
  %v1973 = vrot.slane %v33, %v1972
  %1975 = vbcast.lane.b32.xlu0 %v1973, 256
  %v1976 = vpop.permute.xlu0 %1975
  %v1977 = vlaneseq
  %v1978 = vshrl.u32 %v1977, 7
  %v1979 = vsub.s32 5, %v1978
  %v1980 = vrot.slane %v33, %v1979
  %1982 = vbcast.lane.b32.xlu0 %v1980, 256
  %v1983 = vpop.permute.xlu0 %1982
  %v1984 = vlaneseq
  %v1985 = vshrl.u32 %v1984, 7
  %v1986 = vsub.s32 6, %v1985
  %v1987 = vrot.slane %v33, %v1986
  %1989 = vbcast.lane.b32.xlu0 %v1987, 256
  %v1990 = vpop.permute.xlu0 %1989
  %v1991 = vlaneseq
  %v1992 = vshrl.u32 %v1991, 7
  %v1993 = vsub.s32 7, %v1992
  %v1994 = vrot.slane %v33, %v1993
  %1996 = vbcast.lane.b32.xlu0 %v1994, 256
  %v1997 = vpop.permute.xlu0 %1996
  %v1998 = vlaneseq
  %v1999 = vshrl.u32 %v1998, 7
  %v2000 = vsub.s32 0, %v1999
  %v2001 = vrot.slane %v34, %v2000
  %2003 = vbcast.lane.b32.xlu0 %v2001, 256
  %v2004 = vpop.permute.xlu0 %2003
  %v2005 = vlaneseq
  %v2006 = vshrl.u32 %v2005, 7
  %v2007 = vsub.s32 1, %v2006
  %v2008 = vrot.slane %v34, %v2007
  %2010 = vbcast.lane.b32.xlu0 %v2008, 256
  %v2011 = vpop.permute.xlu0 %2010
  %v2012 = vlaneseq
  %v2013 = vshrl.u32 %v2012, 7
  %v2014 = vsub.s32 2, %v2013
  %v2015 = vrot.slane %v34, %v2014
  %2017 = vbcast.lane.b32.xlu0 %v2015, 256
  %v2018 = vpop.permute.xlu0 %2017
  %v2019 = vlaneseq
  %v2020 = vshrl.u32 %v2019, 7
  %v2021 = vsub.s32 3, %v2020
  %v2022 = vrot.slane %v34, %v2021
  %2024 = vbcast.lane.b32.xlu0 %v2022, 256
  %v2025 = vpop.permute.xlu0 %2024
  %v2026 = vlaneseq
  %v2027 = vshrl.u32 %v2026, 7
  %v2028 = vsub.s32 4, %v2027
  %v2029 = vrot.slane %v34, %v2028
  %2031 = vbcast.lane.b32.xlu0 %v2029, 256
  %v2032 = vpop.permute.xlu0 %2031
  %v2033 = vlaneseq
  %v2034 = vshrl.u32 %v2033, 7
  %v2035 = vsub.s32 5, %v2034
  %v2036 = vrot.slane %v34, %v2035
  %2038 = vbcast.lane.b32.xlu0 %v2036, 256
  %v2039 = vpop.permute.xlu0 %2038
  %v2040 = vlaneseq
  %v2041 = vshrl.u32 %v2040, 7
  %v2042 = vsub.s32 6, %v2041
  %v2043 = vrot.slane %v34, %v2042
  %2045 = vbcast.lane.b32.xlu0 %v2043, 256
  %v2046 = vpop.permute.xlu0 %2045
  %v2047 = vlaneseq
  %v2048 = vshrl.u32 %v2047, 7
  %v2049 = vsub.s32 7, %v2048
  %v2050 = vrot.slane %v34, %v2049
  %2052 = vbcast.lane.b32.xlu0 %v2050, 256
  %v2053 = vpop.permute.xlu0 %2052
  %v2054 = vlaneseq
  %v2055 = vshrl.u32 %v2054, 7
  %v2056 = vsub.s32 0, %v2055
  %v2057 = vrot.slane %v1453, %v2056
  %v2058 = vlaneseq
  %v2059 = vshrl.u32 %v2058, 7
  %v2060 = vsub.s32 0, %v2059
  %v2061 = vrot.slane %v1467, %v2060
  %v2062 = vlaneseq
  %v2063 = vshrl.u32 %v2062, 7
  %v2064 = vsub.s32 0, %v2063
  %v2065 = vrot.slane %v1475, %v2064
  %v2066 = vlaneseq
  %v2067 = vshrl.u32 %v2066, 7
  %v2068 = vsub.s32 0, %v2067
  %v2069 = vrot.slane %v1477, %v2068
  %v2070 = vlaneseq
  %v2071 = vshrl.u32 %v2070, 7
  %v2072 = vsub.s32 0, %v2071
  %v2073 = vrot.slane %v1460, %v2072
  %v2074 = vlaneseq
  %v2075 = vshrl.u32 %v2074, 7
  %v2076 = vsub.s32 0, %v2075
  %v2077 = vrot.slane %v1474, %v2076
  %v2078 = vlaneseq
  %v2079 = vshrl.u32 %v2078, 7
  %v2080 = vsub.s32 0, %v2079
  %v2081 = vrot.slane %v1476, %v2080
  %v2082 = vlaneseq
  %v2083 = vshrl.u32 %v2082, 7
  %v2084 = vsub.s32 0, %v2083
  %v2085 = vrot.slane %v1478, %v2084
  %v2086 = vlaneseq
  %v2087 = vshrl.u32 %v2086, 7
  %v2088 = vsub.s32 0, %v2087
  %v2089 = vrot.slane %v1502, %v2088
  %v2090 = vlaneseq
  %v2091 = vshrl.u32 %v2090, 7
  %v2092 = vsub.s32 0, %v2091
  %v2093 = vrot.slane %v1516, %v2092
  %v2094 = vlaneseq
  %v2095 = vshrl.u32 %v2094, 7
  %v2096 = vsub.s32 0, %v2095
  %v2097 = vrot.slane %v1524, %v2096
  %v2098 = vlaneseq
  %v2099 = vshrl.u32 %v2098, 7
  %v2100 = vsub.s32 0, %v2099
  %v2101 = vrot.slane %v1526, %v2100
  %v2102 = vlaneseq
  %v2103 = vshrl.u32 %v2102, 7
  %v2104 = vsub.s32 0, %v2103
  %v2105 = vrot.slane %v1509, %v2104
  %v2106 = vlaneseq
  %v2107 = vshrl.u32 %v2106, 7
  %v2108 = vsub.s32 0, %v2107
  %v2109 = vrot.slane %v1523, %v2108
  %v2110 = vlaneseq
  %v2111 = vshrl.u32 %v2110, 7
  %v2112 = vsub.s32 0, %v2111
  %v2113 = vrot.slane %v1525, %v2112
  %v2114 = vlaneseq
  %v2115 = vshrl.u32 %v2114, 7
  %v2116 = vsub.s32 0, %v2115
  %v2117 = vrot.slane %v1527, %v2116
  %v2118 = vlaneseq
  %v2119 = vshrl.u32 %v2118, 7
  %v2120 = vsub.s32 0, %v2119
  %v2121 = vrot.slane %v1551, %v2120
  %v2122 = vlaneseq
  %v2123 = vshrl.u32 %v2122, 7
  %v2124 = vsub.s32 0, %v2123
  %v2125 = vrot.slane %v1565, %v2124
  %v2126 = vlaneseq
  %v2127 = vshrl.u32 %v2126, 7
  %v2128 = vsub.s32 0, %v2127
  %v2129 = vrot.slane %v1573, %v2128
  %v2130 = vlaneseq
  %v2131 = vshrl.u32 %v2130, 7
  %v2132 = vsub.s32 0, %v2131
  %v2133 = vrot.slane %v1575, %v2132
  %v2134 = vlaneseq
  %v2135 = vshrl.u32 %v2134, 7
  %v2136 = vsub.s32 0, %v2135
  %v2137 = vrot.slane %v1558, %v2136
  %v2138 = vlaneseq
  %v2139 = vshrl.u32 %v2138, 7
  %v2140 = vsub.s32 0, %v2139
  %v2141 = vrot.slane %v1572, %v2140
  %v2142 = vlaneseq
  %v2143 = vshrl.u32 %v2142, 7
  %v2144 = vsub.s32 0, %v2143
  %v2145 = vrot.slane %v1574, %v2144
  %v2146 = vlaneseq
  %v2147 = vshrl.u32 %v2146, 7
  %v2148 = vsub.s32 0, %v2147
  %v2149 = vrot.slane %v1576, %v2148
  %v2150 = vlaneseq
  %v2151 = vshrl.u32 %v2150, 7
  %v2152 = vsub.s32 0, %v2151
  %v2153 = vrot.slane %v1600, %v2152
  %v2154 = vlaneseq
  %v2155 = vshrl.u32 %v2154, 7
  %v2156 = vsub.s32 0, %v2155
  %v2157 = vrot.slane %v1614, %v2156
  %v2158 = vlaneseq
  %v2159 = vshrl.u32 %v2158, 7
  %v2160 = vsub.s32 0, %v2159
  %v2161 = vrot.slane %v1622, %v2160
  %v2162 = vlaneseq
  %v2163 = vshrl.u32 %v2162, 7
  %v2164 = vsub.s32 0, %v2163
  %v2165 = vrot.slane %v1624, %v2164
  %v2166 = vlaneseq
  %v2167 = vshrl.u32 %v2166, 7
  %v2168 = vsub.s32 0, %v2167
  %v2169 = vrot.slane %v1607, %v2168
  %v2170 = vlaneseq
  %v2171 = vshrl.u32 %v2170, 7
  %v2172 = vsub.s32 0, %v2171
  %v2173 = vrot.slane %v1621, %v2172
  %v2174 = vlaneseq
  %v2175 = vshrl.u32 %v2174, 7
  %v2176 = vsub.s32 0, %v2175
  %v2177 = vrot.slane %v1623, %v2176
  %v2178 = vlaneseq
  %v2179 = vshrl.u32 %v2178, 7
  %v2180 = vsub.s32 0, %v2179
  %v2181 = vrot.slane %v1625, %v2180
  %v2214 = vmul.f32 %v1836, %v2057
  %v2215 = vmul.f32 %v1843, %v2061
  %v2216 = vmul.f32 %v1850, %v2065
  %v2217 = vmul.f32 %v1857, %v2069
  %v2218 = vmul.f32 %v1864, %v2073
  %v2219 = vmul.f32 %v1871, %v2077
  %v2220 = vmul.f32 %v1878, %v2081
  %v2221 = vmul.f32 %v1885, %v2085
  %v2222 = vmul.f32 %v1892, %v2089
  %v2223 = vmul.f32 %v1899, %v2093
  %v2224 = vmul.f32 %v1906, %v2097
  %v2225 = vmul.f32 %v1913, %v2101
  %v2226 = vmul.f32 %v1920, %v2105
  %v2227 = vmul.f32 %v1927, %v2109
  %v2228 = vmul.f32 %v1934, %v2113
  %v2229 = vmul.f32 %v1941, %v2117
  %v2230 = vmul.f32 %v1948, %v2121
  %v2231 = vmul.f32 %v1955, %v2125
  %v2232 = vmul.f32 %v1962, %v2129
  %v2233 = vmul.f32 %v1969, %v2133
  %v2234 = vmul.f32 %v1976, %v2137
  %v2235 = vmul.f32 %v1983, %v2141
  %v2236 = vmul.f32 %v1990, %v2145
  %v2237 = vmul.f32 %v1997, %v2149
  %v2238 = vmul.f32 %v2004, %v2153
  %v2239 = vmul.f32 %v2011, %v2157
  %v2240 = vmul.f32 %v2018, %v2161
  %v2241 = vmul.f32 %v2025, %v2165
  %v2242 = vmul.f32 %v2032, %v2169
  %v2243 = vmul.f32 %v2039, %v2173
  %v2244 = vmul.f32 %v2046, %v2177
  %v2245 = vmul.f32 %v2053, %v2181
  %v2246 = vadd.f32 %v1200, %v2214
  %v2247 = vadd.f32 %v1205, %v2215
  %v2248 = vadd.f32 %v1210, %v2216
  %v2249 = vadd.f32 %v1215, %v2217
  %v2250 = vadd.f32 %v1220, %v2218
  %v2251 = vadd.f32 %v1225, %v2219
  %v2252 = vadd.f32 %v1230, %v2220
  %v2253 = vadd.f32 %v1235, %v2221
  %v2254 = vadd.f32 %v1240, %v2222
  %v2255 = vadd.f32 %v1245, %v2223
  %v2256 = vadd.f32 %v1250, %v2224
  %v2257 = vadd.f32 %v1255, %v2225
  %v2258 = vadd.f32 %v1260, %v2226
  %v2259 = vadd.f32 %v1265, %v2227
  %v2260 = vadd.f32 %v1270, %v2228
  %v2261 = vadd.f32 %v1275, %v2229
  %v2262 = vadd.f32 %v1375, %v2230
  %v2263 = vadd.f32 %v1377, %v2231
  %v2264 = vadd.f32 %v1379, %v2232
  %v2265 = vadd.f32 %v1381, %v2233
  %v2266 = vadd.f32 %v1383, %v2234
  %v2267 = vadd.f32 %v1385, %v2235
  %v2268 = vadd.f32 %v1387, %v2236
  %v2269 = vadd.f32 %v1389, %v2237
  %v2270 = vadd.f32 %v1391, %v2238
  %v2271 = vadd.f32 %v1393, %v2239
  %v2272 = vadd.f32 %v1395, %v2240
  %v2273 = vadd.f32 %v1397, %v2241
  %v2274 = vadd.f32 %v1399, %v2242
  %v2275 = vadd.f32 %v1401, %v2243
  %v2276 = vadd.f32 %v1403, %v2244
  %v2277 = vadd.f32 %v1405, %v2245
  %vm2278 = vcmp.gt.f32.partialorder %v2246, 0.0
  %vm2279 = vcmp.gt.f32.partialorder %v2247, 0.0
  %vm2280 = vcmp.gt.f32.partialorder %v2248, 0.0
  %vm2281 = vcmp.gt.f32.partialorder %v2249, 0.0
  %vm2282 = vcmp.gt.f32.partialorder %v2250, 0.0
  %vm2283 = vcmp.gt.f32.partialorder %v2251, 0.0
  %vm2284 = vcmp.gt.f32.partialorder %v2252, 0.0
  %vm2285 = vcmp.gt.f32.partialorder %v2253, 0.0
  %vm2286 = vcmp.gt.f32.partialorder %v2254, 0.0
  %vm2287 = vcmp.gt.f32.partialorder %v2255, 0.0
  %vm2288 = vcmp.gt.f32.partialorder %v2256, 0.0
  %vm2289 = vcmp.gt.f32.partialorder %v2257, 0.0
  %vm2290 = vcmp.gt.f32.partialorder %v2258, 0.0
  %vm2291 = vcmp.gt.f32.partialorder %v2259, 0.0
  %vm2292 = vcmp.gt.f32.partialorder %v2260, 0.0
  %vm2293 = vcmp.gt.f32.partialorder %v2261, 0.0
  %vm2294 = vcmp.gt.f32.partialorder %v2262, 0.0
  %vm2295 = vcmp.gt.f32.partialorder %v2263, 0.0
  %vm2296 = vcmp.gt.f32.partialorder %v2264, 0.0
  %vm2297 = vcmp.gt.f32.partialorder %v2265, 0.0
  %vm2298 = vcmp.gt.f32.partialorder %v2266, 0.0
  %vm2299 = vcmp.gt.f32.partialorder %v2267, 0.0
  %vm2300 = vcmp.gt.f32.partialorder %v2268, 0.0
  %vm2301 = vcmp.gt.f32.partialorder %v2269, 0.0
  %vm2302 = vcmp.gt.f32.partialorder %v2270, 0.0
  %vm2303 = vcmp.gt.f32.partialorder %v2271, 0.0
  %vm2304 = vcmp.gt.f32.partialorder %v2272, 0.0
  %vm2305 = vcmp.gt.f32.partialorder %v2273, 0.0
  %vm2306 = vcmp.gt.f32.partialorder %v2274, 0.0
  %vm2307 = vcmp.gt.f32.partialorder %v2275, 0.0
  %vm2308 = vcmp.gt.f32.partialorder %v2276, 0.0
  %vm2309 = vcmp.gt.f32.partialorder %v2277, 0.0
  %v2310 = vmul.f32 %v2246, 0.2
  %v2311 = vmul.f32 %v2247, 0.2
  %v2312 = vmul.f32 %v2248, 0.2
  %v2313 = vmul.f32 %v2249, 0.2
  %v2314 = vmul.f32 %v2250, 0.2
  %v2315 = vmul.f32 %v2251, 0.2
  %v2316 = vmul.f32 %v2252, 0.2
  %v2317 = vmul.f32 %v2253, 0.2
  %v2318 = vmul.f32 %v2254, 0.2
  %v2319 = vmul.f32 %v2255, 0.2
  %v2320 = vmul.f32 %v2256, 0.2
  %v2321 = vmul.f32 %v2257, 0.2
  %v2322 = vmul.f32 %v2258, 0.2
  %v2323 = vmul.f32 %v2259, 0.2
  %v2324 = vmul.f32 %v2260, 0.2
  %v2325 = vmul.f32 %v2261, 0.2
  %v2326 = vmul.f32 %v2262, 0.2
  %v2327 = vmul.f32 %v2263, 0.2
  %v2328 = vmul.f32 %v2264, 0.2
  %v2329 = vmul.f32 %v2265, 0.2
  %v2330 = vmul.f32 %v2266, 0.2
  %v2331 = vmul.f32 %v2267, 0.2
  %v2332 = vmul.f32 %v2268, 0.2
  %v2333 = vmul.f32 %v2269, 0.2
  %v2334 = vmul.f32 %v2270, 0.2
  %v2335 = vmul.f32 %v2271, 0.2
  %v2336 = vmul.f32 %v2272, 0.2
  %v2337 = vmul.f32 %v2273, 0.2
  %v2338 = vmul.f32 %v2274, 0.2
  %v2339 = vmul.f32 %v2275, 0.2
  %v2340 = vmul.f32 %v2276, 0.2
  %v2341 = vmul.f32 %v2277, 0.2
  %v2342 = vsel %vm2278, %v2246, %v2310
  %v2343 = vsel %vm2279, %v2247, %v2311
  %v2344 = vsel %vm2280, %v2248, %v2312
  %v2345 = vsel %vm2281, %v2249, %v2313
  %v2346 = vsel %vm2282, %v2250, %v2314
  %v2347 = vsel %vm2283, %v2251, %v2315
  %v2348 = vsel %vm2284, %v2252, %v2316
  %v2349 = vsel %vm2285, %v2253, %v2317
  %v2350 = vsel %vm2286, %v2254, %v2318
  %v2351 = vsel %vm2287, %v2255, %v2319
  %v2352 = vsel %vm2288, %v2256, %v2320
  %v2353 = vsel %vm2289, %v2257, %v2321
  %v2354 = vsel %vm2290, %v2258, %v2322
  %v2355 = vsel %vm2291, %v2259, %v2323
  %v2356 = vsel %vm2292, %v2260, %v2324
  %v2357 = vsel %vm2293, %v2261, %v2325
  %v2358 = vsel %vm2294, %v2262, %v2326
  %v2359 = vsel %vm2295, %v2263, %v2327
  %v2360 = vsel %vm2296, %v2264, %v2328
  %v2361 = vsel %vm2297, %v2265, %v2329
  %v2362 = vsel %vm2298, %v2266, %v2330
  %v2363 = vsel %vm2299, %v2267, %v2331
  %v2364 = vsel %vm2300, %v2268, %v2332
  %v2365 = vsel %vm2301, %v2269, %v2333
  %v2366 = vsel %vm2302, %v2270, %v2334
  %v2367 = vsel %vm2303, %v2271, %v2335
  %v2368 = vsel %vm2304, %v2272, %v2336
  %v2369 = vsel %vm2305, %v2273, %v2337
  %v2370 = vsel %vm2306, %v2274, %v2338
  %v2371 = vsel %vm2307, %v2275, %v2339
  %v2372 = vsel %vm2308, %v2276, %v2340
  %v2373 = vsel %vm2309, %v2277, %v2341
  %v2374 = vlaneseq
  %v2375 = vshrl.u32 %v2374, 7
  %v2376 = vsub.s32 0, %v2375
  %v2377 = vrot.slane %v1657, %v2376
  %v2378 = vlaneseq
  %v2379 = vshrl.u32 %v2378, 7
  %v2380 = vsub.s32 0, %v2379
  %v2381 = vrot.slane %v1671, %v2380
  %v2382 = vlaneseq
  %v2383 = vshrl.u32 %v2382, 7
  %v2384 = vsub.s32 0, %v2383
  %v2385 = vrot.slane %v1679, %v2384
  %v2386 = vlaneseq
  %v2387 = vshrl.u32 %v2386, 7
  %v2388 = vsub.s32 0, %v2387
  %v2389 = vrot.slane %v1681, %v2388
  %v2390 = vlaneseq
  %v2391 = vshrl.u32 %v2390, 7
  %v2392 = vsub.s32 0, %v2391
  %v2393 = vrot.slane %v1664, %v2392
  %v2394 = vlaneseq
  %v2395 = vshrl.u32 %v2394, 7
  %v2396 = vsub.s32 0, %v2395
  %v2397 = vrot.slane %v1678, %v2396
  %v2398 = vlaneseq
  %v2399 = vshrl.u32 %v2398, 7
  %v2400 = vsub.s32 0, %v2399
  %v2401 = vrot.slane %v1680, %v2400
  %v2402 = vlaneseq
  %v2403 = vshrl.u32 %v2402, 7
  %v2404 = vsub.s32 0, %v2403
  %v2405 = vrot.slane %v1682, %v2404
  %v2406 = vlaneseq
  %v2407 = vshrl.u32 %v2406, 7
  %v2408 = vsub.s32 0, %v2407
  %v2409 = vrot.slane %v1706, %v2408
  %v2410 = vlaneseq
  %v2411 = vshrl.u32 %v2410, 7
  %v2412 = vsub.s32 0, %v2411
  %v2413 = vrot.slane %v1720, %v2412
  %v2414 = vlaneseq
  %v2415 = vshrl.u32 %v2414, 7
  %v2416 = vsub.s32 0, %v2415
  %v2417 = vrot.slane %v1728, %v2416
  %v2418 = vlaneseq
  %v2419 = vshrl.u32 %v2418, 7
  %v2420 = vsub.s32 0, %v2419
  %v2421 = vrot.slane %v1730, %v2420
  %v2422 = vlaneseq
  %v2423 = vshrl.u32 %v2422, 7
  %v2424 = vsub.s32 0, %v2423
  %v2425 = vrot.slane %v1713, %v2424
  %v2426 = vlaneseq
  %v2427 = vshrl.u32 %v2426, 7
  %v2428 = vsub.s32 0, %v2427
  %v2429 = vrot.slane %v1727, %v2428
  %v2430 = vlaneseq
  %v2431 = vshrl.u32 %v2430, 7
  %v2432 = vsub.s32 0, %v2431
  %v2433 = vrot.slane %v1729, %v2432
  %v2434 = vlaneseq
  %v2435 = vshrl.u32 %v2434, 7
  %v2436 = vsub.s32 0, %v2435
  %v2437 = vrot.slane %v1731, %v2436
  %v2438 = vlaneseq
  %v2439 = vshrl.u32 %v2438, 7
  %v2440 = vsub.s32 0, %v2439
  %v2441 = vrot.slane %v1755, %v2440
  %v2442 = vlaneseq
  %v2443 = vshrl.u32 %v2442, 7
  %v2444 = vsub.s32 0, %v2443
  %v2445 = vrot.slane %v1769, %v2444
  %v2446 = vlaneseq
  %v2447 = vshrl.u32 %v2446, 7
  %v2448 = vsub.s32 0, %v2447
  %v2449 = vrot.slane %v1777, %v2448
  %v2450 = vlaneseq
  %v2451 = vshrl.u32 %v2450, 7
  %v2452 = vsub.s32 0, %v2451
  %v2453 = vrot.slane %v1779, %v2452
  %v2454 = vlaneseq
  %v2455 = vshrl.u32 %v2454, 7
  %v2456 = vsub.s32 0, %v2455
  %v2457 = vrot.slane %v1762, %v2456
  %v2458 = vlaneseq
  %v2459 = vshrl.u32 %v2458, 7
  %v2460 = vsub.s32 0, %v2459
  %v2461 = vrot.slane %v1776, %v2460
  %v2462 = vlaneseq
  %v2463 = vshrl.u32 %v2462, 7
  %v2464 = vsub.s32 0, %v2463
  %v2465 = vrot.slane %v1778, %v2464
  %v2466 = vlaneseq
  %v2467 = vshrl.u32 %v2466, 7
  %v2468 = vsub.s32 0, %v2467
  %v2469 = vrot.slane %v1780, %v2468
  %v2470 = vlaneseq
  %v2471 = vshrl.u32 %v2470, 7
  %v2472 = vsub.s32 0, %v2471
  %v2473 = vrot.slane %v1804, %v2472
  %v2474 = vlaneseq
  %v2475 = vshrl.u32 %v2474, 7
  %v2476 = vsub.s32 0, %v2475
  %v2477 = vrot.slane %v1818, %v2476
  %v2478 = vlaneseq
  %v2479 = vshrl.u32 %v2478, 7
  %v2480 = vsub.s32 0, %v2479
  %v2481 = vrot.slane %v1826, %v2480
  %v2482 = vlaneseq
  %v2483 = vshrl.u32 %v2482, 7
  %v2484 = vsub.s32 0, %v2483
  %v2485 = vrot.slane %v1828, %v2484
  %v2486 = vlaneseq
  %v2487 = vshrl.u32 %v2486, 7
  %v2488 = vsub.s32 0, %v2487
  %v2489 = vrot.slane %v1811, %v2488
  %v2490 = vlaneseq
  %v2491 = vshrl.u32 %v2490, 7
  %v2492 = vsub.s32 0, %v2491
  %v2493 = vrot.slane %v1825, %v2492
  %v2494 = vlaneseq
  %v2495 = vshrl.u32 %v2494, 7
  %v2496 = vsub.s32 0, %v2495
  %v2497 = vrot.slane %v1827, %v2496
  %v2498 = vlaneseq
  %v2499 = vshrl.u32 %v2498, 7
  %v2500 = vsub.s32 0, %v2499
  %v2501 = vrot.slane %v1829, %v2500
  %v2534 = vmul.f32 %v2342, %v2377
  %v2535 = vmul.f32 %v2343, %v2381
  %v2536 = vmul.f32 %v2344, %v2385
  %v2537 = vmul.f32 %v2345, %v2389
  %v2538 = vmul.f32 %v2346, %v2393
  %v2539 = vmul.f32 %v2347, %v2397
  %v2540 = vmul.f32 %v2348, %v2401
  %v2541 = vmul.f32 %v2349, %v2405
  %v2542 = vmul.f32 %v2350, %v2409
  %v2543 = vmul.f32 %v2351, %v2413
  %v2544 = vmul.f32 %v2352, %v2417
  %v2545 = vmul.f32 %v2353, %v2421
  %v2546 = vmul.f32 %v2354, %v2425
  %v2547 = vmul.f32 %v2355, %v2429
  %v2548 = vmul.f32 %v2356, %v2433
  %v2549 = vmul.f32 %v2357, %v2437
  %v2550 = vmul.f32 %v2358, %v2441
  %v2551 = vmul.f32 %v2359, %v2445
  %v2552 = vmul.f32 %v2360, %v2449
  %v2553 = vmul.f32 %v2361, %v2453
  %v2554 = vmul.f32 %v2362, %v2457
  %v2555 = vmul.f32 %v2363, %v2461
  %v2556 = vmul.f32 %v2364, %v2465
  %v2557 = vmul.f32 %v2365, %v2469
  %v2558 = vmul.f32 %v2366, %v2473
  %v2559 = vmul.f32 %v2367, %v2477
  %v2560 = vmul.f32 %v2368, %v2481
  %v2561 = vmul.f32 %v2369, %v2485
  %v2562 = vmul.f32 %v2370, %v2489
  %v2563 = vmul.f32 %v2371, %v2493
  %v2564 = vmul.f32 %v2372, %v2497
  %v2565 = vmul.f32 %v2373, %v2501
  %v2566 = vsel %vm83, %v2534, 0.0
  %2567 = vadd.xlane.f32.xlu0 %v2566
  %v2568 = vpop.xlane.xlu0 %2567
  %v2569 = vsel %vm83, %v2535, 0.0
  %2570 = vadd.xlane.f32.xlu0 %v2569
  %v2571 = vpop.xlane.xlu0 %2570
  %v2572 = vsel %vm83, %v2536, 0.0
  %2573 = vadd.xlane.f32.xlu0 %v2572
  %v2574 = vpop.xlane.xlu0 %2573
  %v2575 = vsel %vm83, %v2537, 0.0
  %2576 = vadd.xlane.f32.xlu0 %v2575
  %v2577 = vpop.xlane.xlu0 %2576
  %v2578 = vsel %vm83, %v2538, 0.0
  %2579 = vadd.xlane.f32.xlu0 %v2578
  %v2580 = vpop.xlane.xlu0 %2579
  %v2581 = vsel %vm83, %v2539, 0.0
  %2582 = vadd.xlane.f32.xlu0 %v2581
  %v2583 = vpop.xlane.xlu0 %2582
  %v2584 = vsel %vm83, %v2540, 0.0
  %2585 = vadd.xlane.f32.xlu0 %v2584
  %v2586 = vpop.xlane.xlu0 %2585
  %v2587 = vsel %vm83, %v2541, 0.0
  %2588 = vadd.xlane.f32.xlu0 %v2587
  %v2589 = vpop.xlane.xlu0 %2588
  %v2590 = vsel %vm83, %v2542, 0.0
  %2591 = vadd.xlane.f32.xlu0 %v2590
  %v2592 = vpop.xlane.xlu0 %2591
  %v2593 = vsel %vm83, %v2543, 0.0
  %2594 = vadd.xlane.f32.xlu0 %v2593
  %v2595 = vpop.xlane.xlu0 %2594
  %v2596 = vsel %vm83, %v2544, 0.0
  %2597 = vadd.xlane.f32.xlu0 %v2596
  %v2598 = vpop.xlane.xlu0 %2597
  %v2599 = vsel %vm83, %v2545, 0.0
  %2600 = vadd.xlane.f32.xlu0 %v2599
  %v2601 = vpop.xlane.xlu0 %2600
  %v2602 = vsel %vm83, %v2546, 0.0
  %2603 = vadd.xlane.f32.xlu0 %v2602
  %v2604 = vpop.xlane.xlu0 %2603
  %v2605 = vsel %vm83, %v2547, 0.0
  %2606 = vadd.xlane.f32.xlu0 %v2605
  %v2607 = vpop.xlane.xlu0 %2606
  %v2608 = vsel %vm83, %v2548, 0.0
  %2609 = vadd.xlane.f32.xlu0 %v2608
  %v2610 = vpop.xlane.xlu0 %2609
  %v2611 = vsel %vm83, %v2549, 0.0
  %2612 = vadd.xlane.f32.xlu0 %v2611
  %v2613 = vpop.xlane.xlu0 %2612
  %v2614 = vsel %vm83, %v2550, 0.0
  %2615 = vadd.xlane.f32.xlu0 %v2614
  %v2616 = vpop.xlane.xlu0 %2615
  %v2617 = vsel %vm83, %v2551, 0.0
  %2618 = vadd.xlane.f32.xlu0 %v2617
  %v2619 = vpop.xlane.xlu0 %2618
  %v2620 = vsel %vm83, %v2552, 0.0
  %2621 = vadd.xlane.f32.xlu0 %v2620
  %v2622 = vpop.xlane.xlu0 %2621
  %v2623 = vsel %vm83, %v2553, 0.0
  %2624 = vadd.xlane.f32.xlu0 %v2623
  %v2625 = vpop.xlane.xlu0 %2624
  %v2626 = vsel %vm83, %v2554, 0.0
  %2627 = vadd.xlane.f32.xlu0 %v2626
  %v2628 = vpop.xlane.xlu0 %2627
  %v2629 = vsel %vm83, %v2555, 0.0
  %2630 = vadd.xlane.f32.xlu0 %v2629
  %v2631 = vpop.xlane.xlu0 %2630
  %v2632 = vsel %vm83, %v2556, 0.0
  %2633 = vadd.xlane.f32.xlu0 %v2632
  %v2634 = vpop.xlane.xlu0 %2633
  %v2635 = vsel %vm83, %v2557, 0.0
  %2636 = vadd.xlane.f32.xlu0 %v2635
  %v2637 = vpop.xlane.xlu0 %2636
  %v2638 = vsel %vm83, %v2558, 0.0
  %2639 = vadd.xlane.f32.xlu0 %v2638
  %v2640 = vpop.xlane.xlu0 %2639
  %v2641 = vsel %vm83, %v2559, 0.0
  %2642 = vadd.xlane.f32.xlu0 %v2641
  %v2643 = vpop.xlane.xlu0 %2642
  %v2644 = vsel %vm83, %v2560, 0.0
  %2645 = vadd.xlane.f32.xlu0 %v2644
  %v2646 = vpop.xlane.xlu0 %2645
  %v2647 = vsel %vm83, %v2561, 0.0
  %2648 = vadd.xlane.f32.xlu0 %v2647
  %v2649 = vpop.xlane.xlu0 %2648
  %v2650 = vsel %vm83, %v2562, 0.0
  %2651 = vadd.xlane.f32.xlu0 %v2650
  %v2652 = vpop.xlane.xlu0 %2651
  %v2653 = vsel %vm83, %v2563, 0.0
  %2654 = vadd.xlane.f32.xlu0 %v2653
  %v2655 = vpop.xlane.xlu0 %2654
  %v2656 = vsel %vm83, %v2564, 0.0
  %2657 = vadd.xlane.f32.xlu0 %v2656
  %v2658 = vpop.xlane.xlu0 %2657
  %v2659 = vsel %vm83, %v2565, 0.0
  %2660 = vadd.xlane.f32.xlu0 %v2659
  %v2661 = vpop.xlane.xlu0 %2660
  %v2662 = vsub.f32 1.0, %v43
  %v2663 = vsub.f32 1.0, %v44
  %v2664 = vsub.f32 1.0, %v45
  %v2665 = vsub.f32 1.0, %v46
  %v2666 = vmul.f32 %v2662, -10000.0
  %v2667 = vmul.f32 %v2663, -10000.0
  %v2668 = vmul.f32 %v2664, -10000.0
  %v2669 = vmul.f32 %v2665, -10000.0
  %v2674 = vlaneseq
  %v2675 = vshrl.u32 %v2674, 7
  %v2676 = vsub.s32 0, %v2675
  %v2677 = vrot.slane %v2666, %v2676
  %2679 = vbcast.lane.b32.xlu0 %v2677, 256
  %v2680 = vpop.permute.xlu0 %2679
  %v2681 = vlaneseq
  %v2682 = vshrl.u32 %v2681, 7
  %v2683 = vsub.s32 1, %v2682
  %v2684 = vrot.slane %v2666, %v2683
  %2686 = vbcast.lane.b32.xlu0 %v2684, 256
  %v2687 = vpop.permute.xlu0 %2686
  %v2688 = vlaneseq
  %v2689 = vshrl.u32 %v2688, 7
  %v2690 = vsub.s32 2, %v2689
  %v2691 = vrot.slane %v2666, %v2690
  %2693 = vbcast.lane.b32.xlu0 %v2691, 256
  %v2694 = vpop.permute.xlu0 %2693
  %v2695 = vlaneseq
  %v2696 = vshrl.u32 %v2695, 7
  %v2697 = vsub.s32 3, %v2696
  %v2698 = vrot.slane %v2666, %v2697
  %2700 = vbcast.lane.b32.xlu0 %v2698, 256
  %v2701 = vpop.permute.xlu0 %2700
  %v2702 = vlaneseq
  %v2703 = vshrl.u32 %v2702, 7
  %v2704 = vsub.s32 4, %v2703
  %v2705 = vrot.slane %v2666, %v2704
  %2707 = vbcast.lane.b32.xlu0 %v2705, 256
  %v2708 = vpop.permute.xlu0 %2707
  %v2709 = vlaneseq
  %v2710 = vshrl.u32 %v2709, 7
  %v2711 = vsub.s32 5, %v2710
  %v2712 = vrot.slane %v2666, %v2711
  %2714 = vbcast.lane.b32.xlu0 %v2712, 256
  %v2715 = vpop.permute.xlu0 %2714
  %v2716 = vlaneseq
  %v2717 = vshrl.u32 %v2716, 7
  %v2718 = vsub.s32 6, %v2717
  %v2719 = vrot.slane %v2666, %v2718
  %2721 = vbcast.lane.b32.xlu0 %v2719, 256
  %v2722 = vpop.permute.xlu0 %2721
  %v2723 = vlaneseq
  %v2724 = vshrl.u32 %v2723, 7
  %v2725 = vsub.s32 7, %v2724
  %v2726 = vrot.slane %v2666, %v2725
  %2728 = vbcast.lane.b32.xlu0 %v2726, 256
  %v2729 = vpop.permute.xlu0 %2728
  %v2730 = vlaneseq
  %v2731 = vshrl.u32 %v2730, 7
  %v2732 = vsub.s32 0, %v2731
  %v2733 = vrot.slane %v2667, %v2732
  %2735 = vbcast.lane.b32.xlu0 %v2733, 256
  %v2736 = vpop.permute.xlu0 %2735
  %v2737 = vlaneseq
  %v2738 = vshrl.u32 %v2737, 7
  %v2739 = vsub.s32 1, %v2738
  %v2740 = vrot.slane %v2667, %v2739
  %2742 = vbcast.lane.b32.xlu0 %v2740, 256
  %v2743 = vpop.permute.xlu0 %2742
  %v2744 = vlaneseq
  %v2745 = vshrl.u32 %v2744, 7
  %v2746 = vsub.s32 2, %v2745
  %v2747 = vrot.slane %v2667, %v2746
  %2749 = vbcast.lane.b32.xlu0 %v2747, 256
  %v2750 = vpop.permute.xlu0 %2749
  %v2751 = vlaneseq
  %v2752 = vshrl.u32 %v2751, 7
  %v2753 = vsub.s32 3, %v2752
  %v2754 = vrot.slane %v2667, %v2753
  %2756 = vbcast.lane.b32.xlu0 %v2754, 256
  %v2757 = vpop.permute.xlu0 %2756
  %v2758 = vlaneseq
  %v2759 = vshrl.u32 %v2758, 7
  %v2760 = vsub.s32 4, %v2759
  %v2761 = vrot.slane %v2667, %v2760
  %2763 = vbcast.lane.b32.xlu0 %v2761, 256
  %v2764 = vpop.permute.xlu0 %2763
  %v2765 = vlaneseq
  %v2766 = vshrl.u32 %v2765, 7
  %v2767 = vsub.s32 5, %v2766
  %v2768 = vrot.slane %v2667, %v2767
  %2770 = vbcast.lane.b32.xlu0 %v2768, 256
  %v2771 = vpop.permute.xlu0 %2770
  %v2772 = vlaneseq
  %v2773 = vshrl.u32 %v2772, 7
  %v2774 = vsub.s32 6, %v2773
  %v2775 = vrot.slane %v2667, %v2774
  %2777 = vbcast.lane.b32.xlu0 %v2775, 256
  %v2778 = vpop.permute.xlu0 %2777
  %v2779 = vlaneseq
  %v2780 = vshrl.u32 %v2779, 7
  %v2781 = vsub.s32 7, %v2780
  %v2782 = vrot.slane %v2667, %v2781
  %2784 = vbcast.lane.b32.xlu0 %v2782, 256
  %v2785 = vpop.permute.xlu0 %2784
  %v2786 = vlaneseq
  %v2787 = vshrl.u32 %v2786, 7
  %v2788 = vsub.s32 0, %v2787
  %v2789 = vrot.slane %v2668, %v2788
  %2791 = vbcast.lane.b32.xlu0 %v2789, 256
  %v2792 = vpop.permute.xlu0 %2791
  %v2793 = vlaneseq
  %v2794 = vshrl.u32 %v2793, 7
  %v2795 = vsub.s32 1, %v2794
  %v2796 = vrot.slane %v2668, %v2795
  %2798 = vbcast.lane.b32.xlu0 %v2796, 256
  %v2799 = vpop.permute.xlu0 %2798
  %v2800 = vlaneseq
  %v2801 = vshrl.u32 %v2800, 7
  %v2802 = vsub.s32 2, %v2801
  %v2803 = vrot.slane %v2668, %v2802
  %2805 = vbcast.lane.b32.xlu0 %v2803, 256
  %v2806 = vpop.permute.xlu0 %2805
  %v2807 = vlaneseq
  %v2808 = vshrl.u32 %v2807, 7
  %v2809 = vsub.s32 3, %v2808
  %v2810 = vrot.slane %v2668, %v2809
  %2812 = vbcast.lane.b32.xlu0 %v2810, 256
  %v2813 = vpop.permute.xlu0 %2812
  %v2814 = vlaneseq
  %v2815 = vshrl.u32 %v2814, 7
  %v2816 = vsub.s32 4, %v2815
  %v2817 = vrot.slane %v2668, %v2816
  %2819 = vbcast.lane.b32.xlu0 %v2817, 256
  %v2820 = vpop.permute.xlu0 %2819
  %v2821 = vlaneseq
  %v2822 = vshrl.u32 %v2821, 7
  %v2823 = vsub.s32 5, %v2822
  %v2824 = vrot.slane %v2668, %v2823
  %2826 = vbcast.lane.b32.xlu0 %v2824, 256
  %v2827 = vpop.permute.xlu0 %2826
  %v2828 = vlaneseq
  %v2829 = vshrl.u32 %v2828, 7
  %v2830 = vsub.s32 6, %v2829
  %v2831 = vrot.slane %v2668, %v2830
  %2833 = vbcast.lane.b32.xlu0 %v2831, 256
  %v2834 = vpop.permute.xlu0 %2833
  %v2835 = vlaneseq
  %v2836 = vshrl.u32 %v2835, 7
  %v2837 = vsub.s32 7, %v2836
  %v2838 = vrot.slane %v2668, %v2837
  %2840 = vbcast.lane.b32.xlu0 %v2838, 256
  %v2841 = vpop.permute.xlu0 %2840
  %v2842 = vlaneseq
  %v2843 = vshrl.u32 %v2842, 7
  %v2844 = vsub.s32 0, %v2843
  %v2845 = vrot.slane %v2669, %v2844
  %2847 = vbcast.lane.b32.xlu0 %v2845, 256
  %v2848 = vpop.permute.xlu0 %2847
  %v2849 = vlaneseq
  %v2850 = vshrl.u32 %v2849, 7
  %v2851 = vsub.s32 1, %v2850
  %v2852 = vrot.slane %v2669, %v2851
  %2854 = vbcast.lane.b32.xlu0 %v2852, 256
  %v2855 = vpop.permute.xlu0 %2854
  %v2856 = vlaneseq
  %v2857 = vshrl.u32 %v2856, 7
  %v2858 = vsub.s32 2, %v2857
  %v2859 = vrot.slane %v2669, %v2858
  %2861 = vbcast.lane.b32.xlu0 %v2859, 256
  %v2862 = vpop.permute.xlu0 %2861
  %v2863 = vlaneseq
  %v2864 = vshrl.u32 %v2863, 7
  %v2865 = vsub.s32 3, %v2864
  %v2866 = vrot.slane %v2669, %v2865
  %2868 = vbcast.lane.b32.xlu0 %v2866, 256
  %v2869 = vpop.permute.xlu0 %2868
  %v2870 = vlaneseq
  %v2871 = vshrl.u32 %v2870, 7
  %v2872 = vsub.s32 4, %v2871
  %v2873 = vrot.slane %v2669, %v2872
  %2875 = vbcast.lane.b32.xlu0 %v2873, 256
  %v2876 = vpop.permute.xlu0 %2875
  %v2877 = vlaneseq
  %v2878 = vshrl.u32 %v2877, 7
  %v2879 = vsub.s32 5, %v2878
  %v2880 = vrot.slane %v2669, %v2879
  %2882 = vbcast.lane.b32.xlu0 %v2880, 256
  %v2883 = vpop.permute.xlu0 %2882
  %v2884 = vlaneseq
  %v2885 = vshrl.u32 %v2884, 7
  %v2886 = vsub.s32 6, %v2885
  %v2887 = vrot.slane %v2669, %v2886
  %2889 = vbcast.lane.b32.xlu0 %v2887, 256
  %v2890 = vpop.permute.xlu0 %2889
  %v2891 = vlaneseq
  %v2892 = vshrl.u32 %v2891, 7
  %v2893 = vsub.s32 7, %v2892
  %v2894 = vrot.slane %v2669, %v2893
  %2896 = vbcast.lane.b32.xlu0 %v2894, 256
  %v2897 = vpop.permute.xlu0 %2896
  %v2930 = vadd.f32 %v2568, %v2680
  %v2931 = vadd.f32 %v2571, %v2687
  %v2932 = vadd.f32 %v2574, %v2694
  %v2933 = vadd.f32 %v2577, %v2701
  %v2934 = vadd.f32 %v2580, %v2708
  %v2935 = vadd.f32 %v2583, %v2715
  %v2936 = vadd.f32 %v2586, %v2722
  %v2937 = vadd.f32 %v2589, %v2729
  %v2938 = vadd.f32 %v2592, %v2736
  %v2939 = vadd.f32 %v2595, %v2743
  %v2940 = vadd.f32 %v2598, %v2750
  %v2941 = vadd.f32 %v2601, %v2757
  %v2942 = vadd.f32 %v2604, %v2764
  %v2943 = vadd.f32 %v2607, %v2771
  %v2944 = vadd.f32 %v2610, %v2778
  %v2945 = vadd.f32 %v2613, %v2785
  %v2946 = vadd.f32 %v2616, %v2792
  %v2947 = vadd.f32 %v2619, %v2799
  %v2948 = vadd.f32 %v2622, %v2806
  %v2949 = vadd.f32 %v2625, %v2813
  %v2950 = vadd.f32 %v2628, %v2820
  %v2951 = vadd.f32 %v2631, %v2827
  %v2952 = vadd.f32 %v2634, %v2834
  %v2953 = vadd.f32 %v2637, %v2841
  %v2954 = vadd.f32 %v2640, %v2848
  %v2955 = vadd.f32 %v2643, %v2855
  %v2956 = vadd.f32 %v2646, %v2862
  %v2957 = vadd.f32 %v2649, %v2869
  %v2958 = vadd.f32 %v2652, %v2876
  %v2959 = vadd.f32 %v2655, %v2883
  %v2960 = vadd.f32 %v2658, %v2890
  %v2961 = vadd.f32 %v2661, %v2897
  %2994 = vset.pattern.permute.xlu0 0
  %2995 = vperm.xlu0 %2994, %v2930
  %v2996 = vpop.permute.xlu0 %2995
  %2997 = vset.pattern.permute.xlu0 0
  %2998 = vperm.xlu0 %2997, %v2931
  %v2999 = vpop.permute.xlu0 %2998
  %3000 = vset.pattern.permute.xlu0 0
  %3001 = vperm.xlu0 %3000, %v2932
  %v3002 = vpop.permute.xlu0 %3001
  %3003 = vset.pattern.permute.xlu0 0
  %3004 = vperm.xlu0 %3003, %v2933
  %v3005 = vpop.permute.xlu0 %3004
  %3006 = vset.pattern.permute.xlu0 0
  %3007 = vperm.xlu0 %3006, %v2934
  %v3008 = vpop.permute.xlu0 %3007
  %3009 = vset.pattern.permute.xlu0 0
  %3010 = vperm.xlu0 %3009, %v2935
  %v3011 = vpop.permute.xlu0 %3010
  %3012 = vset.pattern.permute.xlu0 0
  %3013 = vperm.xlu0 %3012, %v2936
  %v3014 = vpop.permute.xlu0 %3013
  %3015 = vset.pattern.permute.xlu0 0
  %3016 = vperm.xlu0 %3015, %v2937
  %v3017 = vpop.permute.xlu0 %3016
  %3018 = vset.pattern.permute.xlu0 0
  %3019 = vperm.xlu0 %3018, %v2938
  %v3020 = vpop.permute.xlu0 %3019
  %3021 = vset.pattern.permute.xlu0 0
  %3022 = vperm.xlu0 %3021, %v2939
  %v3023 = vpop.permute.xlu0 %3022
  %3024 = vset.pattern.permute.xlu0 0
  %3025 = vperm.xlu0 %3024, %v2940
  %v3026 = vpop.permute.xlu0 %3025
  %3027 = vset.pattern.permute.xlu0 0
  %3028 = vperm.xlu0 %3027, %v2941
  %v3029 = vpop.permute.xlu0 %3028
  %3030 = vset.pattern.permute.xlu0 0
  %3031 = vperm.xlu0 %3030, %v2942
  %v3032 = vpop.permute.xlu0 %3031
  %3033 = vset.pattern.permute.xlu0 0
  %3034 = vperm.xlu0 %3033, %v2943
  %v3035 = vpop.permute.xlu0 %3034
  %3036 = vset.pattern.permute.xlu0 0
  %3037 = vperm.xlu0 %3036, %v2944
  %v3038 = vpop.permute.xlu0 %3037
  %3039 = vset.pattern.permute.xlu0 0
  %3040 = vperm.xlu0 %3039, %v2945
  %v3041 = vpop.permute.xlu0 %3040
  %3042 = vset.pattern.permute.xlu0 0
  %3043 = vperm.xlu0 %3042, %v2946
  %v3044 = vpop.permute.xlu0 %3043
  %3045 = vset.pattern.permute.xlu0 0
  %3046 = vperm.xlu0 %3045, %v2947
  %v3047 = vpop.permute.xlu0 %3046
  %3048 = vset.pattern.permute.xlu0 0
  %3049 = vperm.xlu0 %3048, %v2948
  %v3050 = vpop.permute.xlu0 %3049
  %3051 = vset.pattern.permute.xlu0 0
  %3052 = vperm.xlu0 %3051, %v2949
  %v3053 = vpop.permute.xlu0 %3052
  %3054 = vset.pattern.permute.xlu0 0
  %3055 = vperm.xlu0 %3054, %v2950
  %v3056 = vpop.permute.xlu0 %3055
  %3057 = vset.pattern.permute.xlu0 0
  %3058 = vperm.xlu0 %3057, %v2951
  %v3059 = vpop.permute.xlu0 %3058
  %3060 = vset.pattern.permute.xlu0 0
  %3061 = vperm.xlu0 %3060, %v2952
  %v3062 = vpop.permute.xlu0 %3061
  %3063 = vset.pattern.permute.xlu0 0
  %3064 = vperm.xlu0 %3063, %v2953
  %v3065 = vpop.permute.xlu0 %3064
  %3066 = vset.pattern.permute.xlu0 0
  %3067 = vperm.xlu0 %3066, %v2954
  %v3068 = vpop.permute.xlu0 %3067
  %3069 = vset.pattern.permute.xlu0 0
  %3070 = vperm.xlu0 %3069, %v2955
  %v3071 = vpop.permute.xlu0 %3070
  %3072 = vset.pattern.permute.xlu0 0
  %3073 = vperm.xlu0 %3072, %v2956
  %v3074 = vpop.permute.xlu0 %3073
  %3075 = vset.pattern.permute.xlu0 0
  %3076 = vperm.xlu0 %3075, %v2957
  %v3077 = vpop.permute.xlu0 %3076
  %3078 = vset.pattern.permute.xlu0 0
  %3079 = vperm.xlu0 %3078, %v2958
  %v3080 = vpop.permute.xlu0 %3079
  %3081 = vset.pattern.permute.xlu0 0
  %3082 = vperm.xlu0 %3081, %v2959
  %v3083 = vpop.permute.xlu0 %3082
  %3084 = vset.pattern.permute.xlu0 0
  %3085 = vperm.xlu0 %3084, %v2960
  %v3086 = vpop.permute.xlu0 %3085
  %3087 = vset.pattern.permute.xlu0 0
  %3088 = vperm.xlu0 %3087, %v2961
  %v3089 = vpop.permute.xlu0 %3088
  %v3090 = vlaneseq
  %v3091 = vand.u32 %v3090, 127
  %v3092 = vlaneseq
  %v3093 = vshrl.u32 %v3092, 7
  %v3094 = vsub.s32 %v3091, %v3093
  %v3095 = vrot.slane %v2996, %v3094
  %v3096 = vlaneseq
  %v3097 = vshrl.u32 %v3096, 7
  %v3098 = vsub.s32 %v3091, %v3097
  %v3099 = vrot.slane %v2999, %v3098
  %v3100 = vlaneseq
  %v3101 = vshrl.u32 %v3100, 7
  %v3102 = vsub.s32 %v3091, %v3101
  %v3103 = vrot.slane %v3002, %v3102
  %v3104 = vlaneseq
  %v3105 = vshrl.u32 %v3104, 7
  %v3106 = vsub.s32 %v3091, %v3105
  %v3107 = vrot.slane %v3005, %v3106
  %v3108 = vlaneseq
  %v3109 = vshrl.u32 %v3108, 7
  %v3110 = vsub.s32 %v3091, %v3109
  %v3111 = vrot.slane %v3008, %v3110
  %v3112 = vlaneseq
  %v3113 = vshrl.u32 %v3112, 7
  %v3114 = vsub.s32 %v3091, %v3113
  %v3115 = vrot.slane %v3011, %v3114
  %v3116 = vlaneseq
  %v3117 = vshrl.u32 %v3116, 7
  %v3118 = vsub.s32 %v3091, %v3117
  %v3119 = vrot.slane %v3014, %v3118
  %v3120 = vlaneseq
  %v3121 = vshrl.u32 %v3120, 7
  %v3122 = vsub.s32 %v3091, %v3121
  %v3123 = vrot.slane %v3017, %v3122
  %v3124 = vlaneseq
  %v3125 = vshrl.u32 %v3124, 7
  %v3126 = vsub.s32 %v3091, %v3125
  %v3127 = vrot.slane %v3020, %v3126
  %v3128 = vlaneseq
  %v3129 = vshrl.u32 %v3128, 7
  %v3130 = vsub.s32 %v3091, %v3129
  %v3131 = vrot.slane %v3023, %v3130
  %v3132 = vlaneseq
  %v3133 = vshrl.u32 %v3132, 7
  %v3134 = vsub.s32 %v3091, %v3133
  %v3135 = vrot.slane %v3026, %v3134
  %v3136 = vlaneseq
  %v3137 = vshrl.u32 %v3136, 7
  %v3138 = vsub.s32 %v3091, %v3137
  %v3139 = vrot.slane %v3029, %v3138
  %v3140 = vlaneseq
  %v3141 = vshrl.u32 %v3140, 7
  %v3142 = vsub.s32 %v3091, %v3141
  %v3143 = vrot.slane %v3032, %v3142
  %v3144 = vlaneseq
  %v3145 = vshrl.u32 %v3144, 7
  %v3146 = vsub.s32 %v3091, %v3145
  %v3147 = vrot.slane %v3035, %v3146
  %v3148 = vlaneseq
  %v3149 = vshrl.u32 %v3148, 7
  %v3150 = vsub.s32 %v3091, %v3149
  %v3151 = vrot.slane %v3038, %v3150
  %v3152 = vlaneseq
  %v3153 = vshrl.u32 %v3152, 7
  %v3154 = vsub.s32 %v3091, %v3153
  %v3155 = vrot.slane %v3041, %v3154
  %v3156 = vlaneseq
  %v3157 = vshrl.u32 %v3156, 7
  %v3158 = vsub.s32 %v3091, %v3157
  %v3159 = vrot.slane %v3044, %v3158
  %v3160 = vlaneseq
  %v3161 = vshrl.u32 %v3160, 7
  %v3162 = vsub.s32 %v3091, %v3161
  %v3163 = vrot.slane %v3047, %v3162
  %v3164 = vlaneseq
  %v3165 = vshrl.u32 %v3164, 7
  %v3166 = vsub.s32 %v3091, %v3165
  %v3167 = vrot.slane %v3050, %v3166
  %v3168 = vlaneseq
  %v3169 = vshrl.u32 %v3168, 7
  %v3170 = vsub.s32 %v3091, %v3169
  %v3171 = vrot.slane %v3053, %v3170
  %v3172 = vlaneseq
  %v3173 = vshrl.u32 %v3172, 7
  %v3174 = vsub.s32 %v3091, %v3173
  %v3175 = vrot.slane %v3056, %v3174
  %v3176 = vlaneseq
  %v3177 = vshrl.u32 %v3176, 7
  %v3178 = vsub.s32 %v3091, %v3177
  %v3179 = vrot.slane %v3059, %v3178
  %v3180 = vlaneseq
  %v3181 = vshrl.u32 %v3180, 7
  %v3182 = vsub.s32 %v3091, %v3181
  %v3183 = vrot.slane %v3062, %v3182
  %v3184 = vlaneseq
  %v3185 = vshrl.u32 %v3184, 7
  %v3186 = vsub.s32 %v3091, %v3185
  %v3187 = vrot.slane %v3065, %v3186
  %v3188 = vlaneseq
  %v3189 = vshrl.u32 %v3188, 7
  %v3190 = vsub.s32 %v3091, %v3189
  %v3191 = vrot.slane %v3068, %v3190
  %v3192 = vlaneseq
  %v3193 = vshrl.u32 %v3192, 7
  %v3194 = vsub.s32 %v3091, %v3193
  %v3195 = vrot.slane %v3071, %v3194
  %v3196 = vlaneseq
  %v3197 = vshrl.u32 %v3196, 7
  %v3198 = vsub.s32 %v3091, %v3197
  %v3199 = vrot.slane %v3074, %v3198
  %v3200 = vlaneseq
  %v3201 = vshrl.u32 %v3200, 7
  %v3202 = vsub.s32 %v3091, %v3201
  %v3203 = vrot.slane %v3077, %v3202
  %v3204 = vlaneseq
  %v3205 = vshrl.u32 %v3204, 7
  %v3206 = vsub.s32 %v3091, %v3205
  %v3207 = vrot.slane %v3080, %v3206
  %v3208 = vlaneseq
  %v3209 = vshrl.u32 %v3208, 7
  %v3210 = vsub.s32 %v3091, %v3209
  %v3211 = vrot.slane %v3083, %v3210
  %v3212 = vlaneseq
  %v3213 = vshrl.u32 %v3212, 7
  %v3214 = vsub.s32 %v3091, %v3213
  %v3215 = vrot.slane %v3086, %v3214
  %v3216 = vlaneseq
  %v3217 = vshrl.u32 %v3216, 7
  %v3218 = vsub.s32 %v3091, %v3217
  %v3219 = vrot.slane %v3089, %v3218
  %vm3220 = vcmask 1041409
  %v3221 = vsel %vm3220, %v3099, %v3095
  %vm3222 = vcmask 1042434
  %v3223 = vsel %vm3222, %v3103, %v3221
  %vm3224 = vcmask 1043459
  %v3225 = vsel %vm3224, %v3107, %v3223
  %vm3226 = vcmask 1044484
  %v3227 = vsel %vm3226, %v3111, %v3225
  %vm3228 = vcmask 1045509
  %v3229 = vsel %vm3228, %v3115, %v3227
  %vm3230 = vcmask 1046534
  %v3231 = vsel %vm3230, %v3119, %v3229
  %vm3232 = vcmask 1047559
  %v3233 = vsel %vm3232, %v3123, %v3231
  %v3234 = vsel %vm3220, %v3131, %v3127
  %v3235 = vsel %vm3222, %v3135, %v3234
  %v3236 = vsel %vm3224, %v3139, %v3235
  %v3237 = vsel %vm3226, %v3143, %v3236
  %v3238 = vsel %vm3228, %v3147, %v3237
  %v3239 = vsel %vm3230, %v3151, %v3238
  %v3240 = vsel %vm3232, %v3155, %v3239
  %v3241 = vsel %vm3220, %v3163, %v3159
  %v3242 = vsel %vm3222, %v3167, %v3241
  %v3243 = vsel %vm3224, %v3171, %v3242
  %v3244 = vsel %vm3226, %v3175, %v3243
  %v3245 = vsel %vm3228, %v3179, %v3244
  %v3246 = vsel %vm3230, %v3183, %v3245
  %v3247 = vsel %vm3232, %v3187, %v3246
  %v3248 = vsel %vm3220, %v3195, %v3191
  %v3249 = vsel %vm3222, %v3199, %v3248
  %v3250 = vsel %vm3224, %v3203, %v3249
  %v3251 = vsel %vm3226, %v3207, %v3250
  %v3252 = vsel %vm3228, %v3211, %v3251
  %v3253 = vsel %vm3230, %v3215, %v3252
  %v3254 = vsel %vm3232, %v3219, %v3253
  %vm3259 = vcmask 64512
  %v3260 = vsel %vm3259, %v3233, -inf
  %3261 = vmax.xlane.f32.xlu0 %v3260
  %v3262 = vpop.xlane.xlu0 %3261
  %v3263 = vsel %vm3259, %v3240, -inf
  %3264 = vmax.xlane.f32.xlu0 %v3263
  %v3265 = vpop.xlane.xlu0 %3264
  %v3266 = vsel %vm3259, %v3247, -inf
  %3267 = vmax.xlane.f32.xlu0 %v3266
  %v3268 = vpop.xlane.xlu0 %3267
  %v3269 = vsel %vm3259, %v3254, -inf
  %3270 = vmax.xlane.f32.xlu0 %v3269
  %v3271 = vpop.xlane.xlu0 %3270
  %v3276 = vlaneseq
  %v3277 = vshrl.u32 %v3276, 7
  %v3278 = vsub.s32 0, %v3277
  %v3279 = vrot.slane %v3262, %v3278
  %v3280 = vlaneseq
  %v3281 = vshrl.u32 %v3280, 7
  %v3282 = vsub.s32 1, %v3281
  %v3283 = vrot.slane %v3262, %v3282
  %v3284 = vlaneseq
  %v3285 = vshrl.u32 %v3284, 7
  %v3286 = vsub.s32 2, %v3285
  %v3287 = vrot.slane %v3262, %v3286
  %v3288 = vlaneseq
  %v3289 = vshrl.u32 %v3288, 7
  %v3290 = vsub.s32 3, %v3289
  %v3291 = vrot.slane %v3262, %v3290
  %v3292 = vlaneseq
  %v3293 = vshrl.u32 %v3292, 7
  %v3294 = vsub.s32 4, %v3293
  %v3295 = vrot.slane %v3262, %v3294
  %v3296 = vlaneseq
  %v3297 = vshrl.u32 %v3296, 7
  %v3298 = vsub.s32 5, %v3297
  %v3299 = vrot.slane %v3262, %v3298
  %v3300 = vlaneseq
  %v3301 = vshrl.u32 %v3300, 7
  %v3302 = vsub.s32 6, %v3301
  %v3303 = vrot.slane %v3262, %v3302
  %v3304 = vlaneseq
  %v3305 = vshrl.u32 %v3304, 7
  %v3306 = vsub.s32 7, %v3305
  %v3307 = vrot.slane %v3262, %v3306
  %v3308 = vlaneseq
  %v3309 = vshrl.u32 %v3308, 7
  %v3310 = vsub.s32 0, %v3309
  %v3311 = vrot.slane %v3265, %v3310
  %v3312 = vlaneseq
  %v3313 = vshrl.u32 %v3312, 7
  %v3314 = vsub.s32 1, %v3313
  %v3315 = vrot.slane %v3265, %v3314
  %v3316 = vlaneseq
  %v3317 = vshrl.u32 %v3316, 7
  %v3318 = vsub.s32 2, %v3317
  %v3319 = vrot.slane %v3265, %v3318
  %v3320 = vlaneseq
  %v3321 = vshrl.u32 %v3320, 7
  %v3322 = vsub.s32 3, %v3321
  %v3323 = vrot.slane %v3265, %v3322
  %v3324 = vlaneseq
  %v3325 = vshrl.u32 %v3324, 7
  %v3326 = vsub.s32 4, %v3325
  %v3327 = vrot.slane %v3265, %v3326
  %v3328 = vlaneseq
  %v3329 = vshrl.u32 %v3328, 7
  %v3330 = vsub.s32 5, %v3329
  %v3331 = vrot.slane %v3265, %v3330
  %v3332 = vlaneseq
  %v3333 = vshrl.u32 %v3332, 7
  %v3334 = vsub.s32 6, %v3333
  %v3335 = vrot.slane %v3265, %v3334
  %v3336 = vlaneseq
  %v3337 = vshrl.u32 %v3336, 7
  %v3338 = vsub.s32 7, %v3337
  %v3339 = vrot.slane %v3265, %v3338
  %v3340 = vlaneseq
  %v3341 = vshrl.u32 %v3340, 7
  %v3342 = vsub.s32 0, %v3341
  %v3343 = vrot.slane %v3268, %v3342
  %v3344 = vlaneseq
  %v3345 = vshrl.u32 %v3344, 7
  %v3346 = vsub.s32 1, %v3345
  %v3347 = vrot.slane %v3268, %v3346
  %v3348 = vlaneseq
  %v3349 = vshrl.u32 %v3348, 7
  %v3350 = vsub.s32 2, %v3349
  %v3351 = vrot.slane %v3268, %v3350
  %v3352 = vlaneseq
  %v3353 = vshrl.u32 %v3352, 7
  %v3354 = vsub.s32 3, %v3353
  %v3355 = vrot.slane %v3268, %v3354
  %v3356 = vlaneseq
  %v3357 = vshrl.u32 %v3356, 7
  %v3358 = vsub.s32 4, %v3357
  %v3359 = vrot.slane %v3268, %v3358
  %v3360 = vlaneseq
  %v3361 = vshrl.u32 %v3360, 7
  %v3362 = vsub.s32 5, %v3361
  %v3363 = vrot.slane %v3268, %v3362
  %v3364 = vlaneseq
  %v3365 = vshrl.u32 %v3364, 7
  %v3366 = vsub.s32 6, %v3365
  %v3367 = vrot.slane %v3268, %v3366
  %v3368 = vlaneseq
  %v3369 = vshrl.u32 %v3368, 7
  %v3370 = vsub.s32 7, %v3369
  %v3371 = vrot.slane %v3268, %v3370
  %v3372 = vlaneseq
  %v3373 = vshrl.u32 %v3372, 7
  %v3374 = vsub.s32 0, %v3373
  %v3375 = vrot.slane %v3271, %v3374
  %v3376 = vlaneseq
  %v3377 = vshrl.u32 %v3376, 7
  %v3378 = vsub.s32 1, %v3377
  %v3379 = vrot.slane %v3271, %v3378
  %v3380 = vlaneseq
  %v3381 = vshrl.u32 %v3380, 7
  %v3382 = vsub.s32 2, %v3381
  %v3383 = vrot.slane %v3271, %v3382
  %v3384 = vlaneseq
  %v3385 = vshrl.u32 %v3384, 7
  %v3386 = vsub.s32 3, %v3385
  %v3387 = vrot.slane %v3271, %v3386
  %v3388 = vlaneseq
  %v3389 = vshrl.u32 %v3388, 7
  %v3390 = vsub.s32 4, %v3389
  %v3391 = vrot.slane %v3271, %v3390
  %v3392 = vlaneseq
  %v3393 = vshrl.u32 %v3392, 7
  %v3394 = vsub.s32 5, %v3393
  %v3395 = vrot.slane %v3271, %v3394
  %v3396 = vlaneseq
  %v3397 = vshrl.u32 %v3396, 7
  %v3398 = vsub.s32 6, %v3397
  %v3399 = vrot.slane %v3271, %v3398
  %v3400 = vlaneseq
  %v3401 = vshrl.u32 %v3400, 7
  %v3402 = vsub.s32 7, %v3401
  %v3403 = vrot.slane %v3271, %v3402
  %v3436 = vsub.f32 %v2930, %v3279
  %v3437 = vsub.f32 %v2931, %v3283
  %v3438 = vsub.f32 %v2932, %v3287
  %v3439 = vsub.f32 %v2933, %v3291
  %v3440 = vsub.f32 %v2934, %v3295
  %v3441 = vsub.f32 %v2935, %v3299
  %v3442 = vsub.f32 %v2936, %v3303
  %v3443 = vsub.f32 %v2937, %v3307
  %v3444 = vsub.f32 %v2938, %v3311
  %v3445 = vsub.f32 %v2939, %v3315
  %v3446 = vsub.f32 %v2940, %v3319
  %v3447 = vsub.f32 %v2941, %v3323
  %v3448 = vsub.f32 %v2942, %v3327
  %v3449 = vsub.f32 %v2943, %v3331
  %v3450 = vsub.f32 %v2944, %v3335
  %v3451 = vsub.f32 %v2945, %v3339
  %v3452 = vsub.f32 %v2946, %v3343
  %v3453 = vsub.f32 %v2947, %v3347
  %v3454 = vsub.f32 %v2948, %v3351
  %v3455 = vsub.f32 %v2949, %v3355
  %v3456 = vsub.f32 %v2950, %v3359
  %v3457 = vsub.f32 %v2951, %v3363
  %v3458 = vsub.f32 %v2952, %v3367
  %v3459 = vsub.f32 %v2953, %v3371
  %v3460 = vsub.f32 %v2954, %v3375
  %v3461 = vsub.f32 %v2955, %v3379
  %v3462 = vsub.f32 %v2956, %v3383
  %v3463 = vsub.f32 %v2957, %v3387
  %v3464 = vsub.f32 %v2958, %v3391
  %v3465 = vsub.f32 %v2959, %v3395
  %v3466 = vsub.f32 %v2960, %v3399
  %v3467 = vsub.f32 %v2961, %v3403
  %v3468 = vmul.f32 %v3436, 1.442695
  %v3469 = vpow.pop %v3468
  %v3470 = vmul.f32 %v3437, 1.442695
  %v3471 = vpow.pop %v3470
  %v3472 = vmul.f32 %v3438, 1.442695
  %v3473 = vpow.pop %v3472
  %v3474 = vmul.f32 %v3439, 1.442695
  %v3475 = vpow.pop %v3474
  %v3476 = vmul.f32 %v3440, 1.442695
  %v3477 = vpow.pop %v3476
  %v3478 = vmul.f32 %v3441, 1.442695
  %v3479 = vpow.pop %v3478
  %v3480 = vmul.f32 %v3442, 1.442695
  %v3481 = vpow.pop %v3480
  %v3482 = vmul.f32 %v3443, 1.442695
  %v3483 = vpow.pop %v3482
  %v3484 = vmul.f32 %v3444, 1.442695
  %v3485 = vpow.pop %v3484
  %v3486 = vmul.f32 %v3445, 1.442695
  %v3487 = vpow.pop %v3486
  %v3488 = vmul.f32 %v3446, 1.442695
  %v3489 = vpow.pop %v3488
  %v3490 = vmul.f32 %v3447, 1.442695
  %v3491 = vpow.pop %v3490
  %v3492 = vmul.f32 %v3448, 1.442695
  %v3493 = vpow.pop %v3492
  %v3494 = vmul.f32 %v3449, 1.442695
  %v3495 = vpow.pop %v3494
  %v3496 = vmul.f32 %v3450, 1.442695
  %v3497 = vpow.pop %v3496
  %v3498 = vmul.f32 %v3451, 1.442695
  %v3499 = vpow.pop %v3498
  %v3500 = vmul.f32 %v3452, 1.442695
  %v3501 = vpow.pop %v3500
  %v3502 = vmul.f32 %v3453, 1.442695
  %v3503 = vpow.pop %v3502
  %v3504 = vmul.f32 %v3454, 1.442695
  %v3505 = vpow.pop %v3504
  %v3506 = vmul.f32 %v3455, 1.442695
  %v3507 = vpow.pop %v3506
  %v3508 = vmul.f32 %v3456, 1.442695
  %v3509 = vpow.pop %v3508
  %v3510 = vmul.f32 %v3457, 1.442695
  %v3511 = vpow.pop %v3510
  %v3512 = vmul.f32 %v3458, 1.442695
  %v3513 = vpow.pop %v3512
  %v3514 = vmul.f32 %v3459, 1.442695
  %v3515 = vpow.pop %v3514
  %v3516 = vmul.f32 %v3460, 1.442695
  %v3517 = vpow.pop %v3516
  %v3518 = vmul.f32 %v3461, 1.442695
  %v3519 = vpow.pop %v3518
  %v3520 = vmul.f32 %v3462, 1.442695
  %v3521 = vpow.pop %v3520
  %v3522 = vmul.f32 %v3463, 1.442695
  %v3523 = vpow.pop %v3522
  %v3524 = vmul.f32 %v3464, 1.442695
  %v3525 = vpow.pop %v3524
  %v3526 = vmul.f32 %v3465, 1.442695
  %v3527 = vpow.pop %v3526
  %v3528 = vmul.f32 %v3466, 1.442695
  %v3529 = vpow.pop %v3528
  %v3530 = vmul.f32 %v3467, 1.442695
  %v3531 = vpow.pop %v3530
  %3564 = vset.pattern.permute.xlu0 0
  %3565 = vperm.xlu0 %3564, %v3469
  %v3566 = vpop.permute.xlu0 %3565
  %3567 = vset.pattern.permute.xlu0 0
  %3568 = vperm.xlu0 %3567, %v3471
  %v3569 = vpop.permute.xlu0 %3568
  %3570 = vset.pattern.permute.xlu0 0
  %3571 = vperm.xlu0 %3570, %v3473
  %v3572 = vpop.permute.xlu0 %3571
  %3573 = vset.pattern.permute.xlu0 0
  %3574 = vperm.xlu0 %3573, %v3475
  %v3575 = vpop.permute.xlu0 %3574
  %3576 = vset.pattern.permute.xlu0 0
  %3577 = vperm.xlu0 %3576, %v3477
  %v3578 = vpop.permute.xlu0 %3577
  %3579 = vset.pattern.permute.xlu0 0
  %3580 = vperm.xlu0 %3579, %v3479
  %v3581 = vpop.permute.xlu0 %3580
  %3582 = vset.pattern.permute.xlu0 0
  %3583 = vperm.xlu0 %3582, %v3481
  %v3584 = vpop.permute.xlu0 %3583
  %3585 = vset.pattern.permute.xlu0 0
  %3586 = vperm.xlu0 %3585, %v3483
  %v3587 = vpop.permute.xlu0 %3586
  %3588 = vset.pattern.permute.xlu0 0
  %3589 = vperm.xlu0 %3588, %v3485
  %v3590 = vpop.permute.xlu0 %3589
  %3591 = vset.pattern.permute.xlu0 0
  %3592 = vperm.xlu0 %3591, %v3487
  %v3593 = vpop.permute.xlu0 %3592
  %3594 = vset.pattern.permute.xlu0 0
  %3595 = vperm.xlu0 %3594, %v3489
  %v3596 = vpop.permute.xlu0 %3595
  %3597 = vset.pattern.permute.xlu0 0
  %3598 = vperm.xlu0 %3597, %v3491
  %v3599 = vpop.permute.xlu0 %3598
  %3600 = vset.pattern.permute.xlu0 0
  %3601 = vperm.xlu0 %3600, %v3493
  %v3602 = vpop.permute.xlu0 %3601
  %3603 = vset.pattern.permute.xlu0 0
  %3604 = vperm.xlu0 %3603, %v3495
  %v3605 = vpop.permute.xlu0 %3604
  %3606 = vset.pattern.permute.xlu0 0
  %3607 = vperm.xlu0 %3606, %v3497
  %v3608 = vpop.permute.xlu0 %3607
  %3609 = vset.pattern.permute.xlu0 0
  %3610 = vperm.xlu0 %3609, %v3499
  %v3611 = vpop.permute.xlu0 %3610
  %3612 = vset.pattern.permute.xlu0 0
  %3613 = vperm.xlu0 %3612, %v3501
  %v3614 = vpop.permute.xlu0 %3613
  %3615 = vset.pattern.permute.xlu0 0
  %3616 = vperm.xlu0 %3615, %v3503
  %v3617 = vpop.permute.xlu0 %3616
  %3618 = vset.pattern.permute.xlu0 0
  %3619 = vperm.xlu0 %3618, %v3505
  %v3620 = vpop.permute.xlu0 %3619
  %3621 = vset.pattern.permute.xlu0 0
  %3622 = vperm.xlu0 %3621, %v3507
  %v3623 = vpop.permute.xlu0 %3622
  %3624 = vset.pattern.permute.xlu0 0
  %3625 = vperm.xlu0 %3624, %v3509
  %v3626 = vpop.permute.xlu0 %3625
  %3627 = vset.pattern.permute.xlu0 0
  %3628 = vperm.xlu0 %3627, %v3511
  %v3629 = vpop.permute.xlu0 %3628
  %3630 = vset.pattern.permute.xlu0 0
  %3631 = vperm.xlu0 %3630, %v3513
  %v3632 = vpop.permute.xlu0 %3631
  %3633 = vset.pattern.permute.xlu0 0
  %3634 = vperm.xlu0 %3633, %v3515
  %v3635 = vpop.permute.xlu0 %3634
  %3636 = vset.pattern.permute.xlu0 0
  %3637 = vperm.xlu0 %3636, %v3517
  %v3638 = vpop.permute.xlu0 %3637
  %3639 = vset.pattern.permute.xlu0 0
  %3640 = vperm.xlu0 %3639, %v3519
  %v3641 = vpop.permute.xlu0 %3640
  %3642 = vset.pattern.permute.xlu0 0
  %3643 = vperm.xlu0 %3642, %v3521
  %v3644 = vpop.permute.xlu0 %3643
  %3645 = vset.pattern.permute.xlu0 0
  %3646 = vperm.xlu0 %3645, %v3523
  %v3647 = vpop.permute.xlu0 %3646
  %3648 = vset.pattern.permute.xlu0 0
  %3649 = vperm.xlu0 %3648, %v3525
  %v3650 = vpop.permute.xlu0 %3649
  %3651 = vset.pattern.permute.xlu0 0
  %3652 = vperm.xlu0 %3651, %v3527
  %v3653 = vpop.permute.xlu0 %3652
  %3654 = vset.pattern.permute.xlu0 0
  %3655 = vperm.xlu0 %3654, %v3529
  %v3656 = vpop.permute.xlu0 %3655
  %3657 = vset.pattern.permute.xlu0 0
  %3658 = vperm.xlu0 %3657, %v3531
  %v3659 = vpop.permute.xlu0 %3658
  %v3660 = vlaneseq
  %v3661 = vshrl.u32 %v3660, 7
  %v3662 = vsub.s32 %v3091, %v3661
  %v3663 = vrot.slane %v3566, %v3662
  %v3664 = vlaneseq
  %v3665 = vshrl.u32 %v3664, 7
  %v3666 = vsub.s32 %v3091, %v3665
  %v3667 = vrot.slane %v3569, %v3666
  %v3668 = vlaneseq
  %v3669 = vshrl.u32 %v3668, 7
  %v3670 = vsub.s32 %v3091, %v3669
  %v3671 = vrot.slane %v3572, %v3670
  %v3672 = vlaneseq
  %v3673 = vshrl.u32 %v3672, 7
  %v3674 = vsub.s32 %v3091, %v3673
  %v3675 = vrot.slane %v3575, %v3674
  %v3676 = vlaneseq
  %v3677 = vshrl.u32 %v3676, 7
  %v3678 = vsub.s32 %v3091, %v3677
  %v3679 = vrot.slane %v3578, %v3678
  %v3680 = vlaneseq
  %v3681 = vshrl.u32 %v3680, 7
  %v3682 = vsub.s32 %v3091, %v3681
  %v3683 = vrot.slane %v3581, %v3682
  %v3684 = vlaneseq
  %v3685 = vshrl.u32 %v3684, 7
  %v3686 = vsub.s32 %v3091, %v3685
  %v3687 = vrot.slane %v3584, %v3686
  %v3688 = vlaneseq
  %v3689 = vshrl.u32 %v3688, 7
  %v3690 = vsub.s32 %v3091, %v3689
  %v3691 = vrot.slane %v3587, %v3690
  %v3692 = vlaneseq
  %v3693 = vshrl.u32 %v3692, 7
  %v3694 = vsub.s32 %v3091, %v3693
  %v3695 = vrot.slane %v3590, %v3694
  %v3696 = vlaneseq
  %v3697 = vshrl.u32 %v3696, 7
  %v3698 = vsub.s32 %v3091, %v3697
  %v3699 = vrot.slane %v3593, %v3698
  %v3700 = vlaneseq
  %v3701 = vshrl.u32 %v3700, 7
  %v3702 = vsub.s32 %v3091, %v3701
  %v3703 = vrot.slane %v3596, %v3702
  %v3704 = vlaneseq
  %v3705 = vshrl.u32 %v3704, 7
  %v3706 = vsub.s32 %v3091, %v3705
  %v3707 = vrot.slane %v3599, %v3706
  %v3708 = vlaneseq
  %v3709 = vshrl.u32 %v3708, 7
  %v3710 = vsub.s32 %v3091, %v3709
  %v3711 = vrot.slane %v3602, %v3710
  %v3712 = vlaneseq
  %v3713 = vshrl.u32 %v3712, 7
  %v3714 = vsub.s32 %v3091, %v3713
  %v3715 = vrot.slane %v3605, %v3714
  %v3716 = vlaneseq
  %v3717 = vshrl.u32 %v3716, 7
  %v3718 = vsub.s32 %v3091, %v3717
  %v3719 = vrot.slane %v3608, %v3718
  %v3720 = vlaneseq
  %v3721 = vshrl.u32 %v3720, 7
  %v3722 = vsub.s32 %v3091, %v3721
  %v3723 = vrot.slane %v3611, %v3722
  %v3724 = vlaneseq
  %v3725 = vshrl.u32 %v3724, 7
  %v3726 = vsub.s32 %v3091, %v3725
  %v3727 = vrot.slane %v3614, %v3726
  %v3728 = vlaneseq
  %v3729 = vshrl.u32 %v3728, 7
  %v3730 = vsub.s32 %v3091, %v3729
  %v3731 = vrot.slane %v3617, %v3730
  %v3732 = vlaneseq
  %v3733 = vshrl.u32 %v3732, 7
  %v3734 = vsub.s32 %v3091, %v3733
  %v3735 = vrot.slane %v3620, %v3734
  %v3736 = vlaneseq
  %v3737 = vshrl.u32 %v3736, 7
  %v3738 = vsub.s32 %v3091, %v3737
  %v3739 = vrot.slane %v3623, %v3738
  %v3740 = vlaneseq
  %v3741 = vshrl.u32 %v3740, 7
  %v3742 = vsub.s32 %v3091, %v3741
  %v3743 = vrot.slane %v3626, %v3742
  %v3744 = vlaneseq
  %v3745 = vshrl.u32 %v3744, 7
  %v3746 = vsub.s32 %v3091, %v3745
  %v3747 = vrot.slane %v3629, %v3746
  %v3748 = vlaneseq
  %v3749 = vshrl.u32 %v3748, 7
  %v3750 = vsub.s32 %v3091, %v3749
  %v3751 = vrot.slane %v3632, %v3750
  %v3752 = vlaneseq
  %v3753 = vshrl.u32 %v3752, 7
  %v3754 = vsub.s32 %v3091, %v3753
  %v3755 = vrot.slane %v3635, %v3754
  %v3756 = vlaneseq
  %v3757 = vshrl.u32 %v3756, 7
  %v3758 = vsub.s32 %v3091, %v3757
  %v3759 = vrot.slane %v3638, %v3758
  %v3760 = vlaneseq
  %v3761 = vshrl.u32 %v3760, 7
  %v3762 = vsub.s32 %v3091, %v3761
  %v3763 = vrot.slane %v3641, %v3762
  %v3764 = vlaneseq
  %v3765 = vshrl.u32 %v3764, 7
  %v3766 = vsub.s32 %v3091, %v3765
  %v3767 = vrot.slane %v3644, %v3766
  %v3768 = vlaneseq
  %v3769 = vshrl.u32 %v3768, 7
  %v3770 = vsub.s32 %v3091, %v3769
  %v3771 = vrot.slane %v3647, %v3770
  %v3772 = vlaneseq
  %v3773 = vshrl.u32 %v3772, 7
  %v3774 = vsub.s32 %v3091, %v3773
  %v3775 = vrot.slane %v3650, %v3774
  %v3776 = vlaneseq
  %v3777 = vshrl.u32 %v3776, 7
  %v3778 = vsub.s32 %v3091, %v3777
  %v3779 = vrot.slane %v3653, %v3778
  %v3780 = vlaneseq
  %v3781 = vshrl.u32 %v3780, 7
  %v3782 = vsub.s32 %v3091, %v3781
  %v3783 = vrot.slane %v3656, %v3782
  %v3784 = vlaneseq
  %v3785 = vshrl.u32 %v3784, 7
  %v3786 = vsub.s32 %v3091, %v3785
  %v3787 = vrot.slane %v3659, %v3786
  %v3788 = vsel %vm3220, %v3667, %v3663
  %v3789 = vsel %vm3222, %v3671, %v3788
  %v3790 = vsel %vm3224, %v3675, %v3789
  %v3791 = vsel %vm3226, %v3679, %v3790
  %v3792 = vsel %vm3228, %v3683, %v3791
  %v3793 = vsel %vm3230, %v3687, %v3792
  %v3794 = vsel %vm3232, %v3691, %v3793
  %v3795 = vsel %vm3220, %v3699, %v3695
  %v3796 = vsel %vm3222, %v3703, %v3795
  %v3797 = vsel %vm3224, %v3707, %v3796
  %v3798 = vsel %vm3226, %v3711, %v3797
  %v3799 = vsel %vm3228, %v3715, %v3798
  %v3800 = vsel %vm3230, %v3719, %v3799
  %v3801 = vsel %vm3232, %v3723, %v3800
  %v3802 = vsel %vm3220, %v3731, %v3727
  %v3803 = vsel %vm3222, %v3735, %v3802
  %v3804 = vsel %vm3224, %v3739, %v3803
  %v3805 = vsel %vm3226, %v3743, %v3804
  %v3806 = vsel %vm3228, %v3747, %v3805
  %v3807 = vsel %vm3230, %v3751, %v3806
  %v3808 = vsel %vm3232, %v3755, %v3807
  %v3809 = vsel %vm3220, %v3763, %v3759
  %v3810 = vsel %vm3222, %v3767, %v3809
  %v3811 = vsel %vm3224, %v3771, %v3810
  %v3812 = vsel %vm3226, %v3775, %v3811
  %v3813 = vsel %vm3228, %v3779, %v3812
  %v3814 = vsel %vm3230, %v3783, %v3813
  %v3815 = vsel %vm3232, %v3787, %v3814
  %v3820 = vsel %vm3259, %v3794, 0.0
  %3821 = vadd.xlane.f32.xlu0 %v3820
  %v3822 = vpop.xlane.xlu0 %3821
  %v3823 = vsel %vm3259, %v3801, 0.0
  %3824 = vadd.xlane.f32.xlu0 %v3823
  %v3825 = vpop.xlane.xlu0 %3824
  %v3826 = vsel %vm3259, %v3808, 0.0
  %3827 = vadd.xlane.f32.xlu0 %v3826
  %v3828 = vpop.xlane.xlu0 %3827
  %v3829 = vsel %vm3259, %v3815, 0.0
  %3830 = vadd.xlane.f32.xlu0 %v3829
  %v3831 = vpop.xlane.xlu0 %3830
  %v3832 = vrcp.pop %v3822
  %v3833 = vrcp.pop %v3825
  %v3834 = vrcp.pop %v3828
  %v3835 = vrcp.pop %v3831
  %v3840 = vlaneseq
  %v3841 = vshrl.u32 %v3840, 7
  %v3842 = vsub.s32 0, %v3841
  %v3843 = vrot.slane %v3832, %v3842
  %v3844 = vlaneseq
  %v3845 = vshrl.u32 %v3844, 7
  %v3846 = vsub.s32 1, %v3845
  %v3847 = vrot.slane %v3832, %v3846
  %v3848 = vlaneseq
  %v3849 = vshrl.u32 %v3848, 7
  %v3850 = vsub.s32 2, %v3849
  %v3851 = vrot.slane %v3832, %v3850
  %v3852 = vlaneseq
  %v3853 = vshrl.u32 %v3852, 7
  %v3854 = vsub.s32 3, %v3853
  %v3855 = vrot.slane %v3832, %v3854
  %v3856 = vlaneseq
  %v3857 = vshrl.u32 %v3856, 7
  %v3858 = vsub.s32 4, %v3857
  %v3859 = vrot.slane %v3832, %v3858
  %v3860 = vlaneseq
  %v3861 = vshrl.u32 %v3860, 7
  %v3862 = vsub.s32 5, %v3861
  %v3863 = vrot.slane %v3832, %v3862
  %v3864 = vlaneseq
  %v3865 = vshrl.u32 %v3864, 7
  %v3866 = vsub.s32 6, %v3865
  %v3867 = vrot.slane %v3832, %v3866
  %v3868 = vlaneseq
  %v3869 = vshrl.u32 %v3868, 7
  %v3870 = vsub.s32 7, %v3869
  %v3871 = vrot.slane %v3832, %v3870
  %v3872 = vlaneseq
  %v3873 = vshrl.u32 %v3872, 7
  %v3874 = vsub.s32 0, %v3873
  %v3875 = vrot.slane %v3833, %v3874
  %v3876 = vlaneseq
  %v3877 = vshrl.u32 %v3876, 7
  %v3878 = vsub.s32 1, %v3877
  %v3879 = vrot.slane %v3833, %v3878
  %v3880 = vlaneseq
  %v3881 = vshrl.u32 %v3880, 7
  %v3882 = vsub.s32 2, %v3881
  %v3883 = vrot.slane %v3833, %v3882
  %v3884 = vlaneseq
  %v3885 = vshrl.u32 %v3884, 7
  %v3886 = vsub.s32 3, %v3885
  %v3887 = vrot.slane %v3833, %v3886
  %v3888 = vlaneseq
  %v3889 = vshrl.u32 %v3888, 7
  %v3890 = vsub.s32 4, %v3889
  %v3891 = vrot.slane %v3833, %v3890
  %v3892 = vlaneseq
  %v3893 = vshrl.u32 %v3892, 7
  %v3894 = vsub.s32 5, %v3893
  %v3895 = vrot.slane %v3833, %v3894
  %v3896 = vlaneseq
  %v3897 = vshrl.u32 %v3896, 7
  %v3898 = vsub.s32 6, %v3897
  %v3899 = vrot.slane %v3833, %v3898
  %v3900 = vlaneseq
  %v3901 = vshrl.u32 %v3900, 7
  %v3902 = vsub.s32 7, %v3901
  %v3903 = vrot.slane %v3833, %v3902
  %v3904 = vlaneseq
  %v3905 = vshrl.u32 %v3904, 7
  %v3906 = vsub.s32 0, %v3905
  %v3907 = vrot.slane %v3834, %v3906
  %v3908 = vlaneseq
  %v3909 = vshrl.u32 %v3908, 7
  %v3910 = vsub.s32 1, %v3909
  %v3911 = vrot.slane %v3834, %v3910
  %v3912 = vlaneseq
  %v3913 = vshrl.u32 %v3912, 7
  %v3914 = vsub.s32 2, %v3913
  %v3915 = vrot.slane %v3834, %v3914
  %v3916 = vlaneseq
  %v3917 = vshrl.u32 %v3916, 7
  %v3918 = vsub.s32 3, %v3917
  %v3919 = vrot.slane %v3834, %v3918
  %v3920 = vlaneseq
  %v3921 = vshrl.u32 %v3920, 7
  %v3922 = vsub.s32 4, %v3921
  %v3923 = vrot.slane %v3834, %v3922
  %v3924 = vlaneseq
  %v3925 = vshrl.u32 %v3924, 7
  %v3926 = vsub.s32 5, %v3925
  %v3927 = vrot.slane %v3834, %v3926
  %v3928 = vlaneseq
  %v3929 = vshrl.u32 %v3928, 7
  %v3930 = vsub.s32 6, %v3929
  %v3931 = vrot.slane %v3834, %v3930
  %v3932 = vlaneseq
  %v3933 = vshrl.u32 %v3932, 7
  %v3934 = vsub.s32 7, %v3933
  %v3935 = vrot.slane %v3834, %v3934
  %v3936 = vlaneseq
  %v3937 = vshrl.u32 %v3936, 7
  %v3938 = vsub.s32 0, %v3937
  %v3939 = vrot.slane %v3835, %v3938
  %v3940 = vlaneseq
  %v3941 = vshrl.u32 %v3940, 7
  %v3942 = vsub.s32 1, %v3941
  %v3943 = vrot.slane %v3835, %v3942
  %v3944 = vlaneseq
  %v3945 = vshrl.u32 %v3944, 7
  %v3946 = vsub.s32 2, %v3945
  %v3947 = vrot.slane %v3835, %v3946
  %v3948 = vlaneseq
  %v3949 = vshrl.u32 %v3948, 7
  %v3950 = vsub.s32 3, %v3949
  %v3951 = vrot.slane %v3835, %v3950
  %v3952 = vlaneseq
  %v3953 = vshrl.u32 %v3952, 7
  %v3954 = vsub.s32 4, %v3953
  %v3955 = vrot.slane %v3835, %v3954
  %v3956 = vlaneseq
  %v3957 = vshrl.u32 %v3956, 7
  %v3958 = vsub.s32 5, %v3957
  %v3959 = vrot.slane %v3835, %v3958
  %v3960 = vlaneseq
  %v3961 = vshrl.u32 %v3960, 7
  %v3962 = vsub.s32 6, %v3961
  %v3963 = vrot.slane %v3835, %v3962
  %v3964 = vlaneseq
  %v3965 = vshrl.u32 %v3964, 7
  %v3966 = vsub.s32 7, %v3965
  %v3967 = vrot.slane %v3835, %v3966
  %v4000 = vmul.f32 %v3469, %v3843
  %v4001 = vmul.f32 %v3471, %v3847
  %v4002 = vmul.f32 %v3473, %v3851
  %v4003 = vmul.f32 %v3475, %v3855
  %v4004 = vmul.f32 %v3477, %v3859
  %v4005 = vmul.f32 %v3479, %v3863
  %v4006 = vmul.f32 %v3481, %v3867
  %v4007 = vmul.f32 %v3483, %v3871
  %v4008 = vmul.f32 %v3485, %v3875
  %v4009 = vmul.f32 %v3487, %v3879
  %v4010 = vmul.f32 %v3489, %v3883
  %v4011 = vmul.f32 %v3491, %v3887
  %v4012 = vmul.f32 %v3493, %v3891
  %v4013 = vmul.f32 %v3495, %v3895
  %v4014 = vmul.f32 %v3497, %v3899
  %v4015 = vmul.f32 %v3499, %v3903
  %v4016 = vmul.f32 %v3501, %v3907
  %v4017 = vmul.f32 %v3503, %v3911
  %v4018 = vmul.f32 %v3505, %v3915
  %v4019 = vmul.f32 %v3507, %v3919
  %v4020 = vmul.f32 %v3509, %v3923
  %v4021 = vmul.f32 %v3511, %v3927
  %v4022 = vmul.f32 %v3513, %v3931
  %v4023 = vmul.f32 %v3515, %v3935
  %v4024 = vmul.f32 %v3517, %v3939
  %v4025 = vmul.f32 %v3519, %v3943
  %v4026 = vmul.f32 %v3521, %v3947
  %v4027 = vmul.f32 %v3523, %v3951
  %v4028 = vmul.f32 %v3525, %v3955
  %v4029 = vmul.f32 %v3527, %v3959
  %v4030 = vmul.f32 %v3529, %v3963
  %v4031 = vmul.f32 %v3531, %v3967
  %4033 = vset.pattern.permute.xlu0 0
  %4034 = vperm.xlu0 %4033, %v4000
  %v4035 = vpop.permute.xlu0 %4034
  %4038 = vset.pattern.permute.xlu0 0
  %4039 = vperm.xlu0 %4038, %v4001
  %v4040 = vpop.permute.xlu0 %4039
  %4043 = vset.pattern.permute.xlu0 0
  %4044 = vperm.xlu0 %4043, %v4002
  %v4045 = vpop.permute.xlu0 %4044
  %4048 = vset.pattern.permute.xlu0 0
  %4049 = vperm.xlu0 %4048, %v4003
  %v4050 = vpop.permute.xlu0 %4049
  %4053 = vset.pattern.permute.xlu0 0
  %4054 = vperm.xlu0 %4053, %v4004
  %v4055 = vpop.permute.xlu0 %4054
  %4058 = vset.pattern.permute.xlu0 0
  %4059 = vperm.xlu0 %4058, %v4005
  %v4060 = vpop.permute.xlu0 %4059
  %4063 = vset.pattern.permute.xlu0 0
  %4064 = vperm.xlu0 %4063, %v4006
  %v4065 = vpop.permute.xlu0 %4064
  %4068 = vset.pattern.permute.xlu0 0
  %4069 = vperm.xlu0 %4068, %v4007
  %v4070 = vpop.permute.xlu0 %4069
  %4073 = vset.pattern.permute.xlu0 0
  %4074 = vperm.xlu0 %4073, %v4008
  %v4075 = vpop.permute.xlu0 %4074
  %4078 = vset.pattern.permute.xlu0 0
  %4079 = vperm.xlu0 %4078, %v4009
  %v4080 = vpop.permute.xlu0 %4079
  %4083 = vset.pattern.permute.xlu0 0
  %4084 = vperm.xlu0 %4083, %v4010
  %v4085 = vpop.permute.xlu0 %4084
  %4088 = vset.pattern.permute.xlu0 0
  %4089 = vperm.xlu0 %4088, %v4011
  %v4090 = vpop.permute.xlu0 %4089
  %4093 = vset.pattern.permute.xlu0 0
  %4094 = vperm.xlu0 %4093, %v4012
  %v4095 = vpop.permute.xlu0 %4094
  %4098 = vset.pattern.permute.xlu0 0
  %4099 = vperm.xlu0 %4098, %v4013
  %v4100 = vpop.permute.xlu0 %4099
  %4103 = vset.pattern.permute.xlu0 0
  %4104 = vperm.xlu0 %4103, %v4014
  %v4105 = vpop.permute.xlu0 %4104
  %4108 = vset.pattern.permute.xlu0 0
  %4109 = vperm.xlu0 %4108, %v4015
  %v4110 = vpop.permute.xlu0 %4109
  %4113 = vset.pattern.permute.xlu0 0
  %4114 = vperm.xlu0 %4113, %v4016
  %v4115 = vpop.permute.xlu0 %4114
  %4118 = vset.pattern.permute.xlu0 0
  %4119 = vperm.xlu0 %4118, %v4017
  %v4120 = vpop.permute.xlu0 %4119
  %4123 = vset.pattern.permute.xlu0 0
  %4124 = vperm.xlu0 %4123, %v4018
  %v4125 = vpop.permute.xlu0 %4124
  %4128 = vset.pattern.permute.xlu0 0
  %4129 = vperm.xlu0 %4128, %v4019
  %v4130 = vpop.permute.xlu0 %4129
  %4133 = vset.pattern.permute.xlu0 0
  %4134 = vperm.xlu0 %4133, %v4020
  %v4135 = vpop.permute.xlu0 %4134
  %4138 = vset.pattern.permute.xlu0 0
  %4139 = vperm.xlu0 %4138, %v4021
  %v4140 = vpop.permute.xlu0 %4139
  %4143 = vset.pattern.permute.xlu0 0
  %4144 = vperm.xlu0 %4143, %v4022
  %v4145 = vpop.permute.xlu0 %4144
  %4148 = vset.pattern.permute.xlu0 0
  %4149 = vperm.xlu0 %4148, %v4023
  %v4150 = vpop.permute.xlu0 %4149
  %4153 = vset.pattern.permute.xlu0 0
  %4154 = vperm.xlu0 %4153, %v4024
  %v4155 = vpop.permute.xlu0 %4154
  %4158 = vset.pattern.permute.xlu0 0
  %4159 = vperm.xlu0 %4158, %v4025
  %v4160 = vpop.permute.xlu0 %4159
  %4163 = vset.pattern.permute.xlu0 0
  %4164 = vperm.xlu0 %4163, %v4026
  %v4165 = vpop.permute.xlu0 %4164
  %4168 = vset.pattern.permute.xlu0 0
  %4169 = vperm.xlu0 %4168, %v4027
  %v4170 = vpop.permute.xlu0 %4169
  %4173 = vset.pattern.permute.xlu0 0
  %4174 = vperm.xlu0 %4173, %v4028
  %v4175 = vpop.permute.xlu0 %4174
  %4178 = vset.pattern.permute.xlu0 0
  %4179 = vperm.xlu0 %4178, %v4029
  %v4180 = vpop.permute.xlu0 %4179
  %4183 = vset.pattern.permute.xlu0 0
  %4184 = vperm.xlu0 %4183, %v4030
  %v4185 = vpop.permute.xlu0 %4184
  %4188 = vset.pattern.permute.xlu0 0
  %4189 = vperm.xlu0 %4188, %v4031
  %v4190 = vpop.permute.xlu0 %4189
  %v4192 = vmul.f32 %v4035, %v789
  %v4193 = vmul.f32 %v4040, %v790
  %v4194 = vmul.f32 %v4045, %v791
  %v4195 = vmul.f32 %v4050, %v792
  %v4196 = vmul.f32 %v4055, %v793
  %v4197 = vmul.f32 %v4060, %v794
  %v4198 = vmul.f32 %v4065, %v795
  %v4199 = vmul.f32 %v4070, %v796
  %v4200 = vmul.f32 %v4075, %v797
  %v4201 = vmul.f32 %v4080, %v798
  %v4202 = vmul.f32 %v4085, %v799
  %v4203 = vmul.f32 %v4090, %v800
  %v4204 = vmul.f32 %v4095, %v801
  %v4205 = vmul.f32 %v4100, %v802
  %v4206 = vmul.f32 %v4105, %v803
  %v4207 = vmul.f32 %v4110, %v804
  %v4208 = vmul.f32 %v4115, %v805
  %v4209 = vmul.f32 %v4120, %v806
  %v4210 = vmul.f32 %v4125, %v807
  %v4211 = vmul.f32 %v4130, %v808
  %v4212 = vmul.f32 %v4135, %v809
  %v4213 = vmul.f32 %v4140, %v810
  %v4214 = vmul.f32 %v4145, %v811
  %v4215 = vmul.f32 %v4150, %v812
  %v4216 = vmul.f32 %v4155, %v813
  %v4217 = vmul.f32 %v4160, %v814
  %v4218 = vmul.f32 %v4165, %v815
  %v4219 = vmul.f32 %v4170, %v816
  %v4220 = vmul.f32 %v4175, %v817
  %v4221 = vmul.f32 %v4180, %v818
  %v4222 = vmul.f32 %v4185, %v819
  %v4223 = vmul.f32 %v4190, %v820
  %v4224 = vsel %vm83, %v4192, 0.0
  %v4225 = vrot.slane %v4224, 4
  %v4226 = vadd.f32 %v4224, %v4225
  %v4227 = vrot.slane %v4226, 2
  %v4228 = vadd.f32 %v4226, %v4227
  %v4229 = vrot.slane %v4228, 1
  %v4230 = vadd.f32 %v4228, %v4229
  %v4231 = vsel %vm83, %v4193, 0.0
  %v4232 = vrot.slane %v4231, 4
  %v4233 = vadd.f32 %v4231, %v4232
  %v4234 = vrot.slane %v4233, 2
  %v4235 = vadd.f32 %v4233, %v4234
  %v4236 = vrot.slane %v4235, 1
  %v4237 = vadd.f32 %v4235, %v4236
  %v4238 = vsel %vm83, %v4194, 0.0
  %v4239 = vrot.slane %v4238, 4
  %v4240 = vadd.f32 %v4238, %v4239
  %v4241 = vrot.slane %v4240, 2
  %v4242 = vadd.f32 %v4240, %v4241
  %v4243 = vrot.slane %v4242, 1
  %v4244 = vadd.f32 %v4242, %v4243
  %v4245 = vsel %vm83, %v4195, 0.0
  %v4246 = vrot.slane %v4245, 4
  %v4247 = vadd.f32 %v4245, %v4246
  %v4248 = vrot.slane %v4247, 2
  %v4249 = vadd.f32 %v4247, %v4248
  %v4250 = vrot.slane %v4249, 1
  %v4251 = vadd.f32 %v4249, %v4250
  %v4252 = vsel %vm83, %v4196, 0.0
  %v4253 = vrot.slane %v4252, 4
  %v4254 = vadd.f32 %v4252, %v4253
  %v4255 = vrot.slane %v4254, 2
  %v4256 = vadd.f32 %v4254, %v4255
  %v4257 = vrot.slane %v4256, 1
  %v4258 = vadd.f32 %v4256, %v4257
  %v4259 = vsel %vm83, %v4197, 0.0
  %v4260 = vrot.slane %v4259, 4
  %v4261 = vadd.f32 %v4259, %v4260
  %v4262 = vrot.slane %v4261, 2
  %v4263 = vadd.f32 %v4261, %v4262
  %v4264 = vrot.slane %v4263, 1
  %v4265 = vadd.f32 %v4263, %v4264
  %v4266 = vsel %vm83, %v4198, 0.0
  %v4267 = vrot.slane %v4266, 4
  %v4268 = vadd.f32 %v4266, %v4267
  %v4269 = vrot.slane %v4268, 2
  %v4270 = vadd.f32 %v4268, %v4269
  %v4271 = vrot.slane %v4270, 1
  %v4272 = vadd.f32 %v4270, %v4271
  %v4273 = vsel %vm83, %v4199, 0.0
  %v4274 = vrot.slane %v4273, 4
  %v4275 = vadd.f32 %v4273, %v4274
  %v4276 = vrot.slane %v4275, 2
  %v4277 = vadd.f32 %v4275, %v4276
  %v4278 = vrot.slane %v4277, 1
  %v4279 = vadd.f32 %v4277, %v4278
  %v4280 = vsel %vm83, %v4200, 0.0
  %v4281 = vrot.slane %v4280, 4
  %v4282 = vadd.f32 %v4280, %v4281
  %v4283 = vrot.slane %v4282, 2
  %v4284 = vadd.f32 %v4282, %v4283
  %v4285 = vrot.slane %v4284, 1
  %v4286 = vadd.f32 %v4284, %v4285
  %v4287 = vsel %vm83, %v4201, 0.0
  %v4288 = vrot.slane %v4287, 4
  %v4289 = vadd.f32 %v4287, %v4288
  %v4290 = vrot.slane %v4289, 2
  %v4291 = vadd.f32 %v4289, %v4290
  %v4292 = vrot.slane %v4291, 1
  %v4293 = vadd.f32 %v4291, %v4292
  %v4294 = vsel %vm83, %v4202, 0.0
  %v4295 = vrot.slane %v4294, 4
  %v4296 = vadd.f32 %v4294, %v4295
  %v4297 = vrot.slane %v4296, 2
  %v4298 = vadd.f32 %v4296, %v4297
  %v4299 = vrot.slane %v4298, 1
  %v4300 = vadd.f32 %v4298, %v4299
  %v4301 = vsel %vm83, %v4203, 0.0
  %v4302 = vrot.slane %v4301, 4
  %v4303 = vadd.f32 %v4301, %v4302
  %v4304 = vrot.slane %v4303, 2
  %v4305 = vadd.f32 %v4303, %v4304
  %v4306 = vrot.slane %v4305, 1
  %v4307 = vadd.f32 %v4305, %v4306
  %v4308 = vsel %vm83, %v4204, 0.0
  %v4309 = vrot.slane %v4308, 4
  %v4310 = vadd.f32 %v4308, %v4309
  %v4311 = vrot.slane %v4310, 2
  %v4312 = vadd.f32 %v4310, %v4311
  %v4313 = vrot.slane %v4312, 1
  %v4314 = vadd.f32 %v4312, %v4313
  %v4315 = vsel %vm83, %v4205, 0.0
  %v4316 = vrot.slane %v4315, 4
  %v4317 = vadd.f32 %v4315, %v4316
  %v4318 = vrot.slane %v4317, 2
  %v4319 = vadd.f32 %v4317, %v4318
  %v4320 = vrot.slane %v4319, 1
  %v4321 = vadd.f32 %v4319, %v4320
  %v4322 = vsel %vm83, %v4206, 0.0
  %v4323 = vrot.slane %v4322, 4
  %v4324 = vadd.f32 %v4322, %v4323
  %v4325 = vrot.slane %v4324, 2
  %v4326 = vadd.f32 %v4324, %v4325
  %v4327 = vrot.slane %v4326, 1
  %v4328 = vadd.f32 %v4326, %v4327
  %v4329 = vsel %vm83, %v4207, 0.0
  %v4330 = vrot.slane %v4329, 4
  %v4331 = vadd.f32 %v4329, %v4330
  %v4332 = vrot.slane %v4331, 2
  %v4333 = vadd.f32 %v4331, %v4332
  %v4334 = vrot.slane %v4333, 1
  %v4335 = vadd.f32 %v4333, %v4334
  %v4336 = vsel %vm83, %v4208, 0.0
  %v4337 = vrot.slane %v4336, 4
  %v4338 = vadd.f32 %v4336, %v4337
  %v4339 = vrot.slane %v4338, 2
  %v4340 = vadd.f32 %v4338, %v4339
  %v4341 = vrot.slane %v4340, 1
  %v4342 = vadd.f32 %v4340, %v4341
  %v4343 = vsel %vm83, %v4209, 0.0
  %v4344 = vrot.slane %v4343, 4
  %v4345 = vadd.f32 %v4343, %v4344
  %v4346 = vrot.slane %v4345, 2
  %v4347 = vadd.f32 %v4345, %v4346
  %v4348 = vrot.slane %v4347, 1
  %v4349 = vadd.f32 %v4347, %v4348
  %v4350 = vsel %vm83, %v4210, 0.0
  %v4351 = vrot.slane %v4350, 4
  %v4352 = vadd.f32 %v4350, %v4351
  %v4353 = vrot.slane %v4352, 2
  %v4354 = vadd.f32 %v4352, %v4353
  %v4355 = vrot.slane %v4354, 1
  %v4356 = vadd.f32 %v4354, %v4355
  %v4357 = vsel %vm83, %v4211, 0.0
  %v4358 = vrot.slane %v4357, 4
  %v4359 = vadd.f32 %v4357, %v4358
  %v4360 = vrot.slane %v4359, 2
  %v4361 = vadd.f32 %v4359, %v4360
  %v4362 = vrot.slane %v4361, 1
  %v4363 = vadd.f32 %v4361, %v4362
  %v4364 = vsel %vm83, %v4212, 0.0
  %v4365 = vrot.slane %v4364, 4
  %v4366 = vadd.f32 %v4364, %v4365
  %v4367 = vrot.slane %v4366, 2
  %v4368 = vadd.f32 %v4366, %v4367
  %v4369 = vrot.slane %v4368, 1
  %v4370 = vadd.f32 %v4368, %v4369
  %v4371 = vsel %vm83, %v4213, 0.0
  %v4372 = vrot.slane %v4371, 4
  %v4373 = vadd.f32 %v4371, %v4372
  %v4374 = vrot.slane %v4373, 2
  %v4375 = vadd.f32 %v4373, %v4374
  %v4376 = vrot.slane %v4375, 1
  %v4377 = vadd.f32 %v4375, %v4376
  %v4378 = vsel %vm83, %v4214, 0.0
  %v4379 = vrot.slane %v4378, 4
  %v4380 = vadd.f32 %v4378, %v4379
  %v4381 = vrot.slane %v4380, 2
  %v4382 = vadd.f32 %v4380, %v4381
  %v4383 = vrot.slane %v4382, 1
  %v4384 = vadd.f32 %v4382, %v4383
  %v4385 = vsel %vm83, %v4215, 0.0
  %v4386 = vrot.slane %v4385, 4
  %v4387 = vadd.f32 %v4385, %v4386
  %v4388 = vrot.slane %v4387, 2
  %v4389 = vadd.f32 %v4387, %v4388
  %v4390 = vrot.slane %v4389, 1
  %v4391 = vadd.f32 %v4389, %v4390
  %v4392 = vsel %vm83, %v4216, 0.0
  %v4393 = vrot.slane %v4392, 4
  %v4394 = vadd.f32 %v4392, %v4393
  %v4395 = vrot.slane %v4394, 2
  %v4396 = vadd.f32 %v4394, %v4395
  %v4397 = vrot.slane %v4396, 1
  %v4398 = vadd.f32 %v4396, %v4397
  %v4399 = vsel %vm83, %v4217, 0.0
  %v4400 = vrot.slane %v4399, 4
  %v4401 = vadd.f32 %v4399, %v4400
  %v4402 = vrot.slane %v4401, 2
  %v4403 = vadd.f32 %v4401, %v4402
  %v4404 = vrot.slane %v4403, 1
  %v4405 = vadd.f32 %v4403, %v4404
  %v4406 = vsel %vm83, %v4218, 0.0
  %v4407 = vrot.slane %v4406, 4
  %v4408 = vadd.f32 %v4406, %v4407
  %v4409 = vrot.slane %v4408, 2
  %v4410 = vadd.f32 %v4408, %v4409
  %v4411 = vrot.slane %v4410, 1
  %v4412 = vadd.f32 %v4410, %v4411
  %v4413 = vsel %vm83, %v4219, 0.0
  %v4414 = vrot.slane %v4413, 4
  %v4415 = vadd.f32 %v4413, %v4414
  %v4416 = vrot.slane %v4415, 2
  %v4417 = vadd.f32 %v4415, %v4416
  %v4418 = vrot.slane %v4417, 1
  %v4419 = vadd.f32 %v4417, %v4418
  %v4420 = vsel %vm83, %v4220, 0.0
  %v4421 = vrot.slane %v4420, 4
  %v4422 = vadd.f32 %v4420, %v4421
  %v4423 = vrot.slane %v4422, 2
  %v4424 = vadd.f32 %v4422, %v4423
  %v4425 = vrot.slane %v4424, 1
  %v4426 = vadd.f32 %v4424, %v4425
  %v4427 = vsel %vm83, %v4221, 0.0
  %v4428 = vrot.slane %v4427, 4
  %v4429 = vadd.f32 %v4427, %v4428
  %v4430 = vrot.slane %v4429, 2
  %v4431 = vadd.f32 %v4429, %v4430
  %v4432 = vrot.slane %v4431, 1
  %v4433 = vadd.f32 %v4431, %v4432
  %v4434 = vsel %vm83, %v4222, 0.0
  %v4435 = vrot.slane %v4434, 4
  %v4436 = vadd.f32 %v4434, %v4435
  %v4437 = vrot.slane %v4436, 2
  %v4438 = vadd.f32 %v4436, %v4437
  %v4439 = vrot.slane %v4438, 1
  %v4440 = vadd.f32 %v4438, %v4439
  %v4441 = vsel %vm83, %v4223, 0.0
  %v4442 = vrot.slane %v4441, 4
  %v4443 = vadd.f32 %v4441, %v4442
  %v4444 = vrot.slane %v4443, 2
  %v4445 = vadd.f32 %v4443, %v4444
  %v4446 = vrot.slane %v4445, 1
  %v4447 = vadd.f32 %v4445, %v4446
  %v4448 = vadd.f32 %v4230, %v4342
  %v4449 = vadd.f32 %v4237, %v4349
  %v4450 = vadd.f32 %v4244, %v4356
  %v4451 = vadd.f32 %v4251, %v4363
  %v4452 = vadd.f32 %v4258, %v4370
  %v4453 = vadd.f32 %v4265, %v4377
  %v4454 = vadd.f32 %v4272, %v4384
  %v4455 = vadd.f32 %v4279, %v4391
  %v4456 = vadd.f32 %v4286, %v4398
  %v4457 = vadd.f32 %v4293, %v4405
  %v4458 = vadd.f32 %v4300, %v4412
  %v4459 = vadd.f32 %v4307, %v4419
  %v4460 = vadd.f32 %v4314, %v4426
  %v4461 = vadd.f32 %v4321, %v4433
  %v4462 = vadd.f32 %v4328, %v4440
  %v4463 = vadd.f32 %v4335, %v4447
  %v4480 = vsel %vm3220, %v4449, %v4448
  %v4481 = vsel %vm3222, %v4450, %v4480
  %v4482 = vsel %vm3224, %v4451, %v4481
  %v4483 = vsel %vm3226, %v4452, %v4482
  %v4484 = vsel %vm3228, %v4453, %v4483
  %v4485 = vsel %vm3230, %v4454, %v4484
  %v4486 = vsel %vm3232, %v4455, %v4485
  %v4487 = vsel %vm3220, %v4457, %v4456
  %v4488 = vsel %vm3222, %v4458, %v4487
  %v4489 = vsel %vm3224, %v4459, %v4488
  %v4490 = vsel %vm3226, %v4460, %v4489
  %v4491 = vsel %vm3228, %v4461, %v4490
  %v4492 = vsel %vm3230, %v4462, %v4491
  %v4493 = vsel %vm3232, %v4463, %v4492
  %4496 = vrot.lane.b32.xlu0 %v29, 32
  %v4497 = vpop.permute.xlu0 %4496
  %4498 = vrot.lane.b32.xlu0 %v30, 32
  %v4499 = vpop.permute.xlu0 %4498
  %v4502 = vsel %vm83, %v4486, %v4497
  %v4503 = vsel %vm83, %v4493, %v4499
  %v4504 = vld [vmem:[%s5 + $0x140] sm:$0xff]
  %v4505 = vld [vmem:[%s5 + $0x148] sm:$0xff]
  %v4506 = vld [vmem:[%s5 + $0x150] sm:$0xff]
  %v4507 = vld [vmem:[%s5 + $0x158] sm:$0xff]
  %v4508 = vld [vmem:[%s5 + $0x160] sm:$0xff]
  %v4509 = vld [vmem:[%s5 + $0x168] sm:$0xff]
  %v4510 = vld [vmem:[%s5 + $0x170] sm:$0xff]
  %v4511 = vld [vmem:[%s5 + $0x178] sm:$0xff]
  %v4512 = vld [vmem:[%s5 + $0x180] sm:$0x1]
  %v4513 = vlaneseq
  %v4514 = vshrl.u32 %v4513, 7
  %v4515 = vsub.s32 0, %v4514
  %v4516 = vrot.slane %v4512, %v4515
  %vm4517 = vcmask 523264
  %v4519 = vsel %vm4517, %v4502, 0
  %v4522 = vsel %vm4517, %v4503, 0
  %4524 = vmatprep.subr.mxu0 0.0
  %4525 = vmatpush1.msra.mxu0 %v4504
  %4526 = vmatprep.subr.mxu0 0.0
  %4527 = vmatpush1.msra.mxu0 %v4505
  %4528 = vmatprep.subr.mxu0 0.0
  %4529 = vmatpush1.msra.mxu0 %v4506
  %4530 = vmatprep.subr.mxu0 0.0
  %4531 = vmatpush1.msra.mxu0 %v4507
  %4532 = vmatprep.subr.mxu0 0.0
  %4533 = vmatpush1.msra.mxu0 %v4508
  %4534 = vmatprep.subr.mxu0 0.0
  %4535 = vmatpush1.msra.mxu0 %v4509
  %4536 = vmatprep.subr.mxu0 0.0
  %4537 = vmatpush1.msra.mxu0 %v4510
  %4538 = vmatprep.subr.mxu0 0.0
  %4539 = vmatpush1.msra.mxu0 %v4511
  %4540 = vmatprep.subr.mxu0 0.0
  %4541 = vmatpush1.msra.mxu0 0.0
  %4542 = vmatprep.subr.mxu0 0.0
  %4543 = vmatpush1.msra.mxu0 0.0
  %4544 = vmatprep.subr.mxu0 0.0
  %4545 = vmatpush1.msra.mxu0 0.0
  %4546 = vmatprep.subr.mxu0 0.0
  %4547 = vmatpush1.msra.mxu0 0.0
  %4548 = vmatprep.subr.mxu0 0.0
  %4549 = vmatpush1.msra.mxu0 0.0
  %4550 = vmatprep.subr.mxu0 0.0
  %4551 = vmatpush1.msra.mxu0 0.0
  %4552 = vmatprep.subr.mxu0 0.0
  %4553 = vmatpush1.msra.mxu0 0.0
  %4554 = vmatprep.subr.mxu0 0.0
  %4555 = vmatpush1.msra.mxu0 0.0
  %4556 = vmatprep.subr.mxu0 0.0
  %4557 = vmatpush1.msra.mxu0 0.0
  %4558 = vmatprep.subr.mxu0 0.0
  %4559 = vmatpush1.msra.mxu0 0.0
  %4560 = vmatprep.subr.mxu0 0.0
  %4561 = vmatpush1.msra.mxu0 0.0
  %4562 = vmatprep.subr.mxu0 0.0
  %4563 = vmatpush1.msra.mxu0 0.0
  %4564 = vmatprep.subr.mxu0 0.0
  %4565 = vmatpush1.msra.mxu0 0.0
  %4566 = vmatprep.subr.mxu0 0.0
  %4567 = vmatpush1.msra.mxu0 0.0
  %4568 = vmatprep.subr.mxu0 0.0
  %4569 = vmatpush1.msra.mxu0 0.0
  %4570 = vmatprep.subr.mxu0 0.0
  %4571 = vmatpush1.msra.mxu0 0.0
  %4572 = vmatprep.subr.mxu0 0.0
  %4573 = vmatpush1.msra.mxu0 0.0
  %4574 = vmatprep.subr.mxu0 0.0
  %4575 = vmatpush1.msra.mxu0 0.0
  %4576 = vmatprep.subr.mxu0 0.0
  %4577 = vmatpush1.msra.mxu0 0.0
  %4578 = vmatprep.subr.mxu0 0.0
  %4579 = vmatpush1.msra.mxu0 0.0
  %4580 = vmatprep.subr.mxu0 0.0
  %4581 = vmatpush1.msra.mxu0 0.0
  %4582 = vmatprep.subr.mxu0 0.0
  %4583 = vmatpush1.msra.mxu0 0.0
  %4584 = vmatprep.subr.mxu0 0.0
  %4585 = vmatpush1.msra.mxu0 0.0
  %4586 = vmatprep.subr.mxu0 0.0
  %4587 = vmatpush1.msra.mxu0 0.0
  %4588 = vmatprep.mubr.f32.mxu0 0.0
  %4589 = vmatmul.mubr.f32.gmra.mrb[0].mxu0 %v4519
  %v4590 = vpop.f32.mrb[0].mxu0
  %v4591 = vadd.f32 %v4516, %v4590
  %v4592 = vpop.f32.mrb[0].mxu0
  %4593 = vmatprep.mubr.f32.mxu0 0.0
  %4594 = vmatmul.mubr.f32.gmra.mrb[0].mxu0 %v4522
  %v4595 = vpop.f32.mrb[0].mxu0
  %v4596 = vadd.f32 %v4516, %v4595
  %v4597 = vpop.f32.mrb[0].mxu0
  %4598 = vdwg.mxu0
  %v4599 = vmul.f32 %v4591, 0.5
  %v4600 = vmul.f32 %v4596, 0.5
  %v4601 = vtanh.pop %v4599
  %v4602 = vtanh.pop %v4600
  %v4603 = vadd.f32 %v4601, 1.0
  %v4604 = vadd.f32 %v4602, 1.0
  %v4605 = vmul.f32 %v4603, 0.5
  %v4606 = vmul.f32 %v4604, 0.5
  %v4607 = vmul.f32 %v4605, %v4486
  %v4608 = vmul.f32 %v4606, %v4493
  %v4609 = vsub.f32 1.0, %v4605
  %v4610 = vsub.f32 1.0, %v4606
  %v4611 = vmul.f32 %v4609, %v29
  %v4612 = vmul.f32 %v4610, %v30
  %v4613 = vadd.f32 %v4607, %v4611
  %v4614 = vadd.f32 %v4608, %v4612
  %v4615 = vld [vmem:[%s3] sm:$0xff]
  %v4616 = vld [vmem:[%s3 + $0x8] sm:$0xff]
  %vm4617 = vcmask 130048
  %v4619 = vsel %vm4617, %v4615, 0
  %v4622 = vsel %vm4617, %v4616, 0
  %4624 = vmatprep.subr.mxu0 0.0
  %4625 = vmatpush1.msra.mxu0 %v4613
  %4626 = vmatprep.subr.mxu0 0.0
  %4627 = vmatpush1.msra.mxu0 %v4614
  %4628 = vmatprep.subr.mxu0 0.0
  %4629 = vmatpush1.msra.mxu0 0.0
  %4630 = vmatprep.subr.mxu0 0.0
  %4631 = vmatpush1.msra.mxu0 0.0
  %4632 = vmatprep.subr.mxu0 0.0
  %4633 = vmatpush1.msra.mxu0 0.0
  %4634 = vmatprep.subr.mxu0 0.0
  %4635 = vmatpush1.msra.mxu0 0.0
  %4636 = vmatprep.subr.mxu0 0.0
  %4637 = vmatpush1.msra.mxu0 0.0
  %4638 = vmatprep.subr.mxu0 0.0
  %4639 = vmatpush1.msra.mxu0 0.0
  %4640 = vmatprep.subr.mxu0 0.0
  %4641 = vmatpush1.msra.mxu0 0.0
  %4642 = vmatprep.subr.mxu0 0.0
  %4643 = vmatpush1.msra.mxu0 0.0
  %4644 = vmatprep.subr.mxu0 0.0
  %4645 = vmatpush1.msra.mxu0 0.0
  %4646 = vmatprep.subr.mxu0 0.0
  %4647 = vmatpush1.msra.mxu0 0.0
  %4648 = vmatprep.subr.mxu0 0.0
  %4649 = vmatpush1.msra.mxu0 0.0
  %4650 = vmatprep.subr.mxu0 0.0
  %4651 = vmatpush1.msra.mxu0 0.0
  %4652 = vmatprep.subr.mxu0 0.0
  %4653 = vmatpush1.msra.mxu0 0.0
  %4654 = vmatprep.subr.mxu0 0.0
  %4655 = vmatpush1.msra.mxu0 0.0
  %4656 = vmatprep.subr.mxu0 0.0
  %4657 = vmatpush1.msra.mxu0 0.0
  %4658 = vmatprep.subr.mxu0 0.0
  %4659 = vmatpush1.msra.mxu0 0.0
  %4660 = vmatprep.subr.mxu0 0.0
  %4661 = vmatpush1.msra.mxu0 0.0
  %4662 = vmatprep.subr.mxu0 0.0
  %4663 = vmatpush1.msra.mxu0 0.0
  %4664 = vmatprep.subr.mxu0 0.0
  %4665 = vmatpush1.msra.mxu0 0.0
  %4666 = vmatprep.subr.mxu0 0.0
  %4667 = vmatpush1.msra.mxu0 0.0
  %4668 = vmatprep.subr.mxu0 0.0
  %4669 = vmatpush1.msra.mxu0 0.0
  %4670 = vmatprep.subr.mxu0 0.0
  %4671 = vmatpush1.msra.mxu0 0.0
  %4672 = vmatprep.subr.mxu0 0.0
  %4673 = vmatpush1.msra.mxu0 0.0
  %4674 = vmatprep.subr.mxu0 0.0
  %4675 = vmatpush1.msra.mxu0 0.0
  %4676 = vmatprep.subr.mxu0 0.0
  %4677 = vmatpush1.msra.mxu0 0.0
  %4678 = vmatprep.subr.mxu0 0.0
  %4679 = vmatpush1.msra.mxu0 0.0
  %4680 = vmatprep.subr.mxu0 0.0
  %4681 = vmatpush1.msra.mxu0 0.0
  %4682 = vmatprep.subr.mxu0 0.0
  %4683 = vmatpush1.msra.mxu0 0.0
  %4684 = vmatprep.subr.mxu0 0.0
  %4685 = vmatpush1.msra.mxu0 0.0
  %4686 = vmatprep.subr.mxu0 0.0
  %4687 = vmatpush1.msra.mxu0 0.0
  %4688 = vmatprep.mubr.f32.mxu0 0.0
  %4689 = vmatmul.mubr.f32.gmra.mrb[0].mxu0 %v4619
  %v4690 = vpop.f32.mrb[0].mxu0
  %v4691 = vadd.f32 0.0, %v4690
  %v4692 = vpop.f32.mrb[0].mxu0
  %4693 = vmatprep.mubr.f32.mxu0 0.0
  %4694 = vmatmul.mubr.f32.gmra.mrb[0].mxu0 %v4622
  %v4695 = vpop.f32.mrb[0].mxu0
  %v4696 = vadd.f32 0.0, %v4695
  %v4697 = vpop.f32.mrb[0].mxu0
  %4698 = vdwg.mxu0
  %v4699 = vld [vmem:[%s4] sm:$0x3]
  %v4700 = vld [vmem:[%s5 + $0x188] sm:$0xff]
  %v4701 = vld [vmem:[%s5 + $0x190] sm:$0xff]
  %v4702 = vld [vmem:[%s5 + $0x198] sm:$0xff]
  %v4703 = vld [vmem:[%s5 + $0x1a0] sm:$0xff]
  %v4704 = vld [vmem:[%s5 + $0x1a8] sm:$0xff]
  %v4705 = vld [vmem:[%s5 + $0x1b0] sm:$0xff]
  %v4707 = vsel %vm83, %v4691, 0
  %v4710 = vsel %vm83, %v4696, 0
  %4712 = vmatprep.subr.mxu0 0.0
  %4713 = vmatpush1.msra.mxu0 %v4700
  %4714 = vmatprep.subr.mxu0 0.0
  %4715 = vmatpush1.msra.mxu0 %v4701
  %4716 = vmatprep.subr.mxu0 0.0
  %4717 = vmatpush1.msra.mxu0 %v4702
  %4718 = vmatprep.subr.mxu0 0.0
  %4719 = vmatpush1.msra.mxu0 %v4703
  %4720 = vmatprep.subr.mxu0 0.0
  %4721 = vmatpush1.msra.mxu0 0.0
  %4722 = vmatprep.subr.mxu0 0.0
  %4723 = vmatpush1.msra.mxu0 0.0
  %4724 = vmatprep.subr.mxu0 0.0
  %4725 = vmatpush1.msra.mxu0 0.0
  %4726 = vmatprep.subr.mxu0 0.0
  %4727 = vmatpush1.msra.mxu0 0.0
  %4728 = vmatprep.subr.mxu0 0.0
  %4729 = vmatpush1.msra.mxu0 0.0
  %4730 = vmatprep.subr.mxu0 0.0
  %4731 = vmatpush1.msra.mxu0 0.0
  %4732 = vmatprep.subr.mxu0 0.0
  %4733 = vmatpush1.msra.mxu0 0.0
  %4734 = vmatprep.subr.mxu0 0.0
  %4735 = vmatpush1.msra.mxu0 0.0
  %4736 = vmatprep.subr.mxu0 0.0
  %4737 = vmatpush1.msra.mxu0 0.0
  %4738 = vmatprep.subr.mxu0 0.0
  %4739 = vmatpush1.msra.mxu0 0.0
  %4740 = vmatprep.subr.mxu0 0.0
  %4741 = vmatpush1.msra.mxu0 0.0
  %4742 = vmatprep.subr.mxu0 0.0
  %4743 = vmatpush1.msra.mxu0 0.0
  %4744 = vmatprep.subr.mxu0 0.0
  %4745 = vmatpush1.msra.mxu0 0.0
  %4746 = vmatprep.subr.mxu0 0.0
  %4747 = vmatpush1.msra.mxu0 0.0
  %4748 = vmatprep.subr.mxu0 0.0
  %4749 = vmatpush1.msra.mxu0 0.0
  %4750 = vmatprep.subr.mxu0 0.0
  %4751 = vmatpush1.msra.mxu0 0.0
  %4752 = vmatprep.subr.mxu0 0.0
  %4753 = vmatpush1.msra.mxu0 0.0
  %4754 = vmatprep.subr.mxu0 0.0
  %4755 = vmatpush1.msra.mxu0 0.0
  %4756 = vmatprep.subr.mxu0 0.0
  %4757 = vmatpush1.msra.mxu0 0.0
  %4758 = vmatprep.subr.mxu0 0.0
  %4759 = vmatpush1.msra.mxu0 0.0
  %4760 = vmatprep.subr.mxu0 0.0
  %4761 = vmatpush1.msra.mxu0 0.0
  %4762 = vmatprep.subr.mxu0 0.0
  %4763 = vmatpush1.msra.mxu0 0.0
  %4764 = vmatprep.subr.mxu0 0.0
  %4765 = vmatpush1.msra.mxu0 0.0
  %4766 = vmatprep.subr.mxu0 0.0
  %4767 = vmatpush1.msra.mxu0 0.0
  %4768 = vmatprep.subr.mxu0 0.0
  %4769 = vmatpush1.msra.mxu0 0.0
  %4770 = vmatprep.subr.mxu0 0.0
  %4771 = vmatpush1.msra.mxu0 0.0
  %4772 = vmatprep.subr.mxu0 0.0
  %4773 = vmatpush1.msra.mxu0 0.0
  %4774 = vmatprep.subr.mxu0 0.0
  %4775 = vmatpush1.msra.mxu0 0.0
  %4776 = vmatprep.mubr.f32.mxu0 0.0
  %4777 = vmatmul.mubr.f32.gmra.mrb[0].mxu0 %v4707
  %v4778 = vpop.f32.mrb[0].mxu0
  %v4779 = vadd.f32 %v4704, %v4778
  %v4780 = vpop.f32.mrb[0].mxu0
  %4781 = vmatprep.mubr.f32.mxu0 0.0
  %4782 = vmatmul.mubr.f32.gmra.mrb[0].mxu0 %v4710
  %v4783 = vpop.f32.mrb[0].mxu0
  %v4784 = vadd.f32 %v4705, %v4783
  %v4785 = vpop.f32.mrb[0].mxu0
  %4786 = vdwg.mxu0
  %v4787 = vtanh.pop %v4779
  %v4788 = vtanh.pop %v4784
  %v4789 = vlaneseq
  %v4790 = vshrl.u32 %v4789, 7
  %v4791 = vsub.s32 0, %v4790
  %v4792 = vrot.slane %v4699, %v4791
  %4794 = vbcast.lane.b32.xlu0 %v4792, 256
  %v4795 = vpop.permute.xlu0 %4794
  %v4796 = vlaneseq
  %v4797 = vshrl.u32 %v4796, 7
  %v4798 = vsub.s32 1, %v4797
  %v4799 = vrot.slane %v4699, %v4798
  %4801 = vbcast.lane.b32.xlu0 %v4799, 256
  %v4802 = vpop.permute.xlu0 %4801
  %v4803 = vmul.f32 %v4787, %v4795
  %v4804 = vmul.f32 %v4788, %v4802
  %v4805 = vld [vmem:[%s5 + $0x1b8] sm:$0x1]
  %vm4806 = vcmp.gt.f32.partialorder %v4803, 0.0
  %vm4807 = vcmp.gt.f32.partialorder %v4804, 0.0
  %v4808 = vmul.f32 %v4803, 0.2
  %v4809 = vmul.f32 %v4804, 0.2
  %v4810 = vsel %vm4806, %v4803, %v4808
  %v4811 = vsel %vm4807, %v4804, %v4809
  %v4812 = vlaneseq
  %v4813 = vshrl.u32 %v4812, 7
  %v4814 = vsub.s32 0, %v4813
  %v4815 = vrot.slane %v4805, %v4814
  %v4816 = vmul.f32 %v4810, %v4815
  %v4817 = vmul.f32 %v4811, %v4815
  %v4818 = vsel %vm83, %v4816, 0.0
  %4819 = vadd.xlane.f32.xlu0 %v4818
  %v4820 = vpop.xlane.xlu0 %4819
  %v4821 = vsel %vm83, %v4817, 0.0
  %4822 = vadd.xlane.f32.xlu0 %v4821
  %v4823 = vpop.xlane.xlu0 %4822
  %v4824 = vsub.f32 1.0, %v4699
  %v4825 = vmul.f32 %v4824, -10000.0
  %v4827 = vlaneseq
  %v4828 = vshrl.u32 %v4827, 7
  %v4829 = vsub.s32 0, %v4828
  %v4830 = vrot.slane %v4825, %v4829
  %4832 = vbcast.lane.b32.xlu0 %v4830, 256
  %v4833 = vpop.permute.xlu0 %4832
  %v4834 = vlaneseq
  %v4835 = vshrl.u32 %v4834, 7
  %v4836 = vsub.s32 1, %v4835
  %v4837 = vrot.slane %v4825, %v4836
  %4839 = vbcast.lane.b32.xlu0 %v4837, 256
  %v4840 = vpop.permute.xlu0 %4839
  %v4843 = vadd.f32 %v4820, %v4833
  %v4844 = vadd.f32 %v4823, %v4840
  %4847 = vset.pattern.permute.xlu0 0
  %4848 = vperm.xlu0 %4847, %v4843
  %v4849 = vpop.permute.xlu0 %4848
  %4850 = vset.pattern.permute.xlu0 0
  %4851 = vperm.xlu0 %4850, %v4844
  %v4852 = vpop.permute.xlu0 %4851
  %v4853 = vlaneseq
  %v4854 = vshrl.u32 %v4853, 7
  %v4855 = vsub.s32 %v3091, %v4854
  %v4856 = vrot.slane %v4849, %v4855
  %v4857 = vlaneseq
  %v4858 = vshrl.u32 %v4857, 7
  %v4859 = vsub.s32 %v3091, %v4858
  %v4860 = vrot.slane %v4852, %v4859
  %v4861 = vsel %vm3220, %v4860, %v4856
  %vm4863 = vcmask 58368
  %v4864 = vsel %vm4863, %v4861, -inf
  %4865 = vmax.xlane.f32.xlu0 %v4864
  %v4866 = vpop.xlane.xlu0 %4865
  %v4868 = vlaneseq
  %v4869 = vshrl.u32 %v4868, 7
  %v4870 = vsub.s32 0, %v4869
  %v4871 = vrot.slane %v4866, %v4870
  %v4872 = vlaneseq
  %v4873 = vshrl.u32 %v4872, 7
  %v4874 = vsub.s32 1, %v4873
  %v4875 = vrot.slane %v4866, %v4874
  %v4878 = vsub.f32 %v4843, %v4871
  %v4879 = vsub.f32 %v4844, %v4875
  %v4880 = vmul.f32 %v4878, 1.442695
  %v4881 = vpow.pop %v4880
  %v4882 = vmul.f32 %v4879, 1.442695
  %v4883 = vpow.pop %v4882
  %4886 = vset.pattern.permute.xlu0 0
  %4887 = vperm.xlu0 %4886, %v4881
  %v4888 = vpop.permute.xlu0 %4887
  %4889 = vset.pattern.permute.xlu0 0
  %4890 = vperm.xlu0 %4889, %v4883
  %v4891 = vpop.permute.xlu0 %4890
  %v4892 = vlaneseq
  %v4893 = vshrl.u32 %v4892, 7
  %v4894 = vsub.s32 %v3091, %v4893
  %v4895 = vrot.slane %v4888, %v4894
  %v4896 = vlaneseq
  %v4897 = vshrl.u32 %v4896, 7
  %v4898 = vsub.s32 %v3091, %v4897
  %v4899 = vrot.slane %v4891, %v4898
  %v4900 = vsel %vm3220, %v4899, %v4895
  %v4902 = vsel %vm4863, %v4900, 0.0
  %4903 = vadd.xlane.f32.xlu0 %v4902
  %v4904 = vpop.xlane.xlu0 %4903
  %v4905 = vrcp.pop %v4904
  %v4907 = vlaneseq
  %v4908 = vshrl.u32 %v4907, 7
  %v4909 = vsub.s32 0, %v4908
  %v4910 = vrot.slane %v4905, %v4909
  %v4911 = vlaneseq
  %v4912 = vshrl.u32 %v4911, 7
  %v4913 = vsub.s32 1, %v4912
  %v4914 = vrot.slane %v4905, %v4913
  %v4917 = vmul.f32 %v4881, %v4910
  %v4918 = vmul.f32 %v4883, %v4914
  %4920 = vset.pattern.permute.xlu0 0
  %4921 = vperm.xlu0 %4920, %v4917
  %v4922 = vpop.permute.xlu0 %4921
  %4925 = vset.pattern.permute.xlu0 0
  %4926 = vperm.xlu0 %4925, %v4918
  %v4927 = vpop.permute.xlu0 %4926
  %v4929 = vmul.f32 %v4922, %v4803
  %v4930 = vmul.f32 %v4927, %v4804
  %v4931 = vsel %vm83, %v4929, 0.0
  %v4932 = vrot.slane %v4931, 4
  %v4933 = vadd.f32 %v4931, %v4932
  %v4934 = vrot.slane %v4933, 2
  %v4935 = vadd.f32 %v4933, %v4934
  %v4936 = vrot.slane %v4935, 1
  %v4937 = vadd.f32 %v4935, %v4936
  %v4938 = vsel %vm83, %v4930, 0.0
  %v4939 = vrot.slane %v4938, 4
  %v4940 = vadd.f32 %v4938, %v4939
  %v4941 = vrot.slane %v4940, 2
  %v4942 = vadd.f32 %v4940, %v4941
  %v4943 = vrot.slane %v4942, 1
  %v4944 = vadd.f32 %v4942, %v4943
  %v4947 = vsel %vm3220, %v4944, %v4937
  %vm4949 = vcmask 254976
  %v4950 = vsel %vm4949, %v4947, 0.0
  %4951 = vadd.xlane.f32.xlu0 %v4950
  %v4952 = vpop.xlane.xlu0 %4951
  %v4953 = vrcp.pop 32.0
  %v4954 = vmul.f32 %v4952, %v4953
  %v4956 = vrot.slane %v4954, 1
  %v4959 = vsub.f32 %v4937, %v4954
  %v4960 = vsub.f32 %v4944, %v4956
  %v4961 = vmul.f32 %v4959, %v4959
  %v4962 = vmul.f32 %v4960, %v4960
  %v4965 = vrot.slane %v4962, 7
  %v4966 = vsel %vm3220, %v4965, %v4961
  %v4968 = vsel %vm4949, %v4966, 0.0
  %4969 = vadd.xlane.f32.xlu0 %v4968
  %v4970 = vpop.xlane.xlu0 %4969
  %v4971 = vmul.f32 %v4970, %v4953
  %v4972 = vadd.f32 %v4971, 1e-05
  %v4973 = vrsqrt.pop %v4972
  %v4975 = vrot.slane %v4973, 1
  %v4978 = vmul.f32 %v4959, %v4973
  %v4979 = vmul.f32 %v4960, %v4975
  %v4980 = vld [vmem:[%s5 + $0x1c0] sm:$0x1]
  %v4981 = vlaneseq
  %v4982 = vshrl.u32 %v4981, 7
  %v4983 = vsub.s32 0, %v4982
  %v4984 = vrot.slane %v4980, %v4983
  %v4985 = vmul.f32 %v4978, %v4984
  %v4986 = vmul.f32 %v4979, %v4984
  %v4987 = vld [vmem:[%s5 + $0x1c8] sm:$0x1]
  %v4988 = vlaneseq
  %v4989 = vshrl.u32 %v4988, 7
  %v4990 = vsub.s32 0, %v4989
  %v4991 = vrot.slane %v4987, %v4990
  %v4992 = vadd.f32 %v4985, %v4991
  %v4993 = vadd.f32 %v4986, %v4991
  %v4994 = vld [vmem:[%s7] sm:$0xff]
  %v4995 = vld [vmem:[%s7 + $0x8] sm:$0xff]
  %v4996 = vld [vmem:[%s7 + $0x10] sm:$0xff]
  %v4997 = vld [vmem:[%s7 + $0x18] sm:$0xff]
  %v5000 = vrot.slane %v4993, 7
  %v5001 = vsel %vm3220, %v5000, %v4992
  %v5002 = vsel %vm83, %v5001, 0
  %5004 = vmatprep.subr.mxu0 0.0
  %5005 = vmatpush1.msra.mxu0 %v4994
  %5006 = vmatprep.subr.mxu0 0.0
  %5007 = vmatpush1.msra.mxu0 %v4995
  %5008 = vmatprep.subr.mxu0 0.0
  %5009 = vmatpush1.msra.mxu0 %v4996
  %5010 = vmatprep.subr.mxu0 0.0
  %5011 = vmatpush1.msra.mxu0 %v4997
  %5012 = vmatprep.subr.mxu0 0.0
  %5013 = vmatpush1.msra.mxu0 0.0
  %5014 = vmatprep.subr.mxu0 0.0
  %5015 = vmatpush1.msra.mxu0 0.0
  %5016 = vmatprep.subr.mxu0 0.0
  %5017 = vmatpush1.msra.mxu0 0.0
  %5018 = vmatprep.subr.mxu0 0.0
  %5019 = vmatpush1.msra.mxu0 0.0
  %5020 = vmatprep.subr.mxu0 0.0
  %5021 = vmatpush1.msra.mxu0 0.0
  %5022 = vmatprep.subr.mxu0 0.0
  %5023 = vmatpush1.msra.mxu0 0.0
  %5024 = vmatprep.subr.mxu0 0.0
  %5025 = vmatpush1.msra.mxu0 0.0
  %5026 = vmatprep.subr.mxu0 0.0
  %5027 = vmatpush1.msra.mxu0 0.0
  %5028 = vmatprep.subr.mxu0 0.0
  %5029 = vmatpush1.msra.mxu0 0.0
  %5030 = vmatprep.subr.mxu0 0.0
  %5031 = vmatpush1.msra.mxu0 0.0
  %5032 = vmatprep.subr.mxu0 0.0
  %5033 = vmatpush1.msra.mxu0 0.0
  %5034 = vmatprep.subr.mxu0 0.0
  %5035 = vmatpush1.msra.mxu0 0.0
  %5036 = vmatprep.subr.mxu0 0.0
  %5037 = vmatpush1.msra.mxu0 0.0
  %5038 = vmatprep.subr.mxu0 0.0
  %5039 = vmatpush1.msra.mxu0 0.0
  %5040 = vmatprep.subr.mxu0 0.0
  %5041 = vmatpush1.msra.mxu0 0.0
  %5042 = vmatprep.subr.mxu0 0.0
  %5043 = vmatpush1.msra.mxu0 0.0
  %5044 = vmatprep.subr.mxu0 0.0
  %5045 = vmatpush1.msra.mxu0 0.0
  %5046 = vmatprep.subr.mxu0 0.0
  %5047 = vmatpush1.msra.mxu0 0.0
  %5048 = vmatprep.subr.mxu0 0.0
  %5049 = vmatpush1.msra.mxu0 0.0
  %5050 = vmatprep.subr.mxu0 0.0
  %5051 = vmatpush1.msra.mxu0 0.0
  %5052 = vmatprep.subr.mxu0 0.0
  %5053 = vmatpush1.msra.mxu0 0.0
  %5054 = vmatprep.subr.mxu0 0.0
  %5055 = vmatpush1.msra.mxu0 0.0
  %5056 = vmatprep.subr.mxu0 0.0
  %5057 = vmatpush1.msra.mxu0 0.0
  %5058 = vmatprep.subr.mxu0 0.0
  %5059 = vmatpush1.msra.mxu0 0.0
  %5060 = vmatprep.subr.mxu0 0.0
  %5061 = vmatpush1.msra.mxu0 0.0
  %5062 = vmatprep.subr.mxu0 0.0
  %5063 = vmatpush1.msra.mxu0 0.0
  %5064 = vmatprep.subr.mxu0 0.0
  %5065 = vmatpush1.msra.mxu0 0.0
  %5066 = vmatprep.subr.mxu0 0.0
  %5067 = vmatpush1.msra.mxu0 0.0
  %5068 = vmatprep.mubr.f32.mxu0 0.0
  %5069 = vmatmul.mubr.f32.gmra.mrb[0].mxu0 %v5002
  %v5070 = vpop.f32.mrb[0].mxu0
  %v5071 = vadd.f32 0.0, %v5070
  %v5072 = vpop.f32.mrb[0].mxu0
  %5073 = vdwg.mxu0
  %v5074 = vld [vmem:[%s5 + $0x1d0] sm:$0xff]
  %v5075 = vld [vmem:[%s5 + $0x1d8] sm:$0xff]
  %v5076 = vld [vmem:[%s5 + $0x1e0] sm:$0xff]
  %v5077 = vld [vmem:[%s5 + $0x1e8] sm:$0xff]
  %v5078 = vld [vmem:[%s5 + $0x1f0] sm:$0xff]
  %v5079 = vld [vmem:[%s5 + $0x1f8] sm:$0xff]
  %v5080 = vld [vmem:[%s5 + $0x200] sm:$0xff]
  %v5081 = vld [vmem:[%s5 + $0x208] sm:$0xff]
  %5083 = vset.pattern.permute.xlu0 0
  %5084 = vperm.xlu0 %5083, %v5078
  %v5085 = vpop.permute.xlu0 %5084
  %5088 = vset.pattern.permute.xlu0 0
  %5089 = vperm.xlu0 %5088, %v5079
  %v5090 = vpop.permute.xlu0 %5089
  %5093 = vset.pattern.permute.xlu0 0
  %5094 = vperm.xlu0 %5093, %v5080
  %v5095 = vpop.permute.xlu0 %5094
  %5098 = vset.pattern.permute.xlu0 0
  %5099 = vperm.xlu0 %5098, %v5081
  %v5100 = vpop.permute.xlu0 %5099
  %v5103 = vsel %vm83, %v5074, 0
  %v5106 = vsel %vm83, %v5075, 0
  %v5109 = vsel %vm83, %v5076, 0
  %v5112 = vsel %vm83, %v5077, 0
  %5114 = vmatprep.subr.mxu0 0.0
  %5115 = vmatpush1.msra.mxu0 %v4994
  %5116 = vmatprep.subr.mxu0 0.0
  %5117 = vmatpush1.msra.mxu0 %v4995
  %5118 = vmatprep.subr.mxu0 0.0
  %5119 = vmatpush1.msra.mxu0 %v4996
  %5120 = vmatprep.subr.mxu0 0.0
  %5121 = vmatpush1.msra.mxu0 %v4997
  %5122 = vmatprep.subr.mxu0 0.0
  %5123 = vmatpush1.msra.mxu0 0.0
  %5124 = vmatprep.subr.mxu0 0.0
  %5125 = vmatpush1.msra.mxu0 0.0
  %5126 = vmatprep.subr.mxu0 0.0
  %5127 = vmatpush1.msra.mxu0 0.0
  %5128 = vmatprep.subr.mxu0 0.0
  %5129 = vmatpush1.msra.mxu0 0.0
  %5130 = vmatprep.subr.mxu0 0.0
  %5131 = vmatpush1.msra.mxu0 0.0
  %5132 = vmatprep.subr.mxu0 0.0
  %5133 = vmatpush1.msra.mxu0 0.0
  %5134 = vmatprep.subr.mxu0 0.0
  %5135 = vmatpush1.msra.mxu0 0.0
  %5136 = vmatprep.subr.mxu0 0.0
  %5137 = vmatpush1.msra.mxu0 0.0
  %5138 = vmatprep.subr.mxu0 0.0
  %5139 = vmatpush1.msra.mxu0 0.0
  %5140 = vmatprep.subr.mxu0 0.0
  %5141 = vmatpush1.msra.mxu0 0.0
  %5142 = vmatprep.subr.mxu0 0.0
  %5143 = vmatpush1.msra.mxu0 0.0
  %5144 = vmatprep.subr.mxu0 0.0
  %5145 = vmatpush1.msra.mxu0 0.0
  %5146 = vmatprep.subr.mxu0 0.0
  %5147 = vmatpush1.msra.mxu0 0.0
  %5148 = vmatprep.subr.mxu0 0.0
  %5149 = vmatpush1.msra.mxu0 0.0
  %5150 = vmatprep.subr.mxu0 0.0
  %5151 = vmatpush1.msra.mxu0 0.0
  %5152 = vmatprep.subr.mxu0 0.0
  %5153 = vmatpush1.msra.mxu0 0.0
  %5154 = vmatprep.subr.mxu0 0.0
  %5155 = vmatpush1.msra.mxu0 0.0
  %5156 = vmatprep.subr.mxu0 0.0
  %5157 = vmatpush1.msra.mxu0 0.0
  %5158 = vmatprep.subr.mxu0 0.0
  %5159 = vmatpush1.msra.mxu0 0.0
  %5160 = vmatprep.subr.mxu0 0.0
  %5161 = vmatpush1.msra.mxu0 0.0
  %5162 = vmatprep.subr.mxu0 0.0
  %5163 = vmatpush1.msra.mxu0 0.0
  %5164 = vmatprep.subr.mxu0 0.0
  %5165 = vmatpush1.msra.mxu0 0.0
  %5166 = vmatprep.subr.mxu0 0.0
  %5167 = vmatpush1.msra.mxu0 0.0
  %5168 = vmatprep.subr.mxu0 0.0
  %5169 = vmatpush1.msra.mxu0 0.0
  %5170 = vmatprep.subr.mxu0 0.0
  %5171 = vmatpush1.msra.mxu0 0.0
  %5172 = vmatprep.subr.mxu0 0.0
  %5173 = vmatpush1.msra.mxu0 0.0
  %5174 = vmatprep.subr.mxu0 0.0
  %5175 = vmatpush1.msra.mxu0 0.0
  %5176 = vmatprep.subr.mxu0 0.0
  %5177 = vmatpush1.msra.mxu0 0.0
  %5178 = vmatprep.mubr.f32.mxu0 0.0
  %5179 = vmatmul.mubr.f32.gmra.mrb[0].mxu0 %v5103
  %v5180 = vpop.f32.mrb[0].mxu0
  %v5181 = vadd.f32 %v5085, %v5180
  %v5182 = vpop.f32.mrb[0].mxu0
  %5183 = vmatprep.mubr.f32.mxu0 0.0
  %5184 = vmatmul.mubr.f32.gmra.mrb[0].mxu0 %v5106
  %v5185 = vpop.f32.mrb[0].mxu0
  %v5186 = vadd.f32 %v5090, %v5185
  %v5187 = vpop.f32.mrb[0].mxu0
  %5188 = vmatprep.mubr.f32.mxu0 0.0
  %5189 = vmatmul.mubr.f32.gmra.mrb[0].mxu0 %v5109
  %v5190 = vpop.f32.mrb[0].mxu0
  %v5191 = vadd.f32 %v5095, %v5190
  %v5192 = vpop.f32.mrb[0].mxu0
  %5193 = vmatprep.mubr.f32.mxu0 0.0
  %5194 = vmatmul.mubr.f32.gmra.mrb[0].mxu0 %v5112
  %v5195 = vpop.f32.mrb[0].mxu0
  %v5196 = vadd.f32 %v5100, %v5195
  %v5197 = vpop.f32.mrb[0].mxu0
  %5198 = vdwg.mxu0
  %v5199 = vmax.f32 %v5181, 0.0
  %v5200 = vmax.f32 %v5186, 0.0
  %v5201 = vmax.f32 %v5191, 0.0
  %v5202 = vmax.f32 %v5196, 0.0
  %5203 = vset.pattern.permute.xlu0 1
  %5204 = vperm.xlu0 %5203, %v5078
  %v5205 = vpop.permute.xlu0 %5204
  %5207 = vset.pattern.permute.xlu0 1
  %5208 = vperm.xlu0 %5207, %v5079
  %v5209 = vpop.permute.xlu0 %5208
  %5211 = vset.pattern.permute.xlu0 1
  %5212 = vperm.xlu0 %5211, %v5080
  %v5213 = vpop.permute.xlu0 %5212
  %5215 = vset.pattern.permute.xlu0 1
  %5216 = vperm.xlu0 %5215, %v5081
  %v5217 = vpop.permute.xlu0 %5216
  %v5219 = vmul.f32 %v5199, %v5205
  %v5220 = vmul.f32 %v5200, %v5209
  %v5221 = vmul.f32 %v5201, %v5213
  %v5222 = vmul.f32 %v5202, %v5217
  %v5223 = vadd.f32 %v5219, %v5220
  %v5224 = vadd.f32 %v5223, %v5221
  %v5225 = vadd.f32 %v5224, %v5222
  %v5226 = vrot.slane %v5225, 4
  %v5227 = vadd.f32 %v5225, %v5226
  %v5228 = vrot.slane %v5227, 2
  %v5229 = vadd.f32 %v5227, %v5228
  %v5230 = vrot.slane %v5229, 1
  %v5231 = vadd.f32 %v5229, %v5230
  %v5232 = vld [vmem:[%s5 + $0x1f0] sm:$0x1]
  %5234 = vset.pattern.permute.xlu0 2
  %5235 = vperm.xlu0 %5234, %v5232
  %v5236 = vpop.permute.xlu0 %5235
  %v5238 = vadd.f32 %v5231, %v5236
  %v5239 = vmul.f32 %v5238, 0.5
  %v5240 = vtanh.pop %v5239
  %v5241 = vadd.f32 %v5240, 1.0
  %v5242 = vmul.f32 %v5241, 0.5
  %v5243 = vlaneseq
  %v5244 = vshrl.u32 %v5243, 7
  %v5245 = vsub.s32 0, %v5244
  %v5246 = vrot.slane %v5242, %v5245
  %v5247 = vmul.f32 %v5071, %v5246
  %v5248 = vmul.f32 %v5242, 0.1
  %v5249 = vlaneseq
  %v5250 = vshrl.u32 %v5249, 7
  %v5251 = vsub.s32 0, %v5250
  %v5252 = vrot.slane %v5248, %v5251
  %v5253 = vsub.f32 %v5247, %v5252
  %v5255 = vrot.slane %v5253, 6
  %vm5257 = vcmask 1041408
  %v5258 = vsel %vm5257, %v5071, %v5255
  %5259 = vst [vmem:[%s8] sm:$0xf] %v5258
  // Predicated region
  $region34: #{mleup_forward.1} parent=0 // pred_check
    _
  $region35: #{mleup_forward.1} parent=0 // pred_check_branch
    %5261 = sbr.rel (0) target = $region37
  $region36: #{mleup_forward.1} parent=0 // pred_region
    _
  $region37: #{mleup_forward.1} parent=0 // pred_fallthru
    _
  // Predicated region
  $region38: #{mleup_forward.1} parent=0 // pred_check
    _
  $region39: #{mleup_forward.1} parent=0 // pred_check_branch
    %5263 = sbr.rel (0) target = $region41
  $region40: #{mleup_forward.1} parent=0 // pred_region
    _
  $region41: #{mleup_forward.1} parent=0 // pred_fallthru
    _

</llo_original>
